<compile_context>
chip_gen: v6e
topology: v6e:2x2x1
jax: 0.10.0
libtpu: 0.0.40
codegen_flags: <defaults>
</compile_context>

<pallas_src>
import numpy as np
import jax
import jax.numpy as jnp
from jax.experimental import pallas as pl
from jax.experimental.pallas import tpu as pltpu

_EPS = 1e-5


# ---------------------------------------------------------------------------
# Fused kernel
# ---------------------------------------------------------------------------

def _decoder_block_kernel(
    x_ref,                  # (N, H, W, Cin)        NHWC input
    w1_ref,                 # (9, Cin, Cm)          stage-1 folded dw+pw weights
    g1_ref, b1_ref,         # (1, Cm)               stage-1 BN gamma / beta
    w2_ref,                 # (4*Cm, 4*Cm)          stage-2 polyphase block weight
    g2_ref, b2_ref,         # (1, Cm)               stage-2 BN gamma / beta
    w3_ref,                 # (9, 4*Cm, 4*Cf)       stage-3 folded phase block weights
    g3_ref, b3_ref,         # (1, Cf)               stage-3 BN gamma / beta
    o_ref,                  # (4*Cf, N*H*W)         output: 4 parity phases, lane-dense
    xp_s,                   # (N, H+2, W+2, Cin)    scratch: zero-padded input
    y1p_s,                  # (N, H+1, W+1, Cm)     scratch: y1, zero pad bottom/right
    y2p_s,                  # (N, H+2, W+2, 4*Cm)   scratch: zero-padded y2 phases
):
    f32 = jnp.float32
    N, H, W, Cin = x_ref.shape
    Cm = g1_ref.shape[1]
    Cf = g3_ref.shape[1]
    NHW = N * H * W

    # ---------------- stage 1: SeparableConv2d(Cin -> Cm, k3, p1) + BN + ReLU
    # Halo-only zeroing; interior is fully overwritten by the input.
    xp_s[:, 0:1, :, :] = jnp.zeros((N, 1, W + 2, Cin), f32)
    xp_s[:, H + 1:H + 2, :, :] = jnp.zeros((N, 1, W + 2, Cin), f32)
    xp_s[:, 1:H + 1, 0:1, :] = jnp.zeros((N, H, 1, Cin), f32)
    xp_s[:, 1:H + 1, W + 1:W + 2, :] = jnp.zeros((N, H, 1, Cin), f32)
    xp_s[:, 1:H + 1, 1:W + 1, :] = x_ref[...]

    # Depthwise taps folded into the pointwise weight host-side: each tap is
    # one accumulating MXU matmul over a shifted window read from the Ref.
    acc1 = jnp.zeros((NHW, Cm), f32)
    for t in range(9):
        kh, kw = t // 3, t % 3
        win = xp_s[:, kh:kh + H, kw:kw + W, :].reshape(NHW, Cin)
        acc1 = acc1 + jnp.dot(win, w1_ref[t], preferred_element_type=f32)

    # Training-mode BN (single-pass sums, biased var) folded into scale/shift.
    s1 = jnp.sum(acc1, axis=0, keepdims=True)
    s2 = jnp.sum(acc1 * acc1, axis=0, keepdims=True)
    mean = s1 / NHW
    var = jnp.maximum(s2 / NHW - mean * mean, 0.0)
    scale = g1_ref[...] * jax.lax.rsqrt(var + _EPS)
    shift = b1_ref[...] - mean * scale
    y1 = jnp.maximum(acc1 * scale + shift, 0.0).reshape(N, H, W, Cm)

    # ---------------- stage 2: ConvTranspose2d(Cm -> Cm, k3, s2, p1, op1), polyphase
    # out[2m+a, 2n+b] only mixes y1[m+aq, n+bq] (aq, bq in {0,1}).  Pad y1 with
    # one zero row/col bottom-right (halo-only), lane-concatenate the 4 shifted
    # views and hit the flat (4Cm, 4Cm) block weight with ONE matmul.  Columns
    # hold the 4 output parities.  (Deconv bias omitted: cancelled by batch BN.)
    y1p_s[:, H:H + 1, :, :] = jnp.zeros((N, 1, W + 1, Cm), f32)
    y1p_s[:, 0:H, W:W + 1, :] = jnp.zeros((N, H, 1, Cm), f32)
    y1p_s[:, 0:H, 0:W, :] = y1

    s2op = jnp.concatenate(
        [y1p_s[:, aq:aq + H, bq:bq + W, :].reshape(NHW, Cm)
         for aq in range(2) for bq in range(2)], axis=1)               # (NHW, 4Cm)
    y2pre = jnp.dot(s2op, w2_ref[...], preferred_element_type=f32)     # (NHW, 4Cm)

    # BN over all N*2H*2W pixels = all 4 phases jointly; pool the per-column
    # sums across phase blocks with lane slices (no iota / pool matmul).
    s1 = jnp.sum(y2pre, axis=0, keepdims=True)
    s2 = jnp.sum(y2pre * y2pre, axis=0, keepdims=True)
    s1 = s1[:, 0:Cm] + s1[:, Cm:2 * Cm] + s1[:, 2 * Cm:3 * Cm] + s1[:, 3 * Cm:4 * Cm]
    s2 = s2[:, 0:Cm] + s2[:, Cm:2 * Cm] + s2[:, 2 * Cm:3 * Cm] + s2[:, 3 * Cm:4 * Cm]
    cnt2 = 4.0 * NHW
    mean = s1 / cnt2
    var = jnp.maximum(s2 / cnt2 - mean * mean, 0.0)
    scale = g2_ref[...] * jax.lax.rsqrt(var + _EPS)
    shift = b2_ref[...] - mean * scale
    scale4 = jnp.concatenate([scale] * 4, axis=1)
    shift4 = jnp.concatenate([shift] * 4, axis=1)
    y2 = jnp.maximum(y2pre * scale4 + shift4, 0.0).reshape(N, H, W, 4 * Cm)

    # ---------------- stage 3: SeparableConv2d(Cm -> Cf, k3, p1) + BN + ReLU
    # Stay in the phase domain: pad the packed phases once (halo-only); each of
    # the 9 spatial shifts is one accumulating MXU matmul against a folded
    # (4Cm, 4Cf) block weight that produces all 4 output phases at once.
    y2p_s[:, 0:1, :, :] = jnp.zeros((N, 1, W + 2, 4 * Cm), f32)
    y2p_s[:, H + 1:H + 2, :, :] = jnp.zeros((N, 1, W + 2, 4 * Cm), f32)
    y2p_s[:, 1:H + 1, 0:1, :] = jnp.zeros((N, H, 1, 4 * Cm), f32)
    y2p_s[:, 1:H + 1, W + 1:W + 2, :] = jnp.zeros((N, H, 1, 4 * Cm), f32)
    y2p_s[:, 1:H + 1, 1:W + 1, :] = y2

    acc3 = jnp.zeros((NHW, 4 * Cf), f32)
    for t in range(9):
        dm, dn = t // 3, t % 3                       # shift index = actual shift + 1
        win = y2p_s[:, dm:dm + H, dn:dn + W, :].reshape(NHW, 4 * Cm)
        acc3 = acc3 + jnp.dot(win, w3_ref[t], preferred_element_type=f32)

    s1 = jnp.sum(acc3, axis=0, keepdims=True)
    s2 = jnp.sum(acc3 * acc3, axis=0, keepdims=True)
    s1 = s1[:, 0:Cf] + s1[:, Cf:2 * Cf] + s1[:, 2 * Cf:3 * Cf] + s1[:, 3 * Cf:4 * Cf]
    s2 = s2[:, 0:Cf] + s2[:, Cf:2 * Cf] + s2[:, 2 * Cf:3 * Cf] + s2[:, 3 * Cf:4 * Cf]
    cnt3 = 4.0 * NHW
    mean = s1 / cnt3
    var = jnp.maximum(s2 / cnt3 - mean * mean, 0.0)
    scale = g3_ref[...] * jax.lax.rsqrt(var + _EPS)
    shift = b3_ref[...] - mean * scale
    scale4 = jnp.concatenate([scale] * 4, axis=1)
    shift4 = jnp.concatenate([shift] * 4, axis=1)
    y3 = jnp.maximum(acc3 * scale4 + shift4, 0.0)                      # (NHW, 4Cf)

    # Single fused transpose + lane-dense contiguous store (lanes = NHW).
    o_ref[...] = y3.T                                                  # (4Cf, NHW)


# ---------------------------------------------------------------------------
# Parameter init (deterministic, PyTorch-shaped, folded into kernel layouts)
# ---------------------------------------------------------------------------

def init_params(key, in_channels, n_filters):
    cm = in_channels // 4
    cf = n_filters
    ks = jax.random.split(key, 5)

    # PyTorch layouts (stand-ins for the nn.Module parameters).
    w_dw1 = jax.random.normal(ks[0], (in_channels, 1, 3, 3), jnp.float32) * 0.1
    w_pw1 = jax.random.normal(ks[1], (cm, in_channels, 1, 1), jnp.float32) * 0.1
    w_t2 = jax.random.normal(ks[2], (cm, cm, 3, 3), jnp.float32) * 0.1   # (in, out, kh, kw)
    w_dw3 = jax.random.normal(ks[3], (cm, 1, 3, 3), jnp.float32) * 0.1
    w_pw3 = jax.random.normal(ks[4], (cf, cm, 1, 1), jnp.float32) * 0.1
    # ConvTranspose2d bias deliberately omitted: training-mode BN subtracts the
    # per-channel batch mean right after, so a constant bias cancels exactly.
    # (Would need reinstating if eval-mode running stats were ever used.)

    # --- stage 1: fold depthwise taps into the pointwise weight ------------
    dw1 = np.asarray(w_dw1[:, 0])                         # (Cin, 3, 3)
    pw1 = np.asarray(w_pw1[:, :, 0, 0]).T                 # (Cin, Cm)
    w1 = np.stack([dw1[:, kh, kw][:, None] * pw1
                   for kh in range(3) for kw in range(3)], axis=0)   # (9, Cin, Cm)

    # --- stage 2: polyphase block weight for ConvTranspose2d(k3,s2,p1,op1) --
    # out[2m+ap, 2n+bp] += y1[m+aq, n+bq] @ W[:, :, kh, kw] with
    # kh = ap - 2*aq + 1, kw = bp - 2*bq + 1 (valid iff in [0, 2]).
    wt2 = np.asarray(w_t2)
    w2 = np.zeros((4 * cm, 4 * cm), np.float32)
    for q in range(4):
        aq, bq = q // 2, q % 2
        for p in range(4):
            ap, bp = p // 2, p % 2
            kh, kw = ap - 2 * aq + 1, bp - 2 * bq + 1
            if 0 <= kh <= 2 and 0 <= kw <= 2:
                w2[q * cm:(q + 1) * cm, p * cm:(p + 1) * cm] = wt2[:, :, kh, kw]

    # --- stage 3: folded phase-domain block weights --------------------------
    # For spatial shift (dm, dn) in {-1,0,1}^2, source phase q=(a_s,b_s) and
    # output phase p=(a,b):  kh = 2*dm + a_s - a + 1,  kw = 2*dn + b_s - b + 1
    # (valid iff in [0, 2]); block = diag(dw3[:,kh,kw]) @ pw3.
    dw3 = np.asarray(w_dw3[:, 0])                         # (Cm, 3, 3)
    pw3 = np.asarray(w_pw3[:, :, 0, 0]).T                 # (Cm, Cf)
    w3 = np.zeros((3, 3, 4 * cm, 4 * cf), np.float32)
    for dm in (-1, 0, 1):
        for dn in (-1, 0, 1):
            for a_s in range(2):
                for b_s in range(2):
                    q = 2 * a_s + b_s
                    for a in range(2):
                        for b in range(2):
                            p = 2 * a + b
                            kh = 2 * dm + a_s - a + 1
                            kw = 2 * dn + b_s - b + 1
                            if 0 <= kh <= 2 and 0 <= kw <= 2:
                                w3[dm + 1, dn + 1,
                                   q * cm:(q + 1) * cm,
                                   p * cf:(p + 1) * cf] = dw3[:, kh, kw][:, None] * pw3
    w3 = w3.reshape(9, 4 * cm, 4 * cf)

    return dict(
        w1=jnp.asarray(w1),                               # (9, Cin, Cm)
        w2=jnp.asarray(w2),                               # (4Cm, 4Cm)
        w3=jnp.asarray(w3),                               # (9, 4Cm, 4Cf)
        g1=jnp.ones((1, cm), jnp.float32), b1=jnp.zeros((1, cm), jnp.float32),
        g2=jnp.ones((1, cm), jnp.float32), b2=jnp.zeros((1, cm), jnp.float32),
        g3=jnp.ones((1, cf), jnp.float32), b3=jnp.zeros((1, cf), jnp.float32),
    )


# ---------------------------------------------------------------------------
# DecoderBlock forward (NCHW in / NCHW out)
# ---------------------------------------------------------------------------

def decoder_block_forward(x_nchw, params):
    x = jnp.transpose(x_nchw, (0, 2, 3, 1)).astype(jnp.float32)     # NCHW -> NHWC
    N, H, W, Cin = x.shape
    Cm = params["g1"].shape[1]
    Cf = params["g3"].shape[1]
    NHW = N * H * W

    # Advisory cost / VMEM info for the scheduler around the fused call.
    flops = int(2 * NHW * (9 * Cin * Cm + 16 * Cm * Cm + 36 * Cm * Cf))
    bytes_accessed = int(4 * (x.size + sum(int(v.size) for v in params.values())
                              + 4 * Cf * NHW))
    raw_vmem = 4 * (x.size + 4 * Cf * NHW
                    + N * (H + 2) * (W + 2) * Cin
                    + N * (H + 1) * (W + 1) * Cm
                    + N * (H + 2) * (W + 2) * 4 * Cm
                    + NHW * (Cin + 4 * Cm + 4 * Cf))
    vmem_limit = int(min(max(8 * raw_vmem, 16 << 20), 64 << 20))

    out = pl.pallas_call(
        _decoder_block_kernel,
        out_shape=jax.ShapeDtypeStruct((4 * Cf, NHW), jnp.float32),
        in_specs=[pl.BlockSpec(memory_space=pltpu.MemorySpace.VMEM)] * 10,
        out_specs=pl.BlockSpec(memory_space=pltpu.MemorySpace.VMEM),
        scratch_shapes=[
            pltpu.VMEM((N, H + 2, W + 2, Cin), jnp.float32),      # padded input
            pltpu.VMEM((N, H + 1, W + 1, Cm), jnp.float32),       # padded y1
            pltpu.VMEM((N, H + 2, W + 2, 4 * Cm), jnp.float32),   # padded y2 phases
        ],
        compiler_params=pltpu.CompilerParams(vmem_limit_bytes=vmem_limit),
        cost_estimate=pl.CostEstimate(flops=flops, transcendentals=0,
                                      bytes_accessed=bytes_accessed),
    )(x,
      params["w1"], params["g1"], params["b1"],
      params["w2"], params["g2"], params["b2"],
      params["w3"], params["g3"], params["b3"])

    # Re-interleave the 4 (row-parity, col-parity) phases back to NCHW.
    # (4*Cf, N*H*W) -> (N, Cf, 2H, 2W); pure XLA reshape/transpose on output.
    y = out.reshape(2, 2, Cf, N, H, W)                   # (a, b, c, n, m, w)
    y = jnp.transpose(y, (3, 4, 0, 5, 1, 2))             # (n, m, a, w, b, c)
    y = y.reshape(N, 2 * H, 2 * W, Cf)
    return jnp.transpose(y, (0, 3, 1, 2))                # NHWC -> NCHW


if __name__ == "__main__":
    key = jax.random.PRNGKey(0)
    in_channels, n_filters = 32, 16
    N, H, W = 2, 8, 8

    kx, kp = jax.random.split(key)
    x = jax.random.normal(kx, (N, in_channels, H, W), jnp.float32)
    params = init_params(kp, in_channels, n_filters)

    out = jax.jit(decoder_block_forward)(x, params)
    out = jax.block_until_ready(out)

    assert out.shape == (N, n_filters, 2 * H, 2 * W), out.shape
    assert bool(jnp.all(out >= 0.0)) and bool(jnp.all(jnp.isfinite(out)))
    print("KERNEL_OK")
</pallas_src>

<mosaic_0001>
module attributes {stable_mosaic.version = 11 : i64} {
  func.func @_decoder_block_kernel(%arg0: memref<2x8x8x32xf32, #tpu.memory_space<vmem>>, %arg1: memref<9x32x8xf32, #tpu.memory_space<vmem>>, %arg2: memref<1x8xf32, #tpu.memory_space<vmem>>, %arg3: memref<1x8xf32, #tpu.memory_space<vmem>>, %arg4: memref<32x32xf32, #tpu.memory_space<vmem>>, %arg5: memref<1x8xf32, #tpu.memory_space<vmem>>, %arg6: memref<1x8xf32, #tpu.memory_space<vmem>>, %arg7: memref<9x32x64xf32, #tpu.memory_space<vmem>>, %arg8: memref<1x16xf32, #tpu.memory_space<vmem>>, %arg9: memref<1x16xf32, #tpu.memory_space<vmem>>, %arg10: memref<64x128xf32, #tpu.memory_space<vmem>>, %arg11: memref<2x10x10x32xf32, #tpu.memory_space<vmem>>, %arg12: memref<2x9x9x8xf32, #tpu.memory_space<vmem>>, %arg13: memref<2x10x10x32xf32, #tpu.memory_space<vmem>>) attributes {dimension_semantics = [], scalar_prefetch = 0 : i64, scratch_operands = 3 : i64, tpu.core_type = #tpu.core_type<tc>} {
    %cst = arith.constant 0.000000e+00 : f32
    %0 = vector.broadcast %cst : f32 to vector<2x1x10x32xf32>
    %c0 = arith.constant 0 : index
    %c0_0 = arith.constant 0 : index
    %c0_1 = arith.constant 0 : index
    %c0_2 = arith.constant 0 : index
    %1 = vector.load %arg11[%c0, %c0_0, %c0_1, %c0_2] : memref<2x10x10x32xf32, #tpu.memory_space<vmem>>, vector<2x1x10x32xf32>
    tpu.vector_store %arg11[%c0, %c0_0, %c0_1, %c0_2], %0 {strides = array<i32>} : memref<2x10x10x32xf32, #tpu.memory_space<vmem>>, vector<2x1x10x32xf32>,
    %cst_3 = arith.constant 0.000000e+00 : f32
    %2 = vector.broadcast %cst_3 : f32 to vector<2x1x10x32xf32>
    %c0_4 = arith.constant 0 : index
    %c9 = arith.constant 9 : index
    %c0_5 = arith.constant 0 : index
    %c0_6 = arith.constant 0 : index
    %3 = vector.load %arg11[%c0_4, %c9, %c0_5, %c0_6] : memref<2x10x10x32xf32, #tpu.memory_space<vmem>>, vector<2x1x10x32xf32>
    tpu.vector_store %arg11[%c0_4, %c9, %c0_5, %c0_6], %2 {strides = array<i32>} : memref<2x10x10x32xf32, #tpu.memory_space<vmem>>, vector<2x1x10x32xf32>,
    %cst_7 = arith.constant 0.000000e+00 : f32
    %4 = vector.broadcast %cst_7 : f32 to vector<2x8x1x32xf32>
    %c0_8 = arith.constant 0 : index
    %c1 = arith.constant 1 : index
    %c0_9 = arith.constant 0 : index
    %c0_10 = arith.constant 0 : index
    %5 = vector.load %arg11[%c0_8, %c1, %c0_9, %c0_10] : memref<2x10x10x32xf32, #tpu.memory_space<vmem>>, vector<2x8x1x32xf32>
    tpu.vector_store %arg11[%c0_8, %c1, %c0_9, %c0_10], %4 {strides = array<i32>} : memref<2x10x10x32xf32, #tpu.memory_space<vmem>>, vector<2x8x1x32xf32>,
    %cst_11 = arith.constant 0.000000e+00 : f32
    %6 = vector.broadcast %cst_11 : f32 to vector<2x8x1x32xf32>
    %c0_12 = arith.constant 0 : index
    %c1_13 = arith.constant 1 : index
    %c9_14 = arith.constant 9 : index
    %c0_15 = arith.constant 0 : index
    %7 = vector.load %arg11[%c0_12, %c1_13, %c9_14, %c0_15] : memref<2x10x10x32xf32, #tpu.memory_space<vmem>>, vector<2x8x1x32xf32>
    tpu.vector_store %arg11[%c0_12, %c1_13, %c9_14, %c0_15], %6 {strides = array<i32>} : memref<2x10x10x32xf32, #tpu.memory_space<vmem>>, vector<2x8x1x32xf32>,
    %c0_16 = arith.constant 0 : index
    %c0_17 = arith.constant 0 : index
    %c0_18 = arith.constant 0 : index
    %c0_19 = arith.constant 0 : index
    %8 = vector.load %arg0[%c0_16, %c0_17, %c0_18, %c0_19] : memref<2x8x8x32xf32, #tpu.memory_space<vmem>>, vector<2x8x8x32xf32>
    %c0_20 = arith.constant 0 : index
    %c1_21 = arith.constant 1 : index
    %c1_22 = arith.constant 1 : index
    %c0_23 = arith.constant 0 : index
    %9 = vector.load %arg11[%c0_20, %c1_21, %c1_22, %c0_23] : memref<2x10x10x32xf32, #tpu.memory_space<vmem>>, vector<2x8x8x32xf32>
    tpu.vector_store %arg11[%c0_20, %c1_21, %c1_22, %c0_23], %8 {strides = array<i32>} : memref<2x10x10x32xf32, #tpu.memory_space<vmem>>, vector<2x8x8x32xf32>,
    %cst_24 = arith.constant 0.000000e+00 : f32
    %10 = vector.broadcast %cst_24 : f32 to vector<128x8xf32>
    %c0_25 = arith.constant 0 : index
    %c0_26 = arith.constant 0 : index
    %c0_27 = arith.constant 0 : index
    %c0_28 = arith.constant 0 : index
    %11 = vector.load %arg11[%c0_25, %c0_26, %c0_27, %c0_28] : memref<2x10x10x32xf32, #tpu.memory_space<vmem>>, vector<2x8x8x32xf32>
    %12 = vector.shape_cast %11 : vector<2x8x8x32xf32> to vector<128x32xf32>
    %c0_29 = arith.constant 0 : index
    %c0_30 = arith.constant 0 : index
    %c0_31 = arith.constant 0 : index
    %13 = vector.load %arg1[%c0_29, %c0_30, %c0_31] : memref<9x32x8xf32, #tpu.memory_space<vmem>>, vector<1x32x8xf32>
    %14 = vector.shape_cast %13 : vector<1x32x8xf32> to vector<32x8xf32>
    %cst_32 = arith.constant dense<0.000000e+00> : vector<128x8xf32>
    %15 = tpu.matmul %12, %14, %cst_32 {dimension_numbers = #tpu.dot_dimension_numbers<[1], [0], [0], [1], [0, 0, 1, 1], [], []>} : vector<128x32xf32>, vector<32x8xf32>, vector<128x8xf32> -> vector<128x8xf32>
    %16 = arith.addf %10, %15 : vector<128x8xf32>
    %c0_33 = arith.constant 0 : index
    %c0_34 = arith.constant 0 : index
    %c1_35 = arith.constant 1 : index
    %c0_36 = arith.constant 0 : index
    %17 = vector.load %arg11[%c0_33, %c0_34, %c1_35, %c0_36] : memref<2x10x10x32xf32, #tpu.memory_space<vmem>>, vector<2x8x8x32xf32>
    %18 = vector.shape_cast %17 : vector<2x8x8x32xf32> to vector<128x32xf32>
    %c1_37 = arith.constant 1 : index
    %c0_38 = arith.constant 0 : index
    %c0_39 = arith.constant 0 : index
    %19 = vector.load %arg1[%c1_37, %c0_38, %c0_39] : memref<9x32x8xf32, #tpu.memory_space<vmem>>, vector<1x32x8xf32>
    %20 = vector.shape_cast %19 : vector<1x32x8xf32> to vector<32x8xf32>
    %cst_40 = arith.constant dense<0.000000e+00> : vector<128x8xf32>
    %21 = tpu.matmul %18, %20, %cst_40 {dimension_numbers = #tpu.dot_dimension_numbers<[1], [0], [0], [1], [0, 0, 1, 1], [], []>} : vector<128x32xf32>, vector<32x8xf32>, vector<128x8xf32> -> vector<128x8xf32>
    %22 = arith.addf %16, %21 : vector<128x8xf32>
    %c0_41 = arith.constant 0 : index
    %c0_42 = arith.constant 0 : index
    %c2 = arith.constant 2 : index
    %c0_43 = arith.constant 0 : index
    %23 = vector.load %arg11[%c0_41, %c0_42, %c2, %c0_43] : memref<2x10x10x32xf32, #tpu.memory_space<vmem>>, vector<2x8x8x32xf32>
    %24 = vector.shape_cast %23 : vector<2x8x8x32xf32> to vector<128x32xf32>
    %c2_44 = arith.constant 2 : index
    %c0_45 = arith.constant 0 : index
    %c0_46 = arith.constant 0 : index
    %25 = vector.load %arg1[%c2_44, %c0_45, %c0_46] : memref<9x32x8xf32, #tpu.memory_space<vmem>>, vector<1x32x8xf32>
    %26 = vector.shape_cast %25 : vector<1x32x8xf32> to vector<32x8xf32>
    %cst_47 = arith.constant dense<0.000000e+00> : vector<128x8xf32>
    %27 = tpu.matmul %24, %26, %cst_47 {dimension_numbers = #tpu.dot_dimension_numbers<[1], [0], [0], [1], [0, 0, 1, 1], [], []>} : vector<128x32xf32>, vector<32x8xf32>, vector<128x8xf32> -> vector<128x8xf32>
    %28 = arith.addf %22, %27 : vector<128x8xf32>
    %c0_48 = arith.constant 0 : index
    %c1_49 = arith.constant 1 : index
    %c0_50 = arith.constant 0 : index
    %c0_51 = arith.constant 0 : index
    %29 = vector.load %arg11[%c0_48, %c1_49, %c0_50, %c0_51] : memref<2x10x10x32xf32, #tpu.memory_space<vmem>>, vector<2x8x8x32xf32>
    %30 = vector.shape_cast %29 : vector<2x8x8x32xf32> to vector<128x32xf32>
    %c3 = arith.constant 3 : index
    %c0_52 = arith.constant 0 : index
    %c0_53 = arith.constant 0 : index
    %31 = vector.load %arg1[%c3, %c0_52, %c0_53] : memref<9x32x8xf32, #tpu.memory_space<vmem>>, vector<1x32x8xf32>
    %32 = vector.shape_cast %31 : vector<1x32x8xf32> to vector<32x8xf32>
    %cst_54 = arith.constant dense<0.000000e+00> : vector<128x8xf32>
    %33 = tpu.matmul %30, %32, %cst_54 {dimension_numbers = #tpu.dot_dimension_numbers<[1], [0], [0], [1], [0, 0, 1, 1], [], []>} : vector<128x32xf32>, vector<32x8xf32>, vector<128x8xf32> -> vector<128x8xf32>
    %34 = arith.addf %28, %33 : vector<128x8xf32>
    %c0_55 = arith.constant 0 : index
    %c1_56 = arith.constant 1 : index
    %c1_57 = arith.constant 1 : index
    %c0_58 = arith.constant 0 : index
    %35 = vector.load %arg11[%c0_55, %c1_56, %c1_57, %c0_58] : memref<2x10x10x32xf32, #tpu.memory_space<vmem>>, vector<2x8x8x32xf32>
    %36 = vector.shape_cast %35 : vector<2x8x8x32xf32> to vector<128x32xf32>
    %c4 = arith.constant 4 : index
    %c0_59 = arith.constant 0 : index
    %c0_60 = arith.constant 0 : index
    %37 = vector.load %arg1[%c4, %c0_59, %c0_60] : memref<9x32x8xf32, #tpu.memory_space<vmem>>, vector<1x32x8xf32>
    %38 = vector.shape_cast %37 : vector<1x32x8xf32> to vector<32x8xf32>
    %cst_61 = arith.constant dense<0.000000e+00> : vector<128x8xf32>
    %39 = tpu.matmul %36, %38, %cst_61 {dimension_numbers = #tpu.dot_dimension_numbers<[1], [0], [0], [1], [0, 0, 1, 1], [], []>} : vector<128x32xf32>, vector<32x8xf32>, vector<128x8xf32> -> vector<128x8xf32>
    %40 = arith.addf %34, %39 : vector<128x8xf32>
    %c0_62 = arith.constant 0 : index
    %c1_63 = arith.constant 1 : index
    %c2_64 = arith.constant 2 : index
    %c0_65 = arith.constant 0 : index
    %41 = vector.load %arg11[%c0_62, %c1_63, %c2_64, %c0_65] : memref<2x10x10x32xf32, #tpu.memory_space<vmem>>, vector<2x8x8x32xf32>
    %42 = vector.shape_cast %41 : vector<2x8x8x32xf32> to vector<128x32xf32>
    %c5 = arith.constant 5 : index
    %c0_66 = arith.constant 0 : index
    %c0_67 = arith.constant 0 : index
    %43 = vector.load %arg1[%c5, %c0_66, %c0_67] : memref<9x32x8xf32, #tpu.memory_space<vmem>>, vector<1x32x8xf32>
    %44 = vector.shape_cast %43 : vector<1x32x8xf32> to vector<32x8xf32>
    %cst_68 = arith.constant dense<0.000000e+00> : vector<128x8xf32>
    %45 = tpu.matmul %42, %44, %cst_68 {dimension_numbers = #tpu.dot_dimension_numbers<[1], [0], [0], [1], [0, 0, 1, 1], [], []>} : vector<128x32xf32>, vector<32x8xf32>, vector<128x8xf32> -> vector<128x8xf32>
    %46 = arith.addf %40, %45 : vector<128x8xf32>
    %c0_69 = arith.constant 0 : index
    %c2_70 = arith.constant 2 : index
    %c0_71 = arith.constant 0 : index
    %c0_72 = arith.constant 0 : index
    %47 = vector.load %arg11[%c0_69, %c2_70, %c0_71, %c0_72] : memref<2x10x10x32xf32, #tpu.memory_space<vmem>>, vector<2x8x8x32xf32>
    %48 = vector.shape_cast %47 : vector<2x8x8x32xf32> to vector<128x32xf32>
    %c6 = arith.constant 6 : index
    %c0_73 = arith.constant 0 : index
    %c0_74 = arith.constant 0 : index
    %49 = vector.load %arg1[%c6, %c0_73, %c0_74] : memref<9x32x8xf32, #tpu.memory_space<vmem>>, vector<1x32x8xf32>
    %50 = vector.shape_cast %49 : vector<1x32x8xf32> to vector<32x8xf32>
    %cst_75 = arith.constant dense<0.000000e+00> : vector<128x8xf32>
    %51 = tpu.matmul %48, %50, %cst_75 {dimension_numbers = #tpu.dot_dimension_numbers<[1], [0], [0], [1], [0, 0, 1, 1], [], []>} : vector<128x32xf32>, vector<32x8xf32>, vector<128x8xf32> -> vector<128x8xf32>
    %52 = arith.addf %46, %51 : vector<128x8xf32>
    %c0_76 = arith.constant 0 : index
    %c2_77 = arith.constant 2 : index
    %c1_78 = arith.constant 1 : index
    %c0_79 = arith.constant 0 : index
    %53 = vector.load %arg11[%c0_76, %c2_77, %c1_78, %c0_79] : memref<2x10x10x32xf32, #tpu.memory_space<vmem>>, vector<2x8x8x32xf32>
    %54 = vector.shape_cast %53 : vector<2x8x8x32xf32> to vector<128x32xf32>
    %c7 = arith.constant 7 : index
    %c0_80 = arith.constant 0 : index
    %c0_81 = arith.constant 0 : index
    %55 = vector.load %arg1[%c7, %c0_80, %c0_81] : memref<9x32x8xf32, #tpu.memory_space<vmem>>, vector<1x32x8xf32>
    %56 = vector.shape_cast %55 : vector<1x32x8xf32> to vector<32x8xf32>
    %cst_82 = arith.constant dense<0.000000e+00> : vector<128x8xf32>
    %57 = tpu.matmul %54, %56, %cst_82 {dimension_numbers = #tpu.dot_dimension_numbers<[1], [0], [0], [1], [0, 0, 1, 1], [], []>} : vector<128x32xf32>, vector<32x8xf32>, vector<128x8xf32> -> vector<128x8xf32>
    %58 = arith.addf %52, %57 : vector<128x8xf32>
    %c0_83 = arith.constant 0 : index
    %c2_84 = arith.constant 2 : index
    %c2_85 = arith.constant 2 : index
    %c0_86 = arith.constant 0 : index
    %59 = vector.load %arg11[%c0_83, %c2_84, %c2_85, %c0_86] : memref<2x10x10x32xf32, #tpu.memory_space<vmem>>, vector<2x8x8x32xf32>
    %60 = vector.shape_cast %59 : vector<2x8x8x32xf32> to vector<128x32xf32>
    %c8 = arith.constant 8 : index
    %c0_87 = arith.constant 0 : index
    %c0_88 = arith.constant 0 : index
    %61 = vector.load %arg1[%c8, %c0_87, %c0_88] : memref<9x32x8xf32, #tpu.memory_space<vmem>>, vector<1x32x8xf32>
    %62 = vector.shape_cast %61 : vector<1x32x8xf32> to vector<32x8xf32>
    %cst_89 = arith.constant dense<0.000000e+00> : vector<128x8xf32>
    %63 = tpu.matmul %60, %62, %cst_89 {dimension_numbers = #tpu.dot_dimension_numbers<[1], [0], [0], [1], [0, 0, 1, 1], [], []>} : vector<128x32xf32>, vector<32x8xf32>, vector<128x8xf32> -> vector<128x8xf32>
    %64 = arith.addf %58, %63 : vector<128x8xf32>
    %cst_90 = arith.constant dense<0.000000e+00> : vector<8xf32>
    %65 = vector.multi_reduction <add>, %64, %cst_90 [0] : vector<128x8xf32> to vector<8xf32>
    %66 = vector.shape_cast %65 : vector<8xf32> to vector<1x8xf32>
    %67 = arith.mulf %64, %64 : vector<128x8xf32>
    %cst_91 = arith.constant dense<0.000000e+00> : vector<8xf32>
    %68 = vector.multi_reduction <add>, %67, %cst_91 [0] : vector<128x8xf32> to vector<8xf32>
    %69 = vector.shape_cast %68 : vector<8xf32> to vector<1x8xf32>
    %cst_92 = arith.constant 1.280000e+02 : f32
    %70 = vector.broadcast %cst_92 : f32 to vector<1x8xf32>
    %71 = arith.divf %66, %70 : vector<1x8xf32>
    %cst_93 = arith.constant 1.280000e+02 : f32
    %72 = vector.broadcast %cst_93 : f32 to vector<1x8xf32>
    %73 = arith.divf %69, %72 : vector<1x8xf32>
    %74 = arith.mulf %71, %71 : vector<1x8xf32>
    %75 = arith.subf %73, %74 : vector<1x8xf32>
    %cst_94 = arith.constant 0.000000e+00 : f32
    %76 = vector.broadcast %cst_94 : f32 to vector<1x8xf32>
    %77 = arith.maximumf %75, %76 : vector<1x8xf32>
    %c0_95 = arith.constant 0 : index
    %c0_96 = arith.constant 0 : index
    %78 = vector.load %arg2[%c0_95, %c0_96] : memref<1x8xf32, #tpu.memory_space<vmem>>, vector<1x8xf32>
    %cst_97 = arith.constant 9.99999974E-6 : f32
    %79 = vector.broadcast %cst_97 : f32 to vector<1x8xf32>
    %80 = arith.addf %77, %79 : vector<1x8xf32>
    %81 = math.rsqrt %80 : vector<1x8xf32>
    %82 = arith.mulf %78, %81 : vector<1x8xf32>
    %c0_98 = arith.constant 0 : index
    %c0_99 = arith.constant 0 : index
    %83 = vector.load %arg3[%c0_98, %c0_99] : memref<1x8xf32, #tpu.memory_space<vmem>>, vector<1x8xf32>
    %84 = arith.mulf %71, %82 : vector<1x8xf32>
    %85 = arith.subf %83, %84 : vector<1x8xf32>
    %86 = vector.broadcast %82 : vector<1x8xf32> to vector<128x8xf32>
    %87 = arith.mulf %64, %86 : vector<128x8xf32>
    %88 = vector.broadcast %85 : vector<1x8xf32> to vector<128x8xf32>
    %89 = arith.addf %87, %88 : vector<128x8xf32>
    %cst_100 = arith.constant 0.000000e+00 : f32
    %90 = vector.broadcast %cst_100 : f32 to vector<128x8xf32>
    %91 = arith.maximumf %89, %90 : vector<128x8xf32>
    %92 = vector.shape_cast %91 : vector<128x8xf32> to vector<2x8x8x8xf32>
    %cst_101 = arith.constant 0.000000e+00 : f32
    %93 = vector.broadcast %cst_101 : f32 to vector<2x1x9x8xf32>
    %c0_102 = arith.constant 0 : index
    %c8_103 = arith.constant 8 : index
    %c0_104 = arith.constant 0 : index
    %c0_105 = arith.constant 0 : index
    %94 = vector.load %arg12[%c0_102, %c8_103, %c0_104, %c0_105] : memref<2x9x9x8xf32, #tpu.memory_space<vmem>>, vector<2x1x9x8xf32>
    tpu.vector_store %arg12[%c0_102, %c8_103, %c0_104, %c0_105], %93 {strides = array<i32>} : memref<2x9x9x8xf32, #tpu.memory_space<vmem>>, vector<2x1x9x8xf32>,
    %cst_106 = arith.constant 0.000000e+00 : f32
    %95 = vector.broadcast %cst_106 : f32 to vector<2x8x1x8xf32>
    %c0_107 = arith.constant 0 : index
    %c0_108 = arith.constant 0 : index
    %c8_109 = arith.constant 8 : index
    %c0_110 = arith.constant 0 : index
    %96 = vector.load %arg12[%c0_107, %c0_108, %c8_109, %c0_110] : memref<2x9x9x8xf32, #tpu.memory_space<vmem>>, vector<2x8x1x8xf32>
    tpu.vector_store %arg12[%c0_107, %c0_108, %c8_109, %c0_110], %95 {strides = array<i32>} : memref<2x9x9x8xf32, #tpu.memory_space<vmem>>, vector<2x8x1x8xf32>,
    %c0_111 = arith.constant 0 : index
    %c0_112 = arith.constant 0 : index
    %c0_113 = arith.constant 0 : index
    %c0_114 = arith.constant 0 : index
    %97 = vector.load %arg12[%c0_111, %c0_112, %c0_113, %c0_114] : memref<2x9x9x8xf32, #tpu.memory_space<vmem>>, vector<2x8x8x8xf32>
    tpu.vector_store %arg12[%c0_111, %c0_112, %c0_113, %c0_114], %92 {strides = array<i32>} : memref<2x9x9x8xf32, #tpu.memory_space<vmem>>, vector<2x8x8x8xf32>,
    %c0_115 = arith.constant 0 : index
    %c0_116 = arith.constant 0 : index
    %c0_117 = arith.constant 0 : index
    %c0_118 = arith.constant 0 : index
    %98 = vector.load %arg12[%c0_115, %c0_116, %c0_117, %c0_118] : memref<2x9x9x8xf32, #tpu.memory_space<vmem>>, vector<2x8x8x8xf32>
    %99 = vector.shape_cast %98 : vector<2x8x8x8xf32> to vector<128x8xf32>
    %c0_119 = arith.constant 0 : index
    %c0_120 = arith.constant 0 : index
    %c1_121 = arith.constant 1 : index
    %c0_122 = arith.constant 0 : index
    %100 = vector.load %arg12[%c0_119, %c0_120, %c1_121, %c0_122] : memref<2x9x9x8xf32, #tpu.memory_space<vmem>>, vector<2x8x8x8xf32>
    %101 = vector.shape_cast %100 : vector<2x8x8x8xf32> to vector<128x8xf32>
    %c0_123 = arith.constant 0 : index
    %c1_124 = arith.constant 1 : index
    %c0_125 = arith.constant 0 : index
    %c0_126 = arith.constant 0 : index
    %102 = vector.load %arg12[%c0_123, %c1_124, %c0_125, %c0_126] : memref<2x9x9x8xf32, #tpu.memory_space<vmem>>, vector<2x8x8x8xf32>
    %103 = vector.shape_cast %102 : vector<2x8x8x8xf32> to vector<128x8xf32>
    %c0_127 = arith.constant 0 : index
    %c1_128 = arith.constant 1 : index
    %c1_129 = arith.constant 1 : index
    %c0_130 = arith.constant 0 : index
    %104 = vector.load %arg12[%c0_127, %c1_128, %c1_129, %c0_130] : memref<2x9x9x8xf32, #tpu.memory_space<vmem>>, vector<2x8x8x8xf32>
    %105 = vector.shape_cast %104 : vector<2x8x8x8xf32> to vector<128x8xf32>
    %106 = tpu.concatenate %99, %101, %103, %105 in 1 : vector<128x8xf32>, vector<128x8xf32>, vector<128x8xf32>, vector<128x8xf32> -> vector<128x32xf32>
    %c0_131 = arith.constant 0 : index
    %c0_132 = arith.constant 0 : index
    %107 = vector.load %arg4[%c0_131, %c0_132] : memref<32x32xf32, #tpu.memory_space<vmem>>, vector<32x32xf32>
    %cst_133 = arith.constant dense<0.000000e+00> : vector<128x32xf32>
    %108 = tpu.matmul %106, %107, %cst_133 {dimension_numbers = #tpu.dot_dimension_numbers<[1], [0], [0], [1], [0, 0, 1, 1], [], []>} : vector<128x32xf32>, vector<32x32xf32>, vector<128x32xf32> -> vector<128x32xf32>
    %cst_134 = arith.constant dense<0.000000e+00> : vector<32xf32>
    %109 = vector.multi_reduction <add>, %108, %cst_134 [0] : vector<128x32xf32> to vector<32xf32>
    %110 = vector.shape_cast %109 : vector<32xf32> to vector<1x32xf32>
    %111 = arith.mulf %108, %108 : vector<128x32xf32>
    %cst_135 = arith.constant dense<0.000000e+00> : vector<32xf32>
    %112 = vector.multi_reduction <add>, %111, %cst_135 [0] : vector<128x32xf32> to vector<32xf32>
    %113 = vector.shape_cast %112 : vector<32xf32> to vector<1x32xf32>
    %114 = vector.extract_strided_slice %110 {offsets = [0, 0], sizes = [1, 8], strides = [1, 1]} : vector<1x32xf32> to vector<1x8xf32>
    %115 = vector.extract_strided_slice %110 {offsets = [0, 8], sizes = [1, 8], strides = [1, 1]} : vector<1x32xf32> to vector<1x8xf32>
    %116 = arith.addf %114, %115 : vector<1x8xf32>
    %117 = vector.extract_strided_slice %110 {offsets = [0, 16], sizes = [1, 8], strides = [1, 1]} : vector<1x32xf32> to vector<1x8xf32>
    %118 = arith.addf %116, %117 : vector<1x8xf32>
    %119 = vector.extract_strided_slice %110 {offsets = [0, 24], sizes = [1, 8], strides = [1, 1]} : vector<1x32xf32> to vector<1x8xf32>
    %120 = arith.addf %118, %119 : vector<1x8xf32>
    %121 = vector.extract_strided_slice %113 {offsets = [0, 0], sizes = [1, 8], strides = [1, 1]} : vector<1x32xf32> to vector<1x8xf32>
    %122 = vector.extract_strided_slice %113 {offsets = [0, 8], sizes = [1, 8], strides = [1, 1]} : vector<1x32xf32> to vector<1x8xf32>
    %123 = arith.addf %121, %122 : vector<1x8xf32>
    %124 = vector.extract_strided_slice %113 {offsets = [0, 16], sizes = [1, 8], strides = [1, 1]} : vector<1x32xf32> to vector<1x8xf32>
    %125 = arith.addf %123, %124 : vector<1x8xf32>
    %126 = vector.extract_strided_slice %113 {offsets = [0, 24], sizes = [1, 8], strides = [1, 1]} : vector<1x32xf32> to vector<1x8xf32>
    %127 = arith.addf %125, %126 : vector<1x8xf32>
    %cst_136 = arith.constant 5.120000e+02 : f32
    %128 = vector.broadcast %cst_136 : f32 to vector<1x8xf32>
    %129 = arith.divf %120, %128 : vector<1x8xf32>
    %cst_137 = arith.constant 5.120000e+02 : f32
    %130 = vector.broadcast %cst_137 : f32 to vector<1x8xf32>
    %131 = arith.divf %127, %130 : vector<1x8xf32>
    %132 = arith.mulf %129, %129 : vector<1x8xf32>
    %133 = arith.subf %131, %132 : vector<1x8xf32>
    %cst_138 = arith.constant 0.000000e+00 : f32
    %134 = vector.broadcast %cst_138 : f32 to vector<1x8xf32>
    %135 = arith.maximumf %133, %134 : vector<1x8xf32>
    %c0_139 = arith.constant 0 : index
    %c0_140 = arith.constant 0 : index
    %136 = vector.load %arg5[%c0_139, %c0_140] : memref<1x8xf32, #tpu.memory_space<vmem>>, vector<1x8xf32>
    %cst_141 = arith.constant 9.99999974E-6 : f32
    %137 = vector.broadcast %cst_141 : f32 to vector<1x8xf32>
    %138 = arith.addf %135, %137 : vector<1x8xf32>
    %139 = math.rsqrt %138 : vector<1x8xf32>
    %140 = arith.mulf %136, %139 : vector<1x8xf32>
    %c0_142 = arith.constant 0 : index
    %c0_143 = arith.constant 0 : index
    %141 = vector.load %arg6[%c0_142, %c0_143] : memref<1x8xf32, #tpu.memory_space<vmem>>, vector<1x8xf32>
    %142 = arith.mulf %129, %140 : vector<1x8xf32>
    %143 = arith.subf %141, %142 : vector<1x8xf32>
    %144 = tpu.concatenate %140, %140, %140, %140 in 1 : vector<1x8xf32>, vector<1x8xf32>, vector<1x8xf32>, vector<1x8xf32> -> vector<1x32xf32>
    %145 = tpu.concatenate %143, %143, %143, %143 in 1 : vector<1x8xf32>, vector<1x8xf32>, vector<1x8xf32>, vector<1x8xf32> -> vector<1x32xf32>
    %146 = vector.broadcast %144 : vector<1x32xf32> to vector<128x32xf32>
    %147 = arith.mulf %108, %146 : vector<128x32xf32>
    %148 = vector.broadcast %145 : vector<1x32xf32> to vector<128x32xf32>
    %149 = arith.addf %147, %148 : vector<128x32xf32>
    %cst_144 = arith.constant 0.000000e+00 : f32
    %150 = vector.broadcast %cst_144 : f32 to vector<128x32xf32>
    %151 = arith.maximumf %149, %150 : vector<128x32xf32>
    %152 = vector.shape_cast %151 : vector<128x32xf32> to vector<2x8x8x32xf32>
    %cst_145 = arith.constant 0.000000e+00 : f32
    %153 = vector.broadcast %cst_145 : f32 to vector<2x1x10x32xf32>
    %c0_146 = arith.constant 0 : index
    %c0_147 = arith.constant 0 : index
    %c0_148 = arith.constant 0 : index
    %c0_149 = arith.constant 0 : index
    %154 = vector.load %arg13[%c0_146, %c0_147, %c0_148, %c0_149] : memref<2x10x10x32xf32, #tpu.memory_space<vmem>>, vector<2x1x10x32xf32>
    tpu.vector_store %arg13[%c0_146, %c0_147, %c0_148, %c0_149], %153 {strides = array<i32>} : memref<2x10x10x32xf32, #tpu.memory_space<vmem>>, vector<2x1x10x32xf32>,
    %cst_150 = arith.constant 0.000000e+00 : f32
    %155 = vector.broadcast %cst_150 : f32 to vector<2x1x10x32xf32>
    %c0_151 = arith.constant 0 : index
    %c9_152 = arith.constant 9 : index
    %c0_153 = arith.constant 0 : index
    %c0_154 = arith.constant 0 : index
    %156 = vector.load %arg13[%c0_151, %c9_152, %c0_153, %c0_154] : memref<2x10x10x32xf32, #tpu.memory_space<vmem>>, vector<2x1x10x32xf32>
    tpu.vector_store %arg13[%c0_151, %c9_152, %c0_153, %c0_154], %155 {strides = array<i32>} : memref<2x10x10x32xf32, #tpu.memory_space<vmem>>, vector<2x1x10x32xf32>,
    %cst_155 = arith.constant 0.000000e+00 : f32
    %157 = vector.broadcast %cst_155 : f32 to vector<2x8x1x32xf32>
    %c0_156 = arith.constant 0 : index
    %c1_157 = arith.constant 1 : index
    %c0_158 = arith.constant 0 : index
    %c0_159 = arith.constant 0 : index
    %158 = vector.load %arg13[%c0_156, %c1_157, %c0_158, %c0_159] : memref<2x10x10x32xf32, #tpu.memory_space<vmem>>, vector<2x8x1x32xf32>
    tpu.vector_store %arg13[%c0_156, %c1_157, %c0_158, %c0_159], %157 {strides = array<i32>} : memref<2x10x10x32xf32, #tpu.memory_space<vmem>>, vector<2x8x1x32xf32>,
    %cst_160 = arith.constant 0.000000e+00 : f32
    %159 = vector.broadcast %cst_160 : f32 to vector<2x8x1x32xf32>
    %c0_161 = arith.constant 0 : index
    %c1_162 = arith.constant 1 : index
    %c9_163 = arith.constant 9 : index
    %c0_164 = arith.constant 0 : index
    %160 = vector.load %arg13[%c0_161, %c1_162, %c9_163, %c0_164] : memref<2x10x10x32xf32, #tpu.memory_space<vmem>>, vector<2x8x1x32xf32>
    tpu.vector_store %arg13[%c0_161, %c1_162, %c9_163, %c0_164], %159 {strides = array<i32>} : memref<2x10x10x32xf32, #tpu.memory_space<vmem>>, vector<2x8x1x32xf32>,
    %c0_165 = arith.constant 0 : index
    %c1_166 = arith.constant 1 : index
    %c1_167 = arith.constant 1 : index
    %c0_168 = arith.constant 0 : index
    %161 = vector.load %arg13[%c0_165, %c1_166, %c1_167, %c0_168] : memref<2x10x10x32xf32, #tpu.memory_space<vmem>>, vector<2x8x8x32xf32>
    tpu.vector_store %arg13[%c0_165, %c1_166, %c1_167, %c0_168], %152 {strides = array<i32>} : memref<2x10x10x32xf32, #tpu.memory_space<vmem>>, vector<2x8x8x32xf32>,
    %cst_169 = arith.constant 0.000000e+00 : f32
    %162 = vector.broadcast %cst_169 : f32 to vector<128x64xf32>
    %c0_170 = arith.constant 0 : index
    %c0_171 = arith.constant 0 : index
    %c0_172 = arith.constant 0 : index
    %c0_173 = arith.constant 0 : index
    %163 = vector.load %arg13[%c0_170, %c0_171, %c0_172, %c0_173] : memref<2x10x10x32xf32, #tpu.memory_space<vmem>>, vector<2x8x8x32xf32>
    %164 = vector.shape_cast %163 : vector<2x8x8x32xf32> to vector<128x32xf32>
    %c0_174 = arith.constant 0 : index
    %c0_175 = arith.constant 0 : index
    %c0_176 = arith.constant 0 : index
    %165 = vector.load %arg7[%c0_174, %c0_175, %c0_176] : memref<9x32x64xf32, #tpu.memory_space<vmem>>, vector<1x32x64xf32>
    %166 = vector.shape_cast %165 : vector<1x32x64xf32> to vector<32x64xf32>
    %cst_177 = arith.constant dense<0.000000e+00> : vector<128x64xf32>
    %167 = tpu.matmul %164, %166, %cst_177 {dimension_numbers = #tpu.dot_dimension_numbers<[1], [0], [0], [1], [0, 0, 1, 1], [], []>} : vector<128x32xf32>, vector<32x64xf32>, vector<128x64xf32> -> vector<128x64xf32>
    %168 = arith.addf %162, %167 : vector<128x64xf32>
    %c0_178 = arith.constant 0 : index
    %c0_179 = arith.constant 0 : index
    %c1_180 = arith.constant 1 : index
    %c0_181 = arith.constant 0 : index
    %169 = vector.load %arg13[%c0_178, %c0_179, %c1_180, %c0_181] : memref<2x10x10x32xf32, #tpu.memory_space<vmem>>, vector<2x8x8x32xf32>
    %170 = vector.shape_cast %169 : vector<2x8x8x32xf32> to vector<128x32xf32>
    %c1_182 = arith.constant 1 : index
    %c0_183 = arith.constant 0 : index
    %c0_184 = arith.constant 0 : index
    %171 = vector.load %arg7[%c1_182, %c0_183, %c0_184] : memref<9x32x64xf32, #tpu.memory_space<vmem>>, vector<1x32x64xf32>
    %172 = vector.shape_cast %171 : vector<1x32x64xf32> to vector<32x64xf32>
    %cst_185 = arith.constant dense<0.000000e+00> : vector<128x64xf32>
    %173 = tpu.matmul %170, %172, %cst_185 {dimension_numbers = #tpu.dot_dimension_numbers<[1], [0], [0], [1], [0, 0, 1, 1], [], []>} : vector<128x32xf32>, vector<32x64xf32>, vector<128x64xf32> -> vector<128x64xf32>
    %174 = arith.addf %168, %173 : vector<128x64xf32>
    %c0_186 = arith.constant 0 : index
    %c0_187 = arith.constant 0 : index
    %c2_188 = arith.constant 2 : index
    %c0_189 = arith.constant 0 : index
    %175 = vector.load %arg13[%c0_186, %c0_187, %c2_188, %c0_189] : memref<2x10x10x32xf32, #tpu.memory_space<vmem>>, vector<2x8x8x32xf32>
    %176 = vector.shape_cast %175 : vector<2x8x8x32xf32> to vector<128x32xf32>
    %c2_190 = arith.constant 2 : index
    %c0_191 = arith.constant 0 : index
    %c0_192 = arith.constant 0 : index
    %177 = vector.load %arg7[%c2_190, %c0_191, %c0_192] : memref<9x32x64xf32, #tpu.memory_space<vmem>>, vector<1x32x64xf32>
    %178 = vector.shape_cast %177 : vector<1x32x64xf32> to vector<32x64xf32>
    %cst_193 = arith.constant dense<0.000000e+00> : vector<128x64xf32>
    %179 = tpu.matmul %176, %178, %cst_193 {dimension_numbers = #tpu.dot_dimension_numbers<[1], [0], [0], [1], [0, 0, 1, 1], [], []>} : vector<128x32xf32>, vector<32x64xf32>, vector<128x64xf32> -> vector<128x64xf32>
    %180 = arith.addf %174, %179 : vector<128x64xf32>
    %c0_194 = arith.constant 0 : index
    %c1_195 = arith.constant 1 : index
    %c0_196 = arith.constant 0 : index
    %c0_197 = arith.constant 0 : index
    %181 = vector.load %arg13[%c0_194, %c1_195, %c0_196, %c0_197] : memref<2x10x10x32xf32, #tpu.memory_space<vmem>>, vector<2x8x8x32xf32>
    %182 = vector.shape_cast %181 : vector<2x8x8x32xf32> to vector<128x32xf32>
    %c3_198 = arith.constant 3 : index
    %c0_199 = arith.constant 0 : index
    %c0_200 = arith.constant 0 : index
    %183 = vector.load %arg7[%c3_198, %c0_199, %c0_200] : memref<9x32x64xf32, #tpu.memory_space<vmem>>, vector<1x32x64xf32>
    %184 = vector.shape_cast %183 : vector<1x32x64xf32> to vector<32x64xf32>
    %cst_201 = arith.constant dense<0.000000e+00> : vector<128x64xf32>
    %185 = tpu.matmul %182, %184, %cst_201 {dimension_numbers = #tpu.dot_dimension_numbers<[1], [0], [0], [1], [0, 0, 1, 1], [], []>} : vector<128x32xf32>, vector<32x64xf32>, vector<128x64xf32> -> vector<128x64xf32>
    %186 = arith.addf %180, %185 : vector<128x64xf32>
    %c0_202 = arith.constant 0 : index
    %c1_203 = arith.constant 1 : index
    %c1_204 = arith.constant 1 : index
    %c0_205 = arith.constant 0 : index
    %187 = vector.load %arg13[%c0_202, %c1_203, %c1_204, %c0_205] : memref<2x10x10x32xf32, #tpu.memory_space<vmem>>, vector<2x8x8x32xf32>
    %188 = vector.shape_cast %187 : vector<2x8x8x32xf32> to vector<128x32xf32>
    %c4_206 = arith.constant 4 : index
    %c0_207 = arith.constant 0 : index
    %c0_208 = arith.constant 0 : index
    %189 = vector.load %arg7[%c4_206, %c0_207, %c0_208] : memref<9x32x64xf32, #tpu.memory_space<vmem>>, vector<1x32x64xf32>
    %190 = vector.shape_cast %189 : vector<1x32x64xf32> to vector<32x64xf32>
    %cst_209 = arith.constant dense<0.000000e+00> : vector<128x64xf32>
    %191 = tpu.matmul %188, %190, %cst_209 {dimension_numbers = #tpu.dot_dimension_numbers<[1], [0], [0], [1], [0, 0, 1, 1], [], []>} : vector<128x32xf32>, vector<32x64xf32>, vector<128x64xf32> -> vector<128x64xf32>
    %192 = arith.addf %186, %191 : vector<128x64xf32>
    %c0_210 = arith.constant 0 : index
    %c1_211 = arith.constant 1 : index
    %c2_212 = arith.constant 2 : index
    %c0_213 = arith.constant 0 : index
    %193 = vector.load %arg13[%c0_210, %c1_211, %c2_212, %c0_213] : memref<2x10x10x32xf32, #tpu.memory_space<vmem>>, vector<2x8x8x32xf32>
    %194 = vector.shape_cast %193 : vector<2x8x8x32xf32> to vector<128x32xf32>
    %c5_214 = arith.constant 5 : index
    %c0_215 = arith.constant 0 : index
    %c0_216 = arith.constant 0 : index
    %195 = vector.load %arg7[%c5_214, %c0_215, %c0_216] : memref<9x32x64xf32, #tpu.memory_space<vmem>>, vector<1x32x64xf32>
    %196 = vector.shape_cast %195 : vector<1x32x64xf32> to vector<32x64xf32>
    %cst_217 = arith.constant dense<0.000000e+00> : vector<128x64xf32>
    %197 = tpu.matmul %194, %196, %cst_217 {dimension_numbers = #tpu.dot_dimension_numbers<[1], [0], [0], [1], [0, 0, 1, 1], [], []>} : vector<128x32xf32>, vector<32x64xf32>, vector<128x64xf32> -> vector<128x64xf32>
    %198 = arith.addf %192, %197 : vector<128x64xf32>
    %c0_218 = arith.constant 0 : index
    %c2_219 = arith.constant 2 : index
    %c0_220 = arith.constant 0 : index
    %c0_221 = arith.constant 0 : index
    %199 = vector.load %arg13[%c0_218, %c2_219, %c0_220, %c0_221] : memref<2x10x10x32xf32, #tpu.memory_space<vmem>>, vector<2x8x8x32xf32>
    %200 = vector.shape_cast %199 : vector<2x8x8x32xf32> to vector<128x32xf32>
    %c6_222 = arith.constant 6 : index
    %c0_223 = arith.constant 0 : index
    %c0_224 = arith.constant 0 : index
    %201 = vector.load %arg7[%c6_222, %c0_223, %c0_224] : memref<9x32x64xf32, #tpu.memory_space<vmem>>, vector<1x32x64xf32>
    %202 = vector.shape_cast %201 : vector<1x32x64xf32> to vector<32x64xf32>
    %cst_225 = arith.constant dense<0.000000e+00> : vector<128x64xf32>
    %203 = tpu.matmul %200, %202, %cst_225 {dimension_numbers = #tpu.dot_dimension_numbers<[1], [0], [0], [1], [0, 0, 1, 1], [], []>} : vector<128x32xf32>, vector<32x64xf32>, vector<128x64xf32> -> vector<128x64xf32>
    %204 = arith.addf %198, %203 : vector<128x64xf32>
    %c0_226 = arith.constant 0 : index
    %c2_227 = arith.constant 2 : index
    %c1_228 = arith.constant 1 : index
    %c0_229 = arith.constant 0 : index
    %205 = vector.load %arg13[%c0_226, %c2_227, %c1_228, %c0_229] : memref<2x10x10x32xf32, #tpu.memory_space<vmem>>, vector<2x8x8x32xf32>
    %206 = vector.shape_cast %205 : vector<2x8x8x32xf32> to vector<128x32xf32>
    %c7_230 = arith.constant 7 : index
    %c0_231 = arith.constant 0 : index
    %c0_232 = arith.constant 0 : index
    %207 = vector.load %arg7[%c7_230, %c0_231, %c0_232] : memref<9x32x64xf32, #tpu.memory_space<vmem>>, vector<1x32x64xf32>
    %208 = vector.shape_cast %207 : vector<1x32x64xf32> to vector<32x64xf32>
    %cst_233 = arith.constant dense<0.000000e+00> : vector<128x64xf32>
    %209 = tpu.matmul %206, %208, %cst_233 {dimension_numbers = #tpu.dot_dimension_numbers<[1], [0], [0], [1], [0, 0, 1, 1], [], []>} : vector<128x32xf32>, vector<32x64xf32>, vector<128x64xf32> -> vector<128x64xf32>
    %210 = arith.addf %204, %209 : vector<128x64xf32>
    %c0_234 = arith.constant 0 : index
    %c2_235 = arith.constant 2 : index
    %c2_236 = arith.constant 2 : index
    %c0_237 = arith.constant 0 : index
    %211 = vector.load %arg13[%c0_234, %c2_235, %c2_236, %c0_237] : memref<2x10x10x32xf32, #tpu.memory_space<vmem>>, vector<2x8x8x32xf32>
    %212 = vector.shape_cast %211 : vector<2x8x8x32xf32> to vector<128x32xf32>
    %c8_238 = arith.constant 8 : index
    %c0_239 = arith.constant 0 : index
    %c0_240 = arith.constant 0 : index
    %213 = vector.load %arg7[%c8_238, %c0_239, %c0_240] : memref<9x32x64xf32, #tpu.memory_space<vmem>>, vector<1x32x64xf32>
    %214 = vector.shape_cast %213 : vector<1x32x64xf32> to vector<32x64xf32>
    %cst_241 = arith.constant dense<0.000000e+00> : vector<128x64xf32>
    %215 = tpu.matmul %212, %214, %cst_241 {dimension_numbers = #tpu.dot_dimension_numbers<[1], [0], [0], [1], [0, 0, 1, 1], [], []>} : vector<128x32xf32>, vector<32x64xf32>, vector<128x64xf32> -> vector<128x64xf32>
    %216 = arith.addf %210, %215 : vector<128x64xf32>
    %cst_242 = arith.constant dense<0.000000e+00> : vector<64xf32>
    %217 = vector.multi_reduction <add>, %216, %cst_242 [0] : vector<128x64xf32> to vector<64xf32>
    %218 = vector.shape_cast %217 : vector<64xf32> to vector<1x64xf32>
    %219 = arith.mulf %216, %216 : vector<128x64xf32>
    %cst_243 = arith.constant dense<0.000000e+00> : vector<64xf32>
    %220 = vector.multi_reduction <add>, %219, %cst_243 [0] : vector<128x64xf32> to vector<64xf32>
    %221 = vector.shape_cast %220 : vector<64xf32> to vector<1x64xf32>
    %222 = vector.extract_strided_slice %218 {offsets = [0, 0], sizes = [1, 16], strides = [1, 1]} : vector<1x64xf32> to vector<1x16xf32>
    %223 = vector.extract_strided_slice %218 {offsets = [0, 16], sizes = [1, 16], strides = [1, 1]} : vector<1x64xf32> to vector<1x16xf32>
    %224 = arith.addf %222, %223 : vector<1x16xf32>
    %225 = vector.extract_strided_slice %218 {offsets = [0, 32], sizes = [1, 16], strides = [1, 1]} : vector<1x64xf32> to vector<1x16xf32>
    %226 = arith.addf %224, %225 : vector<1x16xf32>
    %227 = vector.extract_strided_slice %218 {offsets = [0, 48], sizes = [1, 16], strides = [1, 1]} : vector<1x64xf32> to vector<1x16xf32>
    %228 = arith.addf %226, %227 : vector<1x16xf32>
    %229 = vector.extract_strided_slice %221 {offsets = [0, 0], sizes = [1, 16], strides = [1, 1]} : vector<1x64xf32> to vector<1x16xf32>
    %230 = vector.extract_strided_slice %221 {offsets = [0, 16], sizes = [1, 16], strides = [1, 1]} : vector<1x64xf32> to vector<1x16xf32>
    %231 = arith.addf %229, %230 : vector<1x16xf32>
    %232 = vector.extract_strided_slice %221 {offsets = [0, 32], sizes = [1, 16], strides = [1, 1]} : vector<1x64xf32> to vector<1x16xf32>
    %233 = arith.addf %231, %232 : vector<1x16xf32>
    %234 = vector.extract_strided_slice %221 {offsets = [0, 48], sizes = [1, 16], strides = [1, 1]} : vector<1x64xf32> to vector<1x16xf32>
    %235 = arith.addf %233, %234 : vector<1x16xf32>
    %cst_244 = arith.constant 5.120000e+02 : f32
    %236 = vector.broadcast %cst_244 : f32 to vector<1x16xf32>
    %237 = arith.divf %228, %236 : vector<1x16xf32>
    %cst_245 = arith.constant 5.120000e+02 : f32
    %238 = vector.broadcast %cst_245 : f32 to vector<1x16xf32>
    %239 = arith.divf %235, %238 : vector<1x16xf32>
    %240 = arith.mulf %237, %237 : vector<1x16xf32>
    %241 = arith.subf %239, %240 : vector<1x16xf32>
    %cst_246 = arith.constant 0.000000e+00 : f32
    %242 = vector.broadcast %cst_246 : f32 to vector<1x16xf32>
    %243 = arith.maximumf %241, %242 : vector<1x16xf32>
    %c0_247 = arith.constant 0 : index
    %c0_248 = arith.constant 0 : index
    %244 = vector.load %arg8[%c0_247, %c0_248] : memref<1x16xf32, #tpu.memory_space<vmem>>, vector<1x16xf32>
    %cst_249 = arith.constant 9.99999974E-6 : f32
    %245 = vector.broadcast %cst_249 : f32 to vector<1x16xf32>
    %246 = arith.addf %243, %245 : vector<1x16xf32>
    %247 = math.rsqrt %246 : vector<1x16xf32>
    %248 = arith.mulf %244, %247 : vector<1x16xf32>
    %c0_250 = arith.constant 0 : index
    %c0_251 = arith.constant 0 : index
    %249 = vector.load %arg9[%c0_250, %c0_251] : memref<1x16xf32, #tpu.memory_space<vmem>>, vector<1x16xf32>
    %250 = arith.mulf %237, %248 : vector<1x16xf32>
    %251 = arith.subf %249, %250 : vector<1x16xf32>
    %252 = tpu.concatenate %248, %248, %248, %248 in 1 : vector<1x16xf32>, vector<1x16xf32>, vector<1x16xf32>, vector<1x16xf32> -> vector<1x64xf32>
    %253 = tpu.concatenate %251, %251, %251, %251 in 1 : vector<1x16xf32>, vector<1x16xf32>, vector<1x16xf32>, vector<1x16xf32> -> vector<1x64xf32>
    %254 = vector.broadcast %252 : vector<1x64xf32> to vector<128x64xf32>
    %255 = arith.mulf %216, %254 : vector<128x64xf32>
    %256 = vector.broadcast %253 : vector<1x64xf32> to vector<128x64xf32>
    %257 = arith.addf %255, %256 : vector<128x64xf32>
    %cst_252 = arith.constant 0.000000e+00 : f32
    %258 = vector.broadcast %cst_252 : f32 to vector<128x64xf32>
    %259 = arith.maximumf %257, %258 : vector<128x64xf32>
    %260 = tpu.transpose %259, [1, 0] : vector<128x64xf32> -> vector<64x128xf32>
    %c0_253 = arith.constant 0 : index
    %c0_254 = arith.constant 0 : index
    %261 = vector.load %arg10[%c0_253, %c0_254] : memref<64x128xf32, #tpu.memory_space<vmem>>, vector<64x128xf32>
    tpu.vector_store %arg10[%c0_253, %c0_254], %260 {strides = array<i32>} : memref<64x128xf32, #tpu.memory_space<vmem>>, vector<64x128xf32>,
    return
  }
}

</mosaic_0001>

<llo_original>
// kernel: decoder_block_forward.1
$region0: #{decoder_block_forward.1}
  #allocation0 [shape = 'u32[]', space=smem, size = 0x4, offset = 0x4, fixed_abs, tag = 'smem constant byte address 0x4 - core index']
  #allocation1 [shape = 'u32[144,128]{1,0:T(1,128)}', space=vmem, size = 0x12000, scoped, tag = 'internal scratch']
  #allocation2 [shape = 'f32[2,10,10,32]{3,2,1,0:T(8,128)}', space=vmem, size = 0x28000, scoped, tag = 'scratch operand']
  #allocation3 [shape = 'f32[2,9,9,8]{3,2,1,0:T(8,128)}', space=vmem, size = 0x24000, scoped, tag = 'scratch operand']
  #allocation4 [shape = 'f32[2,10,10,32]{3,2,1,0:T(8,128)}', space=vmem, size = 0x28000, scoped, tag = 'scratch operand']
  %s0 = inlined_call_operand.hbm [shape: f32[2,8,8,32], index: 0, kind: input, shape index: {}]
  %s1 = inlined_call_operand.vmem [shape: f32[9,32,8], index: 1, kind: input, shape index: {}]
  %s2 = inlined_call_operand.vmem [shape: f32[1,8], index: 2, kind: input, shape index: {}]
  %s3 = inlined_call_operand.vmem [shape: f32[1,8], index: 3, kind: input, shape index: {}]
  %s4 = inlined_call_operand.vmem [shape: f32[32,32], index: 4, kind: input, shape index: {}]
  %s5 = inlined_call_operand.vmem [shape: f32[1,8], index: 5, kind: input, shape index: {}]
  %s6 = inlined_call_operand.vmem [shape: f32[1,8], index: 6, kind: input, shape index: {}]
  %s7 = inlined_call_operand.vmem [shape: f32[9,32,64], index: 7, kind: input, shape index: {}]
  %s8 = inlined_call_operand.vmem [shape: f32[1,16], index: 8, kind: input, shape index: {}]
  %s9 = inlined_call_operand.vmem [shape: f32[1,16], index: 9, kind: input, shape index: {}]
  %s10 = inlined_call_operand.vmem [shape: f32[64,128], index: 10, kind: output, shape index: {}]
  %s11 = sld [smem:[#allocation0]]
  $region54: #{decoder_block_forward.1} parent=0
    _
  %s13 = ssub.s32 1, %s11
  %s14 = scalar_select 0, %s13, %s11
  $region1: #{decoder_block_forward.1} parent=0
    #allocation5 [shape = 'u8[65536]{0}', space=vmem, size = 0x10000, scoped, tag = 'input window, operand 0, single buffered']
    #allocation6 [shape = 's32[1]{0}', space=sflag, size = 0x4, scoped, tag = 'scoped memory for decoder_block_forward.1']
    %15 = vsyncpa [#allocation6], 0
    // Predicated region
    $region2: #{decoder_block_forward.1} parent=1 // pred_check
      _
    $region3: #{decoder_block_forward.1} parent=1 // pred_check_branch
      %17 = sbr.rel (0) target = $region5
    $region4: #{decoder_block_forward.1} parent=1 // pred_region
      %s19 = ssub.s32 2048, 2048
      %20 = vsyncadd [#allocation6], %s19
      %s21 = sshll.u32 [#allocation5], 4
      %s22 = int_to_ptr.vmem [resolvable:$true] %s21
      %27 = dma.hbm_to_vmem [thread:$0]  %s0, 2048, %s22, [#allocation6], 128, 128, 8
    $region5: #{decoder_block_forward.1} parent=1 // pred_fallthru
      _
    // Predicated region
    $region6: #{decoder_block_forward.1} parent=1 // pred_check
      _
    $region7: #{decoder_block_forward.1} parent=1 // pred_check_branch
      %29 = sbr.rel (0) target = $region9
    $region8: #{decoder_block_forward.1} parent=1 // pred_region
      _
    $region9: #{decoder_block_forward.1} parent=1 // pred_fallthru
      _
    // Predicated region
    $region10: #{decoder_block_forward.1} parent=1 // pred_check
      _
    $region11: #{decoder_block_forward.1} parent=1 // pred_check_branch
      %31 = sbr.rel (0) target = $region13
    $region12: #{decoder_block_forward.1} parent=1 // pred_region
      _
    $region13: #{decoder_block_forward.1} parent=1 // pred_fallthru
      _
    // Predicated region
    $region14: #{decoder_block_forward.1} parent=1 // pred_check
      _
    $region15: #{decoder_block_forward.1} parent=1 // pred_check_branch
      %33 = sbr.rel (0) target = $region17
    $region16: #{decoder_block_forward.1} parent=1 // pred_region
      _
    $region17: #{decoder_block_forward.1} parent=1 // pred_fallthru
      _
    // Predicated region
    $region18: #{decoder_block_forward.1} parent=1 // pred_check
      _
    $region19: #{decoder_block_forward.1} parent=1 // pred_check_branch
      %35 = sbr.rel (0) target = $region21
    $region20: #{decoder_block_forward.1} parent=1 // pred_region
      _
    $region21: #{decoder_block_forward.1} parent=1 // pred_fallthru
      _
    // Predicated region
    $region22: #{decoder_block_forward.1} parent=1 // pred_check
      _
    $region23: #{decoder_block_forward.1} parent=1 // pred_check_branch
      %37 = sbr.rel (0) target = $region25
    $region24: #{decoder_block_forward.1} parent=1 // pred_region
      _
    $region25: #{decoder_block_forward.1} parent=1 // pred_fallthru
      _
    // Predicated region
    $region26: #{decoder_block_forward.1} parent=1 // pred_check
      _
    $region27: #{decoder_block_forward.1} parent=1 // pred_check_branch
      %39 = sbr.rel (0) target = $region29
    $region28: #{decoder_block_forward.1} parent=1 // pred_region
      _
    $region29: #{decoder_block_forward.1} parent=1 // pred_fallthru
      _
    // Predicated region
    $region30: #{decoder_block_forward.1} parent=1 // pred_check
      _
    $region31: #{decoder_block_forward.1} parent=1 // pred_check_branch
      %41 = sbr.rel (0) target = $region33
    $region32: #{decoder_block_forward.1} parent=1 // pred_region
      _
    $region33: #{decoder_block_forward.1} parent=1 // pred_fallthru
      _
    // Predicated region
    $region34: #{decoder_block_forward.1} parent=1 // pred_check
      _
    $region35: #{decoder_block_forward.1} parent=1 // pred_check_branch
      %43 = sbr.rel (0) target = $region37
    $region36: #{decoder_block_forward.1} parent=1 // pred_region
      _
    $region37: #{decoder_block_forward.1} parent=1 // pred_fallthru
      _
    // Predicated region
    $region38: #{decoder_block_forward.1} parent=1 // pred_check
      _
    $region39: #{decoder_block_forward.1} parent=1 // pred_check_branch
      %45 = sbr.rel (0) target = $region41
    $region40: #{decoder_block_forward.1} parent=1 // pred_region
      _
    $region41: #{decoder_block_forward.1} parent=1 // pred_fallthru
      _
    // Predicated region
    $region42: #{decoder_block_forward.1} parent=1 // pred_check
      _
    $region43: #{decoder_block_forward.1} parent=1 // pred_check_branch
      %47 = sbr.rel (0) target = $region45
    $region44: #{decoder_block_forward.1} parent=1 // pred_region
      %48 = dma.done [#allocation6], 2048
    $region45: #{decoder_block_forward.1} parent=1 // pred_fallthru
      _
    %vm49 = vcmask 261120
    %50 = vst.msk [vmem:[#allocation2] sm:$0xff] %vm49, 0.0
    %vm51 = vcmask 254976
    %52 = vst.msk [vmem:[#allocation2 + $0x8] sm:$0x3] %vm51, 0.0
    %53 = vst.msk [vmem:[#allocation2 + $0xa0] sm:$0xff] %vm49, 0.0
    %54 = vst.msk [vmem:[#allocation2 + $0xa8] sm:$0x3] %vm51, 0.0
    %s55 = scalar_lea.vmem [#allocation2], 144
    %56 = vst.msk [vmem:[%s55] sm:$0xff] %vm49, 0.0
    %57 = vst.msk [vmem:[%s55 + $0x8] sm:$0x3] %vm51, 0.0
    %58 = vst.msk [vmem:[%s55 + $0xa0] sm:$0xff] %vm49, 0.0
    %59 = vst.msk [vmem:[%s55 + $0xa8] sm:$0x3] %vm51, 0.0
    %s60 = scalar_lea.vmem [#allocation2], 16
    %vm61 = vcmask 253952
    %62 = vst.msk [vmem:[%s60] sm:$0x1] %vm61, 0.0
    %63 = vst.msk [vmem:[%s60 + $0x10] sm:$0x1] %vm61, 0.0
    %64 = vst.msk [vmem:[%s60 + $0x20] sm:$0x1] %vm61, 0.0
    %65 = vst.msk [vmem:[%s60 + $0x30] sm:$0x1] %vm61, 0.0
    %66 = vst.msk [vmem:[%s60 + $0x40] sm:$0x1] %vm61, 0.0
    %67 = vst.msk [vmem:[%s60 + $0x50] sm:$0x1] %vm61, 0.0
    %68 = vst.msk [vmem:[%s60 + $0x60] sm:$0x1] %vm61, 0.0
    %69 = vst.msk [vmem:[%s60 + $0x70] sm:$0x1] %vm61, 0.0
    %70 = vst.msk [vmem:[%s60 + $0xa0] sm:$0x1] %vm61, 0.0
    %71 = vst.msk [vmem:[%s60 + $0xb0] sm:$0x1] %vm61, 0.0
    %72 = vst.msk [vmem:[%s60 + $0xc0] sm:$0x1] %vm61, 0.0
    %73 = vst.msk [vmem:[%s60 + $0xd0] sm:$0x1] %vm61, 0.0
    %74 = vst.msk [vmem:[%s60 + $0xe0] sm:$0x1] %vm61, 0.0
    %75 = vst.msk [vmem:[%s60 + $0xf0] sm:$0x1] %vm61, 0.0
    %76 = vst.msk [vmem:[%s60 + $0x100] sm:$0x1] %vm61, 0.0
    %77 = vst.msk [vmem:[%s60 + $0x110] sm:$0x1] %vm61, 0.0
    %78 = vst.msk [vmem:[%s60 + $0x9] sm:$0x1] %vm61, 0.0
    %79 = vst.msk [vmem:[%s60 + $0x19] sm:$0x1] %vm61, 0.0
    %80 = vst.msk [vmem:[%s60 + $0x29] sm:$0x1] %vm61, 0.0
    %81 = vst.msk [vmem:[%s60 + $0x39] sm:$0x1] %vm61, 0.0
    %82 = vst.msk [vmem:[%s60 + $0x49] sm:$0x1] %vm61, 0.0
    %83 = vst.msk [vmem:[%s60 + $0x59] sm:$0x1] %vm61, 0.0
    %84 = vst.msk [vmem:[%s60 + $0x69] sm:$0x1] %vm61, 0.0
    %85 = vst.msk [vmem:[%s60 + $0x79] sm:$0x1] %vm61, 0.0
    %86 = vst.msk [vmem:[%s60 + $0xa9] sm:$0x1] %vm61, 0.0
    %87 = vst.msk [vmem:[%s60 + $0xb9] sm:$0x1] %vm61, 0.0
    %88 = vst.msk [vmem:[%s60 + $0xc9] sm:$0x1] %vm61, 0.0
    %89 = vst.msk [vmem:[%s60 + $0xd9] sm:$0x1] %vm61, 0.0
    %90 = vst.msk [vmem:[%s60 + $0xe9] sm:$0x1] %vm61, 0.0
    %91 = vst.msk [vmem:[%s60 + $0xf9] sm:$0x1] %vm61, 0.0
    %92 = vst.msk [vmem:[%s60 + $0x109] sm:$0x1] %vm61, 0.0
    %93 = vst.msk [vmem:[%s60 + $0x119] sm:$0x1] %vm61, 0.0
    %v94 = vld [vmem:[#allocation5] sm:$0xff]
    %v95 = vld [vmem:[#allocation5 + $0x8] sm:$0xff]
    %v96 = vld [vmem:[#allocation5 + $0x10] sm:$0xff]
    %v97 = vld [vmem:[#allocation5 + $0x18] sm:$0xff]
    %v98 = vld [vmem:[#allocation5 + $0x20] sm:$0xff]
    %v99 = vld [vmem:[#allocation5 + $0x28] sm:$0xff]
    %v100 = vld [vmem:[#allocation5 + $0x30] sm:$0xff]
    %v101 = vld [vmem:[#allocation5 + $0x38] sm:$0xff]
    %v102 = vld [vmem:[#allocation5 + $0x40] sm:$0xff]
    %v103 = vld [vmem:[#allocation5 + $0x48] sm:$0xff]
    %v104 = vld [vmem:[#allocation5 + $0x50] sm:$0xff]
    %v105 = vld [vmem:[#allocation5 + $0x58] sm:$0xff]
    %v106 = vld [vmem:[#allocation5 + $0x60] sm:$0xff]
    %v107 = vld [vmem:[#allocation5 + $0x68] sm:$0xff]
    %v108 = vld [vmem:[#allocation5 + $0x70] sm:$0xff]
    %v109 = vld [vmem:[#allocation5 + $0x78] sm:$0xff]
    %110 = vst.msk [vmem:[%s60 + $0x1] sm:$0xff] %vm49, %v94
    %111 = vst.msk [vmem:[%s60 + $0x11] sm:$0xff] %vm49, %v95
    %112 = vst.msk [vmem:[%s60 + $0x21] sm:$0xff] %vm49, %v96
    %113 = vst.msk [vmem:[%s60 + $0x31] sm:$0xff] %vm49, %v97
    %114 = vst.msk [vmem:[%s60 + $0x41] sm:$0xff] %vm49, %v98
    %115 = vst.msk [vmem:[%s60 + $0x51] sm:$0xff] %vm49, %v99
    %116 = vst.msk [vmem:[%s60 + $0x61] sm:$0xff] %vm49, %v100
    %117 = vst.msk [vmem:[%s60 + $0x71] sm:$0xff] %vm49, %v101
    %118 = vst.msk [vmem:[%s60 + $0xa1] sm:$0xff] %vm49, %v102
    %119 = vst.msk [vmem:[%s60 + $0xb1] sm:$0xff] %vm49, %v103
    %120 = vst.msk [vmem:[%s60 + $0xc1] sm:$0xff] %vm49, %v104
    %121 = vst.msk [vmem:[%s60 + $0xd1] sm:$0xff] %vm49, %v105
    %122 = vst.msk [vmem:[%s60 + $0xe1] sm:$0xff] %vm49, %v106
    %123 = vst.msk [vmem:[%s60 + $0xf1] sm:$0xff] %vm49, %v107
    %124 = vst.msk [vmem:[%s60 + $0x101] sm:$0xff] %vm49, %v108
    %125 = vst.msk [vmem:[%s60 + $0x111] sm:$0xff] %vm49, %v109
    %v126 = vld [vmem:[#allocation2] sm:$0xff]
    %v127 = vld [vmem:[#allocation2 + $0x10] sm:$0xff]
    %v128 = vld [vmem:[#allocation2 + $0x20] sm:$0xff]
    %v129 = vld [vmem:[#allocation2 + $0x30] sm:$0xff]
    %v130 = vld [vmem:[#allocation2 + $0x40] sm:$0xff]
    %v131 = vld [vmem:[#allocation2 + $0x50] sm:$0xff]
    %v132 = vld [vmem:[#allocation2 + $0x60] sm:$0xff]
    %v133 = vld [vmem:[#allocation2 + $0x70] sm:$0xff]
    %v134 = vld [vmem:[#allocation2 + $0xa0] sm:$0xff]
    %v135 = vld [vmem:[#allocation2 + $0xb0] sm:$0xff]
    %v136 = vld [vmem:[#allocation2 + $0xc0] sm:$0xff]
    %v137 = vld [vmem:[#allocation2 + $0xd0] sm:$0xff]
    %v138 = vld [vmem:[#allocation2 + $0xe0] sm:$0xff]
    %v139 = vld [vmem:[#allocation2 + $0xf0] sm:$0xff]
    %v140 = vld [vmem:[#allocation2 + $0x100] sm:$0xff]
    %v141 = vld [vmem:[#allocation2 + $0x110] sm:$0xff]
    %v142 = vld [vmem:[%s1] sm:$0xff]
    %v143 = vld [vmem:[%s1 + $0x8] sm:$0xff]
    %v144 = vld [vmem:[%s1 + $0x10] sm:$0xff]
    %v145 = vld [vmem:[%s1 + $0x18] sm:$0xff]
    %v146 = vld [vmem:[#allocation2 + $0x1] sm:$0xff]
    %v147 = vld [vmem:[#allocation2 + $0x11] sm:$0xff]
    %v148 = vld [vmem:[#allocation2 + $0x21] sm:$0xff]
    %v149 = vld [vmem:[#allocation2 + $0x31] sm:$0xff]
    %v150 = vld [vmem:[#allocation2 + $0x41] sm:$0xff]
    %v151 = vld [vmem:[#allocation2 + $0x51] sm:$0xff]
    %v152 = vld [vmem:[#allocation2 + $0x61] sm:$0xff]
    %v153 = vld [vmem:[#allocation2 + $0x71] sm:$0xff]
    %v154 = vld [vmem:[#allocation2 + $0xa1] sm:$0xff]
    %v155 = vld [vmem:[#allocation2 + $0xb1] sm:$0xff]
    %v156 = vld [vmem:[#allocation2 + $0xc1] sm:$0xff]
    %v157 = vld [vmem:[#allocation2 + $0xd1] sm:$0xff]
    %v158 = vld [vmem:[#allocation2 + $0xe1] sm:$0xff]
    %v159 = vld [vmem:[#allocation2 + $0xf1] sm:$0xff]
    %v160 = vld [vmem:[#allocation2 + $0x101] sm:$0xff]
    %v161 = vld [vmem:[#allocation2 + $0x111] sm:$0xff]
    %s162 = scalar_lea.vmem %s1, 32
    %v163 = vld [vmem:[%s162] sm:$0xff]
    %v164 = vld [vmem:[%s162 + $0x8] sm:$0xff]
    %v165 = vld [vmem:[%s162 + $0x10] sm:$0xff]
    %v166 = vld [vmem:[%s162 + $0x18] sm:$0xff]
    %v168 = vsel %vm49, %v146, 0
    %v171 = vsel %vm49, %v147, 0
    %v174 = vsel %vm49, %v148, 0
    %v177 = vsel %vm49, %v149, 0
    %v180 = vsel %vm49, %v150, 0
    %v183 = vsel %vm49, %v151, 0
    %v186 = vsel %vm49, %v152, 0
    %v189 = vsel %vm49, %v153, 0
    %v192 = vsel %vm49, %v154, 0
    %v195 = vsel %vm49, %v155, 0
    %v198 = vsel %vm49, %v156, 0
    %v201 = vsel %vm49, %v157, 0
    %v204 = vsel %vm49, %v158, 0
    %v207 = vsel %vm49, %v159, 0
    %v210 = vsel %vm49, %v160, 0
    %v213 = vsel %vm49, %v161, 0
    %215 = vmatprep.subr.mxu0 0.0
    %216 = vmatpush1.msra.mxu0 0.0
    %217 = vmatprep.subr.mxu0 0.0
    %218 = vmatpush1.msra.mxu0 0.0
    %219 = vmatprep.subr.mxu0 0.0
    %220 = vmatpush1.msra.mxu0 0.0
    %221 = vmatprep.subr.mxu0 0.0
    %222 = vmatpush1.msra.mxu0 0.0
    %223 = vmatprep.subr.mxu0 0.0
    %224 = vmatpush1.msra.mxu0 0.0
    %225 = vmatprep.subr.mxu0 0.0
    %226 = vmatpush1.msra.mxu0 0.0
    %227 = vmatprep.subr.mxu0 0.0
    %228 = vmatpush1.msra.mxu0 0.0
    %229 = vmatprep.subr.mxu0 0.0
    %230 = vmatpush1.msra.mxu0 0.0
    %231 = vmatprep.subr.mxu0 0.0
    %232 = vmatpush1.msra.mxu0 0.0
    %233 = vmatprep.subr.mxu0 0.0
    %234 = vmatpush1.msra.mxu0 0.0
    %235 = vmatprep.subr.mxu0 0.0
    %236 = vmatpush1.msra.mxu0 0.0
    %237 = vmatprep.subr.mxu0 0.0
    %238 = vmatpush1.msra.mxu0 0.0
    %239 = vmatprep.subr.mxu0 0.0
    %240 = vmatpush1.msra.mxu0 %v166
    %241 = vmatprep.subr.mxu0 0.0
    %242 = vmatpush1.msra.mxu0 %v165
    %243 = vmatprep.subr.mxu0 0.0
    %244 = vmatpush1.msra.mxu0 %v164
    %245 = vmatprep.subr.mxu0 0.0
    %246 = vmatpush1.msra.mxu0 %v163
    %247 = vmatprep.subr.mxu0 0.0
    %248 = vmatpush2.msra.mxu0 0.0
    %249 = vmatprep.subr.mxu0 0.0
    %250 = vmatpush2.msra.mxu0 0.0
    %251 = vmatprep.subr.mxu0 0.0
    %252 = vmatpush2.msra.mxu0 0.0
    %253 = vmatprep.subr.mxu0 0.0
    %254 = vmatpush2.msra.mxu0 0.0
    %255 = vmatprep.subr.mxu0 0.0
    %256 = vmatpush2.msra.mxu0 0.0
    %257 = vmatprep.subr.mxu0 0.0
    %258 = vmatpush2.msra.mxu0 0.0
    %259 = vmatprep.subr.mxu0 0.0
    %260 = vmatpush2.msra.mxu0 0.0
    %261 = vmatprep.subr.mxu0 0.0
    %262 = vmatpush2.msra.mxu0 0.0
    %263 = vmatprep.subr.mxu0 0.0
    %264 = vmatpush2.msra.mxu0 0.0
    %265 = vmatprep.subr.mxu0 0.0
    %266 = vmatpush2.msra.mxu0 0.0
    %267 = vmatprep.subr.mxu0 0.0
    %268 = vmatpush2.msra.mxu0 0.0
    %269 = vmatprep.subr.mxu0 0.0
    %270 = vmatpush2.msra.mxu0 0.0
    %271 = vmatprep.subr.mxu0 0.0
    %272 = vmatpush2.msra.mxu0 0.0
    %273 = vmatprep.subr.mxu0 0.0
    %274 = vmatpush2.msra.mxu0 0.0
    %275 = vmatprep.subr.mxu0 0.0
    %276 = vmatpush2.msra.mxu0 0.0
    %277 = vmatprep.subr.mxu0 0.0
    %278 = vmatpush2.msra.mxu0 0.0
    %279 = vmatprep.mubr.f32.mxu0 0.0
    %280 = vmatmul.mubr.f32.gmra.mxu0 %v168
    %v281 = vpop.f32.mrf.mxu0
    %v282 = vadd.f32 0.0, %v281
    %v283 = vpop.f32.mrf.mxu0
    %284 = vmatprep.mubr.f32.mxu0 0.0
    %285 = vmatmul.mubr.f32.gmra.mxu0 %v171
    %v286 = vpop.f32.mrf.mxu0
    %v287 = vadd.f32 0.0, %v286
    %v288 = vpop.f32.mrf.mxu0
    %289 = vmatprep.mubr.f32.mxu0 0.0
    %290 = vmatmul.mubr.f32.gmra.mxu0 %v174
    %v291 = vpop.f32.mrf.mxu0
    %v292 = vadd.f32 0.0, %v291
    %v293 = vpop.f32.mrf.mxu0
    %294 = vmatprep.mubr.f32.mxu0 0.0
    %295 = vmatmul.mubr.f32.gmra.mxu0 %v177
    %v296 = vpop.f32.mrf.mxu0
    %v297 = vadd.f32 0.0, %v296
    %v298 = vpop.f32.mrf.mxu0
    %299 = vmatprep.mubr.f32.mxu0 0.0
    %300 = vmatmul.mubr.f32.gmra.mxu0 %v180
    %v301 = vpop.f32.mrf.mxu0
    %v302 = vadd.f32 0.0, %v301
    %v303 = vpop.f32.mrf.mxu0
    %304 = vmatprep.mubr.f32.mxu0 0.0
    %305 = vmatmul.mubr.f32.gmra.mxu0 %v183
    %v306 = vpop.f32.mrf.mxu0
    %v307 = vadd.f32 0.0, %v306
    %v308 = vpop.f32.mrf.mxu0
    %309 = vmatprep.mubr.f32.mxu0 0.0
    %310 = vmatmul.mubr.f32.gmra.mxu0 %v186
    %v311 = vpop.f32.mrf.mxu0
    %v312 = vadd.f32 0.0, %v311
    %v313 = vpop.f32.mrf.mxu0
    %314 = vmatprep.mubr.f32.mxu0 0.0
    %315 = vmatmul.mubr.f32.gmra.mxu0 %v189
    %v316 = vpop.f32.mrf.mxu0
    %v317 = vadd.f32 0.0, %v316
    %v318 = vpop.f32.mrf.mxu0
    %319 = vmatprep.mubr.f32.mxu0 0.0
    %320 = vmatmul.mubr.f32.gmra.mxu0 %v192
    %v321 = vpop.f32.mrf.mxu0
    %v322 = vadd.f32 0.0, %v321
    %v323 = vpop.f32.mrf.mxu0
    %324 = vmatprep.mubr.f32.mxu0 0.0
    %325 = vmatmul.mubr.f32.gmra.mxu0 %v195
    %v326 = vpop.f32.mrf.mxu0
    %v327 = vadd.f32 0.0, %v326
    %v328 = vpop.f32.mrf.mxu0
    %329 = vmatprep.mubr.f32.mxu0 0.0
    %330 = vmatmul.mubr.f32.gmra.mxu0 %v198
    %v331 = vpop.f32.mrf.mxu0
    %v332 = vadd.f32 0.0, %v331
    %v333 = vpop.f32.mrf.mxu0
    %334 = vmatprep.mubr.f32.mxu0 0.0
    %335 = vmatmul.mubr.f32.gmra.mxu0 %v201
    %v336 = vpop.f32.mrf.mxu0
    %v337 = vadd.f32 0.0, %v336
    %v338 = vpop.f32.mrf.mxu0
    %339 = vmatprep.mubr.f32.mxu0 0.0
    %340 = vmatmul.mubr.f32.gmra.mxu0 %v204
    %v341 = vpop.f32.mrf.mxu0
    %v342 = vadd.f32 0.0, %v341
    %v343 = vpop.f32.mrf.mxu0
    %344 = vmatprep.mubr.f32.mxu0 0.0
    %345 = vmatmul.mubr.f32.gmra.mxu0 %v207
    %v346 = vpop.f32.mrf.mxu0
    %v347 = vadd.f32 0.0, %v346
    %v348 = vpop.f32.mrf.mxu0
    %349 = vmatprep.mubr.f32.mxu0 0.0
    %350 = vmatmul.mubr.f32.gmra.mxu0 %v210
    %v351 = vpop.f32.mrf.mxu0
    %v352 = vadd.f32 0.0, %v351
    %v353 = vpop.f32.mrf.mxu0
    %354 = vmatprep.mubr.f32.mxu0 0.0
    %355 = vmatmul.mubr.f32.gmra.mxu0 %v213
    %v356 = vpop.f32.mrf.mxu0
    %v357 = vadd.f32 0.0, %v356
    %v358 = vpop.f32.mrf.mxu0
    %359 = vdwg.mxu0
    %v361 = vsel %vm49, %v126, 0
    %v364 = vsel %vm49, %v127, 0
    %v367 = vsel %vm49, %v128, 0
    %v370 = vsel %vm49, %v129, 0
    %v373 = vsel %vm49, %v130, 0
    %v376 = vsel %vm49, %v131, 0
    %v379 = vsel %vm49, %v132, 0
    %v382 = vsel %vm49, %v133, 0
    %v385 = vsel %vm49, %v134, 0
    %v388 = vsel %vm49, %v135, 0
    %v391 = vsel %vm49, %v136, 0
    %v394 = vsel %vm49, %v137, 0
    %v397 = vsel %vm49, %v138, 0
    %v400 = vsel %vm49, %v139, 0
    %v403 = vsel %vm49, %v140, 0
    %v406 = vsel %vm49, %v141, 0
    %408 = vmatprep.subr.mxu0 0.0
    %409 = vmatpush1.msra.mxu0 0.0
    %410 = vmatprep.subr.mxu0 0.0
    %411 = vmatpush1.msra.mxu0 0.0
    %412 = vmatprep.subr.mxu0 0.0
    %413 = vmatpush1.msra.mxu0 0.0
    %414 = vmatprep.subr.mxu0 0.0
    %415 = vmatpush1.msra.mxu0 0.0
    %416 = vmatprep.subr.mxu0 0.0
    %417 = vmatpush1.msra.mxu0 0.0
    %418 = vmatprep.subr.mxu0 0.0
    %419 = vmatpush1.msra.mxu0 0.0
    %420 = vmatprep.subr.mxu0 0.0
    %421 = vmatpush1.msra.mxu0 0.0
    %422 = vmatprep.subr.mxu0 0.0
    %423 = vmatpush1.msra.mxu0 0.0
    %424 = vmatprep.subr.mxu0 0.0
    %425 = vmatpush1.msra.mxu0 0.0
    %426 = vmatprep.subr.mxu0 0.0
    %427 = vmatpush1.msra.mxu0 0.0
    %428 = vmatprep.subr.mxu0 0.0
    %429 = vmatpush1.msra.mxu0 0.0
    %430 = vmatprep.subr.mxu0 0.0
    %431 = vmatpush1.msra.mxu0 0.0
    %432 = vmatprep.subr.mxu0 0.0
    %433 = vmatpush1.msra.mxu0 %v145
    %434 = vmatprep.subr.mxu0 0.0
    %435 = vmatpush1.msra.mxu0 %v144
    %436 = vmatprep.subr.mxu0 0.0
    %437 = vmatpush1.msra.mxu0 %v143
    %438 = vmatprep.subr.mxu0 0.0
    %439 = vmatpush1.msra.mxu0 %v142
    %440 = vmatprep.subr.mxu0 0.0
    %441 = vmatpush2.msra.mxu0 0.0
    %442 = vmatprep.subr.mxu0 0.0
    %443 = vmatpush2.msra.mxu0 0.0
    %444 = vmatprep.subr.mxu0 0.0
    %445 = vmatpush2.msra.mxu0 0.0
    %446 = vmatprep.subr.mxu0 0.0
    %447 = vmatpush2.msra.mxu0 0.0
    %448 = vmatprep.subr.mxu0 0.0
    %449 = vmatpush2.msra.mxu0 0.0
    %450 = vmatprep.subr.mxu0 0.0
    %451 = vmatpush2.msra.mxu0 0.0
    %452 = vmatprep.subr.mxu0 0.0
    %453 = vmatpush2.msra.mxu0 0.0
    %454 = vmatprep.subr.mxu0 0.0
    %455 = vmatpush2.msra.mxu0 0.0
    %456 = vmatprep.subr.mxu0 0.0
    %457 = vmatpush2.msra.mxu0 0.0
    %458 = vmatprep.subr.mxu0 0.0
    %459 = vmatpush2.msra.mxu0 0.0
    %460 = vmatprep.subr.mxu0 0.0
    %461 = vmatpush2.msra.mxu0 0.0
    %462 = vmatprep.subr.mxu0 0.0
    %463 = vmatpush2.msra.mxu0 0.0
    %464 = vmatprep.subr.mxu0 0.0
    %465 = vmatpush2.msra.mxu0 0.0
    %466 = vmatprep.subr.mxu0 0.0
    %467 = vmatpush2.msra.mxu0 0.0
    %468 = vmatprep.subr.mxu0 0.0
    %469 = vmatpush2.msra.mxu0 0.0
    %470 = vmatprep.subr.mxu0 0.0
    %471 = vmatpush2.msra.mxu0 0.0
    %472 = vmatprep.mubr.f32.mxu0 0.0
    %473 = vmatmul.mubr.f32.gmra.mxu0 %v361
    %v474 = vpop.f32.mrf.mxu0
    %v475 = vadd.f32 %v282, %v474
    %v476 = vpop.f32.mrf.mxu0
    %477 = vmatprep.mubr.f32.mxu0 0.0
    %478 = vmatmul.mubr.f32.gmra.mxu0 %v364
    %v479 = vpop.f32.mrf.mxu0
    %v480 = vadd.f32 %v287, %v479
    %v481 = vpop.f32.mrf.mxu0
    %482 = vmatprep.mubr.f32.mxu0 0.0
    %483 = vmatmul.mubr.f32.gmra.mxu0 %v367
    %v484 = vpop.f32.mrf.mxu0
    %v485 = vadd.f32 %v292, %v484
    %v486 = vpop.f32.mrf.mxu0
    %487 = vmatprep.mubr.f32.mxu0 0.0
    %488 = vmatmul.mubr.f32.gmra.mxu0 %v370
    %v489 = vpop.f32.mrf.mxu0
    %v490 = vadd.f32 %v297, %v489
    %v491 = vpop.f32.mrf.mxu0
    %492 = vmatprep.mubr.f32.mxu0 0.0
    %493 = vmatmul.mubr.f32.gmra.mxu0 %v373
    %v494 = vpop.f32.mrf.mxu0
    %v495 = vadd.f32 %v302, %v494
    %v496 = vpop.f32.mrf.mxu0
    %497 = vmatprep.mubr.f32.mxu0 0.0
    %498 = vmatmul.mubr.f32.gmra.mxu0 %v376
    %v499 = vpop.f32.mrf.mxu0
    %v500 = vadd.f32 %v307, %v499
    %v501 = vpop.f32.mrf.mxu0
    %502 = vmatprep.mubr.f32.mxu0 0.0
    %503 = vmatmul.mubr.f32.gmra.mxu0 %v379
    %v504 = vpop.f32.mrf.mxu0
    %v505 = vadd.f32 %v312, %v504
    %v506 = vpop.f32.mrf.mxu0
    %507 = vmatprep.mubr.f32.mxu0 0.0
    %508 = vmatmul.mubr.f32.gmra.mxu0 %v382
    %v509 = vpop.f32.mrf.mxu0
    %v510 = vadd.f32 %v317, %v509
    %v511 = vpop.f32.mrf.mxu0
    %512 = vmatprep.mubr.f32.mxu0 0.0
    %513 = vmatmul.mubr.f32.gmra.mxu0 %v385
    %v514 = vpop.f32.mrf.mxu0
    %v515 = vadd.f32 %v322, %v514
    %v516 = vpop.f32.mrf.mxu0
    %517 = vmatprep.mubr.f32.mxu0 0.0
    %518 = vmatmul.mubr.f32.gmra.mxu0 %v388
    %v519 = vpop.f32.mrf.mxu0
    %v520 = vadd.f32 %v327, %v519
    %v521 = vpop.f32.mrf.mxu0
    %522 = vmatprep.mubr.f32.mxu0 0.0
    %523 = vmatmul.mubr.f32.gmra.mxu0 %v391
    %v524 = vpop.f32.mrf.mxu0
    %v525 = vadd.f32 %v332, %v524
    %v526 = vpop.f32.mrf.mxu0
    %527 = vmatprep.mubr.f32.mxu0 0.0
    %528 = vmatmul.mubr.f32.gmra.mxu0 %v394
    %v529 = vpop.f32.mrf.mxu0
    %v530 = vadd.f32 %v337, %v529
    %v531 = vpop.f32.mrf.mxu0
    %532 = vmatprep.mubr.f32.mxu0 0.0
    %533 = vmatmul.mubr.f32.gmra.mxu0 %v397
    %v534 = vpop.f32.mrf.mxu0
    %v535 = vadd.f32 %v342, %v534
    %v536 = vpop.f32.mrf.mxu0
    %537 = vmatprep.mubr.f32.mxu0 0.0
    %538 = vmatmul.mubr.f32.gmra.mxu0 %v400
    %v539 = vpop.f32.mrf.mxu0
    %v540 = vadd.f32 %v347, %v539
    %v541 = vpop.f32.mrf.mxu0
    %542 = vmatprep.mubr.f32.mxu0 0.0
    %543 = vmatmul.mubr.f32.gmra.mxu0 %v403
    %v544 = vpop.f32.mrf.mxu0
    %v545 = vadd.f32 %v352, %v544
    %v546 = vpop.f32.mrf.mxu0
    %547 = vmatprep.mubr.f32.mxu0 0.0
    %548 = vmatmul.mubr.f32.gmra.mxu0 %v406
    %v549 = vpop.f32.mrf.mxu0
    %v550 = vadd.f32 %v357, %v549
    %v551 = vpop.f32.mrf.mxu0
    %552 = vdwg.mxu0
    %v553 = vld [vmem:[#allocation2 + $0x2] sm:$0xff]
    %v554 = vld [vmem:[#allocation2 + $0x12] sm:$0xff]
    %v555 = vld [vmem:[#allocation2 + $0x22] sm:$0xff]
    %v556 = vld [vmem:[#allocation2 + $0x32] sm:$0xff]
    %v557 = vld [vmem:[#allocation2 + $0x42] sm:$0xff]
    %v558 = vld [vmem:[#allocation2 + $0x52] sm:$0xff]
    %v559 = vld [vmem:[#allocation2 + $0x62] sm:$0xff]
    %v560 = vld [vmem:[#allocation2 + $0x72] sm:$0xff]
    %v561 = vld [vmem:[#allocation2 + $0xa2] sm:$0xff]
    %v562 = vld [vmem:[#allocation2 + $0xb2] sm:$0xff]
    %v563 = vld [vmem:[#allocation2 + $0xc2] sm:$0xff]
    %v564 = vld [vmem:[#allocation2 + $0xd2] sm:$0xff]
    %v565 = vld [vmem:[#allocation2 + $0xe2] sm:$0xff]
    %v566 = vld [vmem:[#allocation2 + $0xf2] sm:$0xff]
    %v567 = vld [vmem:[#allocation2 + $0x102] sm:$0xff]
    %v568 = vld [vmem:[#allocation2 + $0x112] sm:$0xff]
    %s569 = scalar_lea.vmem %s1, 64
    %v570 = vld [vmem:[%s569] sm:$0xff]
    %v571 = vld [vmem:[%s569 + $0x8] sm:$0xff]
    %v572 = vld [vmem:[%s569 + $0x10] sm:$0xff]
    %v573 = vld [vmem:[%s569 + $0x18] sm:$0xff]
    %v575 = vsel %vm49, %v553, 0
    %v578 = vsel %vm49, %v554, 0
    %v581 = vsel %vm49, %v555, 0
    %v584 = vsel %vm49, %v556, 0
    %v587 = vsel %vm49, %v557, 0
    %v590 = vsel %vm49, %v558, 0
    %v593 = vsel %vm49, %v559, 0
    %v596 = vsel %vm49, %v560, 0
    %v599 = vsel %vm49, %v561, 0
    %v602 = vsel %vm49, %v562, 0
    %v605 = vsel %vm49, %v563, 0
    %v608 = vsel %vm49, %v564, 0
    %v611 = vsel %vm49, %v565, 0
    %v614 = vsel %vm49, %v566, 0
    %v617 = vsel %vm49, %v567, 0
    %v620 = vsel %vm49, %v568, 0
    %622 = vmatprep.subr.mxu0 0.0
    %623 = vmatpush1.msra.mxu0 0.0
    %624 = vmatprep.subr.mxu0 0.0
    %625 = vmatpush1.msra.mxu0 0.0
    %626 = vmatprep.subr.mxu0 0.0
    %627 = vmatpush1.msra.mxu0 0.0
    %628 = vmatprep.subr.mxu0 0.0
    %629 = vmatpush1.msra.mxu0 0.0
    %630 = vmatprep.subr.mxu0 0.0
    %631 = vmatpush1.msra.mxu0 0.0
    %632 = vmatprep.subr.mxu0 0.0
    %633 = vmatpush1.msra.mxu0 0.0
    %634 = vmatprep.subr.mxu0 0.0
    %635 = vmatpush1.msra.mxu0 0.0
    %636 = vmatprep.subr.mxu0 0.0
    %637 = vmatpush1.msra.mxu0 0.0
    %638 = vmatprep.subr.mxu0 0.0
    %639 = vmatpush1.msra.mxu0 0.0
    %640 = vmatprep.subr.mxu0 0.0
    %641 = vmatpush1.msra.mxu0 0.0
    %642 = vmatprep.subr.mxu0 0.0
    %643 = vmatpush1.msra.mxu0 0.0
    %644 = vmatprep.subr.mxu0 0.0
    %645 = vmatpush1.msra.mxu0 0.0
    %646 = vmatprep.subr.mxu0 0.0
    %647 = vmatpush1.msra.mxu0 %v573
    %648 = vmatprep.subr.mxu0 0.0
    %649 = vmatpush1.msra.mxu0 %v572
    %650 = vmatprep.subr.mxu0 0.0
    %651 = vmatpush1.msra.mxu0 %v571
    %652 = vmatprep.subr.mxu0 0.0
    %653 = vmatpush1.msra.mxu0 %v570
    %654 = vmatprep.subr.mxu0 0.0
    %655 = vmatpush2.msra.mxu0 0.0
    %656 = vmatprep.subr.mxu0 0.0
    %657 = vmatpush2.msra.mxu0 0.0
    %658 = vmatprep.subr.mxu0 0.0
    %659 = vmatpush2.msra.mxu0 0.0
    %660 = vmatprep.subr.mxu0 0.0
    %661 = vmatpush2.msra.mxu0 0.0
    %662 = vmatprep.subr.mxu0 0.0
    %663 = vmatpush2.msra.mxu0 0.0
    %664 = vmatprep.subr.mxu0 0.0
    %665 = vmatpush2.msra.mxu0 0.0
    %666 = vmatprep.subr.mxu0 0.0
    %667 = vmatpush2.msra.mxu0 0.0
    %668 = vmatprep.subr.mxu0 0.0
    %669 = vmatpush2.msra.mxu0 0.0
    %670 = vmatprep.subr.mxu0 0.0
    %671 = vmatpush2.msra.mxu0 0.0
    %672 = vmatprep.subr.mxu0 0.0
    %673 = vmatpush2.msra.mxu0 0.0
    %674 = vmatprep.subr.mxu0 0.0
    %675 = vmatpush2.msra.mxu0 0.0
    %676 = vmatprep.subr.mxu0 0.0
    %677 = vmatpush2.msra.mxu0 0.0
    %678 = vmatprep.subr.mxu0 0.0
    %679 = vmatpush2.msra.mxu0 0.0
    %680 = vmatprep.subr.mxu0 0.0
    %681 = vmatpush2.msra.mxu0 0.0
    %682 = vmatprep.subr.mxu0 0.0
    %683 = vmatpush2.msra.mxu0 0.0
    %684 = vmatprep.subr.mxu0 0.0
    %685 = vmatpush2.msra.mxu0 0.0
    %686 = vmatprep.mubr.f32.mxu0 0.0
    %687 = vmatmul.mubr.f32.gmra.mxu0 %v575
    %v688 = vpop.f32.mrf.mxu0
    %v689 = vadd.f32 0.0, %v688
    %v690 = vpop.f32.mrf.mxu0
    %691 = vmatprep.mubr.f32.mxu0 0.0
    %692 = vmatmul.mubr.f32.gmra.mxu0 %v578
    %v693 = vpop.f32.mrf.mxu0
    %v694 = vadd.f32 0.0, %v693
    %v695 = vpop.f32.mrf.mxu0
    %696 = vmatprep.mubr.f32.mxu0 0.0
    %697 = vmatmul.mubr.f32.gmra.mxu0 %v581
    %v698 = vpop.f32.mrf.mxu0
    %v699 = vadd.f32 0.0, %v698
    %v700 = vpop.f32.mrf.mxu0
    %701 = vmatprep.mubr.f32.mxu0 0.0
    %702 = vmatmul.mubr.f32.gmra.mxu0 %v584
    %v703 = vpop.f32.mrf.mxu0
    %v704 = vadd.f32 0.0, %v703
    %v705 = vpop.f32.mrf.mxu0
    %706 = vmatprep.mubr.f32.mxu0 0.0
    %707 = vmatmul.mubr.f32.gmra.mxu0 %v587
    %v708 = vpop.f32.mrf.mxu0
    %v709 = vadd.f32 0.0, %v708
    %v710 = vpop.f32.mrf.mxu0
    %711 = vmatprep.mubr.f32.mxu0 0.0
    %712 = vmatmul.mubr.f32.gmra.mxu0 %v590
    %v713 = vpop.f32.mrf.mxu0
    %v714 = vadd.f32 0.0, %v713
    %v715 = vpop.f32.mrf.mxu0
    %716 = vmatprep.mubr.f32.mxu0 0.0
    %717 = vmatmul.mubr.f32.gmra.mxu0 %v593
    %v718 = vpop.f32.mrf.mxu0
    %v719 = vadd.f32 0.0, %v718
    %v720 = vpop.f32.mrf.mxu0
    %721 = vmatprep.mubr.f32.mxu0 0.0
    %722 = vmatmul.mubr.f32.gmra.mxu0 %v596
    %v723 = vpop.f32.mrf.mxu0
    %v724 = vadd.f32 0.0, %v723
    %v725 = vpop.f32.mrf.mxu0
    %726 = vmatprep.mubr.f32.mxu0 0.0
    %727 = vmatmul.mubr.f32.gmra.mxu0 %v599
    %v728 = vpop.f32.mrf.mxu0
    %v729 = vadd.f32 0.0, %v728
    %v730 = vpop.f32.mrf.mxu0
    %731 = vmatprep.mubr.f32.mxu0 0.0
    %732 = vmatmul.mubr.f32.gmra.mxu0 %v602
    %v733 = vpop.f32.mrf.mxu0
    %v734 = vadd.f32 0.0, %v733
    %v735 = vpop.f32.mrf.mxu0
    %736 = vmatprep.mubr.f32.mxu0 0.0
    %737 = vmatmul.mubr.f32.gmra.mxu0 %v605
    %v738 = vpop.f32.mrf.mxu0
    %v739 = vadd.f32 0.0, %v738
    %v740 = vpop.f32.mrf.mxu0
    %741 = vmatprep.mubr.f32.mxu0 0.0
    %742 = vmatmul.mubr.f32.gmra.mxu0 %v608
    %v743 = vpop.f32.mrf.mxu0
    %v744 = vadd.f32 0.0, %v743
    %v745 = vpop.f32.mrf.mxu0
    %746 = vmatprep.mubr.f32.mxu0 0.0
    %747 = vmatmul.mubr.f32.gmra.mxu0 %v611
    %v748 = vpop.f32.mrf.mxu0
    %v749 = vadd.f32 0.0, %v748
    %v750 = vpop.f32.mrf.mxu0
    %751 = vmatprep.mubr.f32.mxu0 0.0
    %752 = vmatmul.mubr.f32.gmra.mxu0 %v614
    %v753 = vpop.f32.mrf.mxu0
    %v754 = vadd.f32 0.0, %v753
    %v755 = vpop.f32.mrf.mxu0
    %756 = vmatprep.mubr.f32.mxu0 0.0
    %757 = vmatmul.mubr.f32.gmra.mxu0 %v617
    %v758 = vpop.f32.mrf.mxu0
    %v759 = vadd.f32 0.0, %v758
    %v760 = vpop.f32.mrf.mxu0
    %761 = vmatprep.mubr.f32.mxu0 0.0
    %762 = vmatmul.mubr.f32.gmra.mxu0 %v620
    %v763 = vpop.f32.mrf.mxu0
    %v764 = vadd.f32 0.0, %v763
    %v765 = vpop.f32.mrf.mxu0
    %766 = vdwg.mxu0
    %v767 = vadd.f32 %v475, %v689
    %v768 = vadd.f32 %v480, %v694
    %v769 = vadd.f32 %v485, %v699
    %v770 = vadd.f32 %v490, %v704
    %v771 = vadd.f32 %v495, %v709
    %v772 = vadd.f32 %v500, %v714
    %v773 = vadd.f32 %v505, %v719
    %v774 = vadd.f32 %v510, %v724
    %v775 = vadd.f32 %v515, %v729
    %v776 = vadd.f32 %v520, %v734
    %v777 = vadd.f32 %v525, %v739
    %v778 = vadd.f32 %v530, %v744
    %v779 = vadd.f32 %v535, %v749
    %v780 = vadd.f32 %v540, %v754
    %v781 = vadd.f32 %v545, %v759
    %v782 = vadd.f32 %v550, %v764
    %v783 = vld [vmem:[%s60] sm:$0xff]
    %v784 = vld [vmem:[%s60 + $0x10] sm:$0xff]
    %v785 = vld [vmem:[%s60 + $0x20] sm:$0xff]
    %v786 = vld [vmem:[%s60 + $0x30] sm:$0xff]
    %v787 = vld [vmem:[%s60 + $0x40] sm:$0xff]
    %v788 = vld [vmem:[%s60 + $0x50] sm:$0xff]
    %v789 = vld [vmem:[%s60 + $0x60] sm:$0xff]
    %v790 = vld [vmem:[%s60 + $0x70] sm:$0xff]
    %v791 = vld [vmem:[%s60 + $0xa0] sm:$0xff]
    %v792 = vld [vmem:[%s60 + $0xb0] sm:$0xff]
    %v793 = vld [vmem:[%s60 + $0xc0] sm:$0xff]
    %v794 = vld [vmem:[%s60 + $0xd0] sm:$0xff]
    %v795 = vld [vmem:[%s60 + $0xe0] sm:$0xff]
    %v796 = vld [vmem:[%s60 + $0xf0] sm:$0xff]
    %v797 = vld [vmem:[%s60 + $0x100] sm:$0xff]
    %v798 = vld [vmem:[%s60 + $0x110] sm:$0xff]
    %s799 = scalar_lea.vmem %s1, 96
    %v800 = vld [vmem:[%s799] sm:$0xff]
    %v801 = vld [vmem:[%s799 + $0x8] sm:$0xff]
    %v802 = vld [vmem:[%s799 + $0x10] sm:$0xff]
    %v803 = vld [vmem:[%s799 + $0x18] sm:$0xff]
    %v805 = vsel %vm49, %v783, 0
    %v808 = vsel %vm49, %v784, 0
    %v811 = vsel %vm49, %v785, 0
    %v814 = vsel %vm49, %v786, 0
    %v817 = vsel %vm49, %v787, 0
    %v820 = vsel %vm49, %v788, 0
    %v823 = vsel %vm49, %v789, 0
    %v826 = vsel %vm49, %v790, 0
    %v829 = vsel %vm49, %v791, 0
    %v832 = vsel %vm49, %v792, 0
    %v835 = vsel %vm49, %v793, 0
    %v838 = vsel %vm49, %v794, 0
    %v841 = vsel %vm49, %v795, 0
    %v844 = vsel %vm49, %v796, 0
    %v847 = vsel %vm49, %v797, 0
    %v850 = vsel %vm49, %v798, 0
    %852 = vmatprep.subr.mxu0 0.0
    %853 = vmatpush1.msra.mxu0 0.0
    %854 = vmatprep.subr.mxu0 0.0
    %855 = vmatpush1.msra.mxu0 0.0
    %856 = vmatprep.subr.mxu0 0.0
    %857 = vmatpush1.msra.mxu0 0.0
    %858 = vmatprep.subr.mxu0 0.0
    %859 = vmatpush1.msra.mxu0 0.0
    %860 = vmatprep.subr.mxu0 0.0
    %861 = vmatpush1.msra.mxu0 0.0
    %862 = vmatprep.subr.mxu0 0.0
    %863 = vmatpush1.msra.mxu0 0.0
    %864 = vmatprep.subr.mxu0 0.0
    %865 = vmatpush1.msra.mxu0 0.0
    %866 = vmatprep.subr.mxu0 0.0
    %867 = vmatpush1.msra.mxu0 0.0
    %868 = vmatprep.subr.mxu0 0.0
    %869 = vmatpush1.msra.mxu0 0.0
    %870 = vmatprep.subr.mxu0 0.0
    %871 = vmatpush1.msra.mxu0 0.0
    %872 = vmatprep.subr.mxu0 0.0
    %873 = vmatpush1.msra.mxu0 0.0
    %874 = vmatprep.subr.mxu0 0.0
    %875 = vmatpush1.msra.mxu0 0.0
    %876 = vmatprep.subr.mxu0 0.0
    %877 = vmatpush1.msra.mxu0 %v803
    %878 = vmatprep.subr.mxu0 0.0
    %879 = vmatpush1.msra.mxu0 %v802
    %880 = vmatprep.subr.mxu0 0.0
    %881 = vmatpush1.msra.mxu0 %v801
    %882 = vmatprep.subr.mxu0 0.0
    %883 = vmatpush1.msra.mxu0 %v800
    %884 = vmatprep.subr.mxu0 0.0
    %885 = vmatpush2.msra.mxu0 0.0
    %886 = vmatprep.subr.mxu0 0.0
    %887 = vmatpush2.msra.mxu0 0.0
    %888 = vmatprep.subr.mxu0 0.0
    %889 = vmatpush2.msra.mxu0 0.0
    %890 = vmatprep.subr.mxu0 0.0
    %891 = vmatpush2.msra.mxu0 0.0
    %892 = vmatprep.subr.mxu0 0.0
    %893 = vmatpush2.msra.mxu0 0.0
    %894 = vmatprep.subr.mxu0 0.0
    %895 = vmatpush2.msra.mxu0 0.0
    %896 = vmatprep.subr.mxu0 0.0
    %897 = vmatpush2.msra.mxu0 0.0
    %898 = vmatprep.subr.mxu0 0.0
    %899 = vmatpush2.msra.mxu0 0.0
    %900 = vmatprep.subr.mxu0 0.0
    %901 = vmatpush2.msra.mxu0 0.0
    %902 = vmatprep.subr.mxu0 0.0
    %903 = vmatpush2.msra.mxu0 0.0
    %904 = vmatprep.subr.mxu0 0.0
    %905 = vmatpush2.msra.mxu0 0.0
    %906 = vmatprep.subr.mxu0 0.0
    %907 = vmatpush2.msra.mxu0 0.0
    %908 = vmatprep.subr.mxu0 0.0
    %909 = vmatpush2.msra.mxu0 0.0
    %910 = vmatprep.subr.mxu0 0.0
    %911 = vmatpush2.msra.mxu0 0.0
    %912 = vmatprep.subr.mxu0 0.0
    %913 = vmatpush2.msra.mxu0 0.0
    %914 = vmatprep.subr.mxu0 0.0
    %915 = vmatpush2.msra.mxu0 0.0
    %916 = vmatprep.mubr.f32.mxu0 0.0
    %917 = vmatmul.mubr.f32.gmra.mxu0 %v805
    %v918 = vpop.f32.mrf.mxu0
    %v919 = vadd.f32 0.0, %v918
    %v920 = vpop.f32.mrf.mxu0
    %921 = vmatprep.mubr.f32.mxu0 0.0
    %922 = vmatmul.mubr.f32.gmra.mxu0 %v808
    %v923 = vpop.f32.mrf.mxu0
    %v924 = vadd.f32 0.0, %v923
    %v925 = vpop.f32.mrf.mxu0
    %926 = vmatprep.mubr.f32.mxu0 0.0
    %927 = vmatmul.mubr.f32.gmra.mxu0 %v811
    %v928 = vpop.f32.mrf.mxu0
    %v929 = vadd.f32 0.0, %v928
    %v930 = vpop.f32.mrf.mxu0
    %931 = vmatprep.mubr.f32.mxu0 0.0
    %932 = vmatmul.mubr.f32.gmra.mxu0 %v814
    %v933 = vpop.f32.mrf.mxu0
    %v934 = vadd.f32 0.0, %v933
    %v935 = vpop.f32.mrf.mxu0
    %936 = vmatprep.mubr.f32.mxu0 0.0
    %937 = vmatmul.mubr.f32.gmra.mxu0 %v817
    %v938 = vpop.f32.mrf.mxu0
    %v939 = vadd.f32 0.0, %v938
    %v940 = vpop.f32.mrf.mxu0
    %941 = vmatprep.mubr.f32.mxu0 0.0
    %942 = vmatmul.mubr.f32.gmra.mxu0 %v820
    %v943 = vpop.f32.mrf.mxu0
    %v944 = vadd.f32 0.0, %v943
    %v945 = vpop.f32.mrf.mxu0
    %946 = vmatprep.mubr.f32.mxu0 0.0
    %947 = vmatmul.mubr.f32.gmra.mxu0 %v823
    %v948 = vpop.f32.mrf.mxu0
    %v949 = vadd.f32 0.0, %v948
    %v950 = vpop.f32.mrf.mxu0
    %951 = vmatprep.mubr.f32.mxu0 0.0
    %952 = vmatmul.mubr.f32.gmra.mxu0 %v826
    %v953 = vpop.f32.mrf.mxu0
    %v954 = vadd.f32 0.0, %v953
    %v955 = vpop.f32.mrf.mxu0
    %956 = vmatprep.mubr.f32.mxu0 0.0
    %957 = vmatmul.mubr.f32.gmra.mxu0 %v829
    %v958 = vpop.f32.mrf.mxu0
    %v959 = vadd.f32 0.0, %v958
    %v960 = vpop.f32.mrf.mxu0
    %961 = vmatprep.mubr.f32.mxu0 0.0
    %962 = vmatmul.mubr.f32.gmra.mxu0 %v832
    %v963 = vpop.f32.mrf.mxu0
    %v964 = vadd.f32 0.0, %v963
    %v965 = vpop.f32.mrf.mxu0
    %966 = vmatprep.mubr.f32.mxu0 0.0
    %967 = vmatmul.mubr.f32.gmra.mxu0 %v835
    %v968 = vpop.f32.mrf.mxu0
    %v969 = vadd.f32 0.0, %v968
    %v970 = vpop.f32.mrf.mxu0
    %971 = vmatprep.mubr.f32.mxu0 0.0
    %972 = vmatmul.mubr.f32.gmra.mxu0 %v838
    %v973 = vpop.f32.mrf.mxu0
    %v974 = vadd.f32 0.0, %v973
    %v975 = vpop.f32.mrf.mxu0
    %976 = vmatprep.mubr.f32.mxu0 0.0
    %977 = vmatmul.mubr.f32.gmra.mxu0 %v841
    %v978 = vpop.f32.mrf.mxu0
    %v979 = vadd.f32 0.0, %v978
    %v980 = vpop.f32.mrf.mxu0
    %981 = vmatprep.mubr.f32.mxu0 0.0
    %982 = vmatmul.mubr.f32.gmra.mxu0 %v844
    %v983 = vpop.f32.mrf.mxu0
    %v984 = vadd.f32 0.0, %v983
    %v985 = vpop.f32.mrf.mxu0
    %986 = vmatprep.mubr.f32.mxu0 0.0
    %987 = vmatmul.mubr.f32.gmra.mxu0 %v847
    %v988 = vpop.f32.mrf.mxu0
    %v989 = vadd.f32 0.0, %v988
    %v990 = vpop.f32.mrf.mxu0
    %991 = vmatprep.mubr.f32.mxu0 0.0
    %992 = vmatmul.mubr.f32.gmra.mxu0 %v850
    %v993 = vpop.f32.mrf.mxu0
    %v994 = vadd.f32 0.0, %v993
    %v995 = vpop.f32.mrf.mxu0
    %996 = vdwg.mxu0
    %v997 = vadd.f32 %v767, %v919
    %v998 = vadd.f32 %v768, %v924
    %v999 = vadd.f32 %v769, %v929
    %v1000 = vadd.f32 %v770, %v934
    %v1001 = vadd.f32 %v771, %v939
    %v1002 = vadd.f32 %v772, %v944
    %v1003 = vadd.f32 %v773, %v949
    %v1004 = vadd.f32 %v774, %v954
    %v1005 = vadd.f32 %v775, %v959
    %v1006 = vadd.f32 %v776, %v964
    %v1007 = vadd.f32 %v777, %v969
    %v1008 = vadd.f32 %v778, %v974
    %v1009 = vadd.f32 %v779, %v979
    %v1010 = vadd.f32 %v780, %v984
    %v1011 = vadd.f32 %v781, %v989
    %v1012 = vadd.f32 %v782, %v994
    %v1013 = vld [vmem:[%s60 + $0x1] sm:$0xff]
    %v1014 = vld [vmem:[%s60 + $0x11] sm:$0xff]
    %v1015 = vld [vmem:[%s60 + $0x21] sm:$0xff]
    %v1016 = vld [vmem:[%s60 + $0x31] sm:$0xff]
    %v1017 = vld [vmem:[%s60 + $0x41] sm:$0xff]
    %v1018 = vld [vmem:[%s60 + $0x51] sm:$0xff]
    %v1019 = vld [vmem:[%s60 + $0x61] sm:$0xff]
    %v1020 = vld [vmem:[%s60 + $0x71] sm:$0xff]
    %v1021 = vld [vmem:[%s60 + $0xa1] sm:$0xff]
    %v1022 = vld [vmem:[%s60 + $0xb1] sm:$0xff]
    %v1023 = vld [vmem:[%s60 + $0xc1] sm:$0xff]
    %v1024 = vld [vmem:[%s60 + $0xd1] sm:$0xff]
    %v1025 = vld [vmem:[%s60 + $0xe1] sm:$0xff]
    %v1026 = vld [vmem:[%s60 + $0xf1] sm:$0xff]
    %v1027 = vld [vmem:[%s60 + $0x101] sm:$0xff]
    %v1028 = vld [vmem:[%s60 + $0x111] sm:$0xff]
    %s1029 = scalar_lea.vmem %s1, 128
    %v1030 = vld [vmem:[%s1029] sm:$0xff]
    %v1031 = vld [vmem:[%s1029 + $0x8] sm:$0xff]
    %v1032 = vld [vmem:[%s1029 + $0x10] sm:$0xff]
    %v1033 = vld [vmem:[%s1029 + $0x18] sm:$0xff]
    %v1035 = vsel %vm49, %v1013, 0
    %v1038 = vsel %vm49, %v1014, 0
    %v1041 = vsel %vm49, %v1015, 0
    %v1044 = vsel %vm49, %v1016, 0
    %v1047 = vsel %vm49, %v1017, 0
    %v1050 = vsel %vm49, %v1018, 0
    %v1053 = vsel %vm49, %v1019, 0
    %v1056 = vsel %vm49, %v1020, 0
    %v1059 = vsel %vm49, %v1021, 0
    %v1062 = vsel %vm49, %v1022, 0
    %v1065 = vsel %vm49, %v1023, 0
    %v1068 = vsel %vm49, %v1024, 0
    %v1071 = vsel %vm49, %v1025, 0
    %v1074 = vsel %vm49, %v1026, 0
    %v1077 = vsel %vm49, %v1027, 0
    %v1080 = vsel %vm49, %v1028, 0
    %1082 = vmatprep.subr.mxu0 0.0
    %1083 = vmatpush1.msra.mxu0 0.0
    %1084 = vmatprep.subr.mxu0 0.0
    %1085 = vmatpush1.msra.mxu0 0.0
    %1086 = vmatprep.subr.mxu0 0.0
    %1087 = vmatpush1.msra.mxu0 0.0
    %1088 = vmatprep.subr.mxu0 0.0
    %1089 = vmatpush1.msra.mxu0 0.0
    %1090 = vmatprep.subr.mxu0 0.0
    %1091 = vmatpush1.msra.mxu0 0.0
    %1092 = vmatprep.subr.mxu0 0.0
    %1093 = vmatpush1.msra.mxu0 0.0
    %1094 = vmatprep.subr.mxu0 0.0
    %1095 = vmatpush1.msra.mxu0 0.0
    %1096 = vmatprep.subr.mxu0 0.0
    %1097 = vmatpush1.msra.mxu0 0.0
    %1098 = vmatprep.subr.mxu0 0.0
    %1099 = vmatpush1.msra.mxu0 0.0
    %1100 = vmatprep.subr.mxu0 0.0
    %1101 = vmatpush1.msra.mxu0 0.0
    %1102 = vmatprep.subr.mxu0 0.0
    %1103 = vmatpush1.msra.mxu0 0.0
    %1104 = vmatprep.subr.mxu0 0.0
    %1105 = vmatpush1.msra.mxu0 0.0
    %1106 = vmatprep.subr.mxu0 0.0
    %1107 = vmatpush1.msra.mxu0 %v1033
    %1108 = vmatprep.subr.mxu0 0.0
    %1109 = vmatpush1.msra.mxu0 %v1032
    %1110 = vmatprep.subr.mxu0 0.0
    %1111 = vmatpush1.msra.mxu0 %v1031
    %1112 = vmatprep.subr.mxu0 0.0
    %1113 = vmatpush1.msra.mxu0 %v1030
    %1114 = vmatprep.subr.mxu0 0.0
    %1115 = vmatpush2.msra.mxu0 0.0
    %1116 = vmatprep.subr.mxu0 0.0
    %1117 = vmatpush2.msra.mxu0 0.0
    %1118 = vmatprep.subr.mxu0 0.0
    %1119 = vmatpush2.msra.mxu0 0.0
    %1120 = vmatprep.subr.mxu0 0.0
    %1121 = vmatpush2.msra.mxu0 0.0
    %1122 = vmatprep.subr.mxu0 0.0
    %1123 = vmatpush2.msra.mxu0 0.0
    %1124 = vmatprep.subr.mxu0 0.0
    %1125 = vmatpush2.msra.mxu0 0.0
    %1126 = vmatprep.subr.mxu0 0.0
    %1127 = vmatpush2.msra.mxu0 0.0
    %1128 = vmatprep.subr.mxu0 0.0
    %1129 = vmatpush2.msra.mxu0 0.0
    %1130 = vmatprep.subr.mxu0 0.0
    %1131 = vmatpush2.msra.mxu0 0.0
    %1132 = vmatprep.subr.mxu0 0.0
    %1133 = vmatpush2.msra.mxu0 0.0
    %1134 = vmatprep.subr.mxu0 0.0
    %1135 = vmatpush2.msra.mxu0 0.0
    %1136 = vmatprep.subr.mxu0 0.0
    %1137 = vmatpush2.msra.mxu0 0.0
    %1138 = vmatprep.subr.mxu0 0.0
    %1139 = vmatpush2.msra.mxu0 0.0
    %1140 = vmatprep.subr.mxu0 0.0
    %1141 = vmatpush2.msra.mxu0 0.0
    %1142 = vmatprep.subr.mxu0 0.0
    %1143 = vmatpush2.msra.mxu0 0.0
    %1144 = vmatprep.subr.mxu0 0.0
    %1145 = vmatpush2.msra.mxu0 0.0
    %1146 = vmatprep.mubr.f32.mxu0 0.0
    %1147 = vmatmul.mubr.f32.gmra.mxu0 %v1035
    %v1148 = vpop.f32.mrf.mxu0
    %v1149 = vadd.f32 0.0, %v1148
    %v1150 = vpop.f32.mrf.mxu0
    %1151 = vmatprep.mubr.f32.mxu0 0.0
    %1152 = vmatmul.mubr.f32.gmra.mxu0 %v1038
    %v1153 = vpop.f32.mrf.mxu0
    %v1154 = vadd.f32 0.0, %v1153
    %v1155 = vpop.f32.mrf.mxu0
    %1156 = vmatprep.mubr.f32.mxu0 0.0
    %1157 = vmatmul.mubr.f32.gmra.mxu0 %v1041
    %v1158 = vpop.f32.mrf.mxu0
    %v1159 = vadd.f32 0.0, %v1158
    %v1160 = vpop.f32.mrf.mxu0
    %1161 = vmatprep.mubr.f32.mxu0 0.0
    %1162 = vmatmul.mubr.f32.gmra.mxu0 %v1044
    %v1163 = vpop.f32.mrf.mxu0
    %v1164 = vadd.f32 0.0, %v1163
    %v1165 = vpop.f32.mrf.mxu0
    %1166 = vmatprep.mubr.f32.mxu0 0.0
    %1167 = vmatmul.mubr.f32.gmra.mxu0 %v1047
    %v1168 = vpop.f32.mrf.mxu0
    %v1169 = vadd.f32 0.0, %v1168
    %v1170 = vpop.f32.mrf.mxu0
    %1171 = vmatprep.mubr.f32.mxu0 0.0
    %1172 = vmatmul.mubr.f32.gmra.mxu0 %v1050
    %v1173 = vpop.f32.mrf.mxu0
    %v1174 = vadd.f32 0.0, %v1173
    %v1175 = vpop.f32.mrf.mxu0
    %1176 = vmatprep.mubr.f32.mxu0 0.0
    %1177 = vmatmul.mubr.f32.gmra.mxu0 %v1053
    %v1178 = vpop.f32.mrf.mxu0
    %v1179 = vadd.f32 0.0, %v1178
    %v1180 = vpop.f32.mrf.mxu0
    %1181 = vmatprep.mubr.f32.mxu0 0.0
    %1182 = vmatmul.mubr.f32.gmra.mxu0 %v1056
    %v1183 = vpop.f32.mrf.mxu0
    %v1184 = vadd.f32 0.0, %v1183
    %v1185 = vpop.f32.mrf.mxu0
    %1186 = vmatprep.mubr.f32.mxu0 0.0
    %1187 = vmatmul.mubr.f32.gmra.mxu0 %v1059
    %v1188 = vpop.f32.mrf.mxu0
    %v1189 = vadd.f32 0.0, %v1188
    %v1190 = vpop.f32.mrf.mxu0
    %1191 = vmatprep.mubr.f32.mxu0 0.0
    %1192 = vmatmul.mubr.f32.gmra.mxu0 %v1062
    %v1193 = vpop.f32.mrf.mxu0
    %v1194 = vadd.f32 0.0, %v1193
    %v1195 = vpop.f32.mrf.mxu0
    %1196 = vmatprep.mubr.f32.mxu0 0.0
    %1197 = vmatmul.mubr.f32.gmra.mxu0 %v1065
    %v1198 = vpop.f32.mrf.mxu0
    %v1199 = vadd.f32 0.0, %v1198
    %v1200 = vpop.f32.mrf.mxu0
    %1201 = vmatprep.mubr.f32.mxu0 0.0
    %1202 = vmatmul.mubr.f32.gmra.mxu0 %v1068
    %v1203 = vpop.f32.mrf.mxu0
    %v1204 = vadd.f32 0.0, %v1203
    %v1205 = vpop.f32.mrf.mxu0
    %1206 = vmatprep.mubr.f32.mxu0 0.0
    %1207 = vmatmul.mubr.f32.gmra.mxu0 %v1071
    %v1208 = vpop.f32.mrf.mxu0
    %v1209 = vadd.f32 0.0, %v1208
    %v1210 = vpop.f32.mrf.mxu0
    %1211 = vmatprep.mubr.f32.mxu0 0.0
    %1212 = vmatmul.mubr.f32.gmra.mxu0 %v1074
    %v1213 = vpop.f32.mrf.mxu0
    %v1214 = vadd.f32 0.0, %v1213
    %v1215 = vpop.f32.mrf.mxu0
    %1216 = vmatprep.mubr.f32.mxu0 0.0
    %1217 = vmatmul.mubr.f32.gmra.mxu0 %v1077
    %v1218 = vpop.f32.mrf.mxu0
    %v1219 = vadd.f32 0.0, %v1218
    %v1220 = vpop.f32.mrf.mxu0
    %1221 = vmatprep.mubr.f32.mxu0 0.0
    %1222 = vmatmul.mubr.f32.gmra.mxu0 %v1080
    %v1223 = vpop.f32.mrf.mxu0
    %v1224 = vadd.f32 0.0, %v1223
    %v1225 = vpop.f32.mrf.mxu0
    %1226 = vdwg.mxu0
    %v1227 = vadd.f32 %v997, %v1149
    %v1228 = vadd.f32 %v998, %v1154
    %v1229 = vadd.f32 %v999, %v1159
    %v1230 = vadd.f32 %v1000, %v1164
    %v1231 = vadd.f32 %v1001, %v1169
    %v1232 = vadd.f32 %v1002, %v1174
    %v1233 = vadd.f32 %v1003, %v1179
    %v1234 = vadd.f32 %v1004, %v1184
    %v1235 = vadd.f32 %v1005, %v1189
    %v1236 = vadd.f32 %v1006, %v1194
    %v1237 = vadd.f32 %v1007, %v1199
    %v1238 = vadd.f32 %v1008, %v1204
    %v1239 = vadd.f32 %v1009, %v1209
    %v1240 = vadd.f32 %v1010, %v1214
    %v1241 = vadd.f32 %v1011, %v1219
    %v1242 = vadd.f32 %v1012, %v1224
    %v1243 = vld [vmem:[%s60 + $0x2] sm:$0xff]
    %v1244 = vld [vmem:[%s60 + $0x12] sm:$0xff]
    %v1245 = vld [vmem:[%s60 + $0x22] sm:$0xff]
    %v1246 = vld [vmem:[%s60 + $0x32] sm:$0xff]
    %v1247 = vld [vmem:[%s60 + $0x42] sm:$0xff]
    %v1248 = vld [vmem:[%s60 + $0x52] sm:$0xff]
    %v1249 = vld [vmem:[%s60 + $0x62] sm:$0xff]
    %v1250 = vld [vmem:[%s60 + $0x72] sm:$0xff]
    %v1251 = vld [vmem:[%s60 + $0xa2] sm:$0xff]
    %v1252 = vld [vmem:[%s60 + $0xb2] sm:$0xff]
    %v1253 = vld [vmem:[%s60 + $0xc2] sm:$0xff]
    %v1254 = vld [vmem:[%s60 + $0xd2] sm:$0xff]
    %v1255 = vld [vmem:[%s60 + $0xe2] sm:$0xff]
    %v1256 = vld [vmem:[%s60 + $0xf2] sm:$0xff]
    %v1257 = vld [vmem:[%s60 + $0x102] sm:$0xff]
    %v1258 = vld [vmem:[%s60 + $0x112] sm:$0xff]
    %s1259 = scalar_lea.vmem %s1, 160
    %v1260 = vld [vmem:[%s1259] sm:$0xff]
    %v1261 = vld [vmem:[%s1259 + $0x8] sm:$0xff]
    %v1262 = vld [vmem:[%s1259 + $0x10] sm:$0xff]
    %v1263 = vld [vmem:[%s1259 + $0x18] sm:$0xff]
    %v1265 = vsel %vm49, %v1243, 0
    %v1268 = vsel %vm49, %v1244, 0
    %v1271 = vsel %vm49, %v1245, 0
    %v1274 = vsel %vm49, %v1246, 0
    %v1277 = vsel %vm49, %v1247, 0
    %v1280 = vsel %vm49, %v1248, 0
    %v1283 = vsel %vm49, %v1249, 0
    %v1286 = vsel %vm49, %v1250, 0
    %v1289 = vsel %vm49, %v1251, 0
    %v1292 = vsel %vm49, %v1252, 0
    %v1295 = vsel %vm49, %v1253, 0
    %v1298 = vsel %vm49, %v1254, 0
    %v1301 = vsel %vm49, %v1255, 0
    %v1304 = vsel %vm49, %v1256, 0
    %v1307 = vsel %vm49, %v1257, 0
    %v1310 = vsel %vm49, %v1258, 0
    %1312 = vmatprep.subr.mxu0 0.0
    %1313 = vmatpush1.msra.mxu0 0.0
    %1314 = vmatprep.subr.mxu0 0.0
    %1315 = vmatpush1.msra.mxu0 0.0
    %1316 = vmatprep.subr.mxu0 0.0
    %1317 = vmatpush1.msra.mxu0 0.0
    %1318 = vmatprep.subr.mxu0 0.0
    %1319 = vmatpush1.msra.mxu0 0.0
    %1320 = vmatprep.subr.mxu0 0.0
    %1321 = vmatpush1.msra.mxu0 0.0
    %1322 = vmatprep.subr.mxu0 0.0
    %1323 = vmatpush1.msra.mxu0 0.0
    %1324 = vmatprep.subr.mxu0 0.0
    %1325 = vmatpush1.msra.mxu0 0.0
    %1326 = vmatprep.subr.mxu0 0.0
    %1327 = vmatpush1.msra.mxu0 0.0
    %1328 = vmatprep.subr.mxu0 0.0
    %1329 = vmatpush1.msra.mxu0 0.0
    %1330 = vmatprep.subr.mxu0 0.0
    %1331 = vmatpush1.msra.mxu0 0.0
    %1332 = vmatprep.subr.mxu0 0.0
    %1333 = vmatpush1.msra.mxu0 0.0
    %1334 = vmatprep.subr.mxu0 0.0
    %1335 = vmatpush1.msra.mxu0 0.0
    %1336 = vmatprep.subr.mxu0 0.0
    %1337 = vmatpush1.msra.mxu0 %v1263
    %1338 = vmatprep.subr.mxu0 0.0
    %1339 = vmatpush1.msra.mxu0 %v1262
    %1340 = vmatprep.subr.mxu0 0.0
    %1341 = vmatpush1.msra.mxu0 %v1261
    %1342 = vmatprep.subr.mxu0 0.0
    %1343 = vmatpush1.msra.mxu0 %v1260
    %1344 = vmatprep.subr.mxu0 0.0
    %1345 = vmatpush2.msra.mxu0 0.0
    %1346 = vmatprep.subr.mxu0 0.0
    %1347 = vmatpush2.msra.mxu0 0.0
    %1348 = vmatprep.subr.mxu0 0.0
    %1349 = vmatpush2.msra.mxu0 0.0
    %1350 = vmatprep.subr.mxu0 0.0
    %1351 = vmatpush2.msra.mxu0 0.0
    %1352 = vmatprep.subr.mxu0 0.0
    %1353 = vmatpush2.msra.mxu0 0.0
    %1354 = vmatprep.subr.mxu0 0.0
    %1355 = vmatpush2.msra.mxu0 0.0
    %1356 = vmatprep.subr.mxu0 0.0
    %1357 = vmatpush2.msra.mxu0 0.0
    %1358 = vmatprep.subr.mxu0 0.0
    %1359 = vmatpush2.msra.mxu0 0.0
    %1360 = vmatprep.subr.mxu0 0.0
    %1361 = vmatpush2.msra.mxu0 0.0
    %1362 = vmatprep.subr.mxu0 0.0
    %1363 = vmatpush2.msra.mxu0 0.0
    %1364 = vmatprep.subr.mxu0 0.0
    %1365 = vmatpush2.msra.mxu0 0.0
    %1366 = vmatprep.subr.mxu0 0.0
    %1367 = vmatpush2.msra.mxu0 0.0
    %1368 = vmatprep.subr.mxu0 0.0
    %1369 = vmatpush2.msra.mxu0 0.0
    %1370 = vmatprep.subr.mxu0 0.0
    %1371 = vmatpush2.msra.mxu0 0.0
    %1372 = vmatprep.subr.mxu0 0.0
    %1373 = vmatpush2.msra.mxu0 0.0
    %1374 = vmatprep.subr.mxu0 0.0
    %1375 = vmatpush2.msra.mxu0 0.0
    %1376 = vmatprep.mubr.f32.mxu0 0.0
    %1377 = vmatmul.mubr.f32.gmra.mxu0 %v1265
    %v1378 = vpop.f32.mrf.mxu0
    %v1379 = vadd.f32 0.0, %v1378
    %v1380 = vpop.f32.mrf.mxu0
    %1381 = vmatprep.mubr.f32.mxu0 0.0
    %1382 = vmatmul.mubr.f32.gmra.mxu0 %v1268
    %v1383 = vpop.f32.mrf.mxu0
    %v1384 = vadd.f32 0.0, %v1383
    %v1385 = vpop.f32.mrf.mxu0
    %1386 = vmatprep.mubr.f32.mxu0 0.0
    %1387 = vmatmul.mubr.f32.gmra.mxu0 %v1271
    %v1388 = vpop.f32.mrf.mxu0
    %v1389 = vadd.f32 0.0, %v1388
    %v1390 = vpop.f32.mrf.mxu0
    %1391 = vmatprep.mubr.f32.mxu0 0.0
    %1392 = vmatmul.mubr.f32.gmra.mxu0 %v1274
    %v1393 = vpop.f32.mrf.mxu0
    %v1394 = vadd.f32 0.0, %v1393
    %v1395 = vpop.f32.mrf.mxu0
    %1396 = vmatprep.mubr.f32.mxu0 0.0
    %1397 = vmatmul.mubr.f32.gmra.mxu0 %v1277
    %v1398 = vpop.f32.mrf.mxu0
    %v1399 = vadd.f32 0.0, %v1398
    %v1400 = vpop.f32.mrf.mxu0
    %1401 = vmatprep.mubr.f32.mxu0 0.0
    %1402 = vmatmul.mubr.f32.gmra.mxu0 %v1280
    %v1403 = vpop.f32.mrf.mxu0
    %v1404 = vadd.f32 0.0, %v1403
    %v1405 = vpop.f32.mrf.mxu0
    %1406 = vmatprep.mubr.f32.mxu0 0.0
    %1407 = vmatmul.mubr.f32.gmra.mxu0 %v1283
    %v1408 = vpop.f32.mrf.mxu0
    %v1409 = vadd.f32 0.0, %v1408
    %v1410 = vpop.f32.mrf.mxu0
    %1411 = vmatprep.mubr.f32.mxu0 0.0
    %1412 = vmatmul.mubr.f32.gmra.mxu0 %v1286
    %v1413 = vpop.f32.mrf.mxu0
    %v1414 = vadd.f32 0.0, %v1413
    %v1415 = vpop.f32.mrf.mxu0
    %1416 = vmatprep.mubr.f32.mxu0 0.0
    %1417 = vmatmul.mubr.f32.gmra.mxu0 %v1289
    %v1418 = vpop.f32.mrf.mxu0
    %v1419 = vadd.f32 0.0, %v1418
    %v1420 = vpop.f32.mrf.mxu0
    %1421 = vmatprep.mubr.f32.mxu0 0.0
    %1422 = vmatmul.mubr.f32.gmra.mxu0 %v1292
    %v1423 = vpop.f32.mrf.mxu0
    %v1424 = vadd.f32 0.0, %v1423
    %v1425 = vpop.f32.mrf.mxu0
    %1426 = vmatprep.mubr.f32.mxu0 0.0
    %1427 = vmatmul.mubr.f32.gmra.mxu0 %v1295
    %v1428 = vpop.f32.mrf.mxu0
    %v1429 = vadd.f32 0.0, %v1428
    %v1430 = vpop.f32.mrf.mxu0
    %1431 = vmatprep.mubr.f32.mxu0 0.0
    %1432 = vmatmul.mubr.f32.gmra.mxu0 %v1298
    %v1433 = vpop.f32.mrf.mxu0
    %v1434 = vadd.f32 0.0, %v1433
    %v1435 = vpop.f32.mrf.mxu0
    %1436 = vmatprep.mubr.f32.mxu0 0.0
    %1437 = vmatmul.mubr.f32.gmra.mxu0 %v1301
    %v1438 = vpop.f32.mrf.mxu0
    %v1439 = vadd.f32 0.0, %v1438
    %v1440 = vpop.f32.mrf.mxu0
    %1441 = vmatprep.mubr.f32.mxu0 0.0
    %1442 = vmatmul.mubr.f32.gmra.mxu0 %v1304
    %v1443 = vpop.f32.mrf.mxu0
    %v1444 = vadd.f32 0.0, %v1443
    %v1445 = vpop.f32.mrf.mxu0
    %1446 = vmatprep.mubr.f32.mxu0 0.0
    %1447 = vmatmul.mubr.f32.gmra.mxu0 %v1307
    %v1448 = vpop.f32.mrf.mxu0
    %v1449 = vadd.f32 0.0, %v1448
    %v1450 = vpop.f32.mrf.mxu0
    %1451 = vmatprep.mubr.f32.mxu0 0.0
    %1452 = vmatmul.mubr.f32.gmra.mxu0 %v1310
    %v1453 = vpop.f32.mrf.mxu0
    %v1454 = vadd.f32 0.0, %v1453
    %v1455 = vpop.f32.mrf.mxu0
    %1456 = vdwg.mxu0
    %v1457 = vadd.f32 %v1227, %v1379
    %v1458 = vadd.f32 %v1228, %v1384
    %v1459 = vadd.f32 %v1229, %v1389
    %v1460 = vadd.f32 %v1230, %v1394
    %v1461 = vadd.f32 %v1231, %v1399
    %v1462 = vadd.f32 %v1232, %v1404
    %v1463 = vadd.f32 %v1233, %v1409
    %v1464 = vadd.f32 %v1234, %v1414
    %v1465 = vadd.f32 %v1235, %v1419
    %v1466 = vadd.f32 %v1236, %v1424
    %v1467 = vadd.f32 %v1237, %v1429
    %v1468 = vadd.f32 %v1238, %v1434
    %v1469 = vadd.f32 %v1239, %v1439
    %v1470 = vadd.f32 %v1240, %v1444
    %v1471 = vadd.f32 %v1241, %v1449
    %v1472 = vadd.f32 %v1242, %v1454
    %s1473 = scalar_lea.vmem [#allocation2], 32
    %v1474 = vld [vmem:[%s1473] sm:$0xff]
    %v1475 = vld [vmem:[%s1473 + $0x10] sm:$0xff]
    %v1476 = vld [vmem:[%s1473 + $0x20] sm:$0xff]
    %v1477 = vld [vmem:[%s1473 + $0x30] sm:$0xff]
    %v1478 = vld [vmem:[%s1473 + $0x40] sm:$0xff]
    %v1479 = vld [vmem:[%s1473 + $0x50] sm:$0xff]
    %v1480 = vld [vmem:[%s1473 + $0x60] sm:$0xff]
    %v1481 = vld [vmem:[%s1473 + $0x70] sm:$0xff]
    %v1482 = vld [vmem:[%s1473 + $0xa0] sm:$0xff]
    %v1483 = vld [vmem:[%s1473 + $0xb0] sm:$0xff]
    %v1484 = vld [vmem:[%s1473 + $0xc0] sm:$0xff]
    %v1485 = vld [vmem:[%s1473 + $0xd0] sm:$0xff]
    %v1486 = vld [vmem:[%s1473 + $0xe0] sm:$0xff]
    %v1487 = vld [vmem:[%s1473 + $0xf0] sm:$0xff]
    %v1488 = vld [vmem:[%s1473 + $0x100] sm:$0xff]
    %v1489 = vld [vmem:[%s1473 + $0x110] sm:$0xff]
    %s1490 = scalar_lea.vmem %s1, 192
    %v1491 = vld [vmem:[%s1490] sm:$0xff]
    %v1492 = vld [vmem:[%s1490 + $0x8] sm:$0xff]
    %v1493 = vld [vmem:[%s1490 + $0x10] sm:$0xff]
    %v1494 = vld [vmem:[%s1490 + $0x18] sm:$0xff]
    %v1496 = vsel %vm49, %v1474, 0
    %v1499 = vsel %vm49, %v1475, 0
    %v1502 = vsel %vm49, %v1476, 0
    %v1505 = vsel %vm49, %v1477, 0
    %v1508 = vsel %vm49, %v1478, 0
    %v1511 = vsel %vm49, %v1479, 0
    %v1514 = vsel %vm49, %v1480, 0
    %v1517 = vsel %vm49, %v1481, 0
    %v1520 = vsel %vm49, %v1482, 0
    %v1523 = vsel %vm49, %v1483, 0
    %v1526 = vsel %vm49, %v1484, 0
    %v1529 = vsel %vm49, %v1485, 0
    %v1532 = vsel %vm49, %v1486, 0
    %v1535 = vsel %vm49, %v1487, 0
    %v1538 = vsel %vm49, %v1488, 0
    %v1541 = vsel %vm49, %v1489, 0
    %1543 = vmatprep.subr.mxu0 0.0
    %1544 = vmatpush1.msra.mxu0 0.0
    %1545 = vmatprep.subr.mxu0 0.0
    %1546 = vmatpush1.msra.mxu0 0.0
    %1547 = vmatprep.subr.mxu0 0.0
    %1548 = vmatpush1.msra.mxu0 0.0
    %1549 = vmatprep.subr.mxu0 0.0
    %1550 = vmatpush1.msra.mxu0 0.0
    %1551 = vmatprep.subr.mxu0 0.0
    %1552 = vmatpush1.msra.mxu0 0.0
    %1553 = vmatprep.subr.mxu0 0.0
    %1554 = vmatpush1.msra.mxu0 0.0
    %1555 = vmatprep.subr.mxu0 0.0
    %1556 = vmatpush1.msra.mxu0 0.0
    %1557 = vmatprep.subr.mxu0 0.0
    %1558 = vmatpush1.msra.mxu0 0.0
    %1559 = vmatprep.subr.mxu0 0.0
    %1560 = vmatpush1.msra.mxu0 0.0
    %1561 = vmatprep.subr.mxu0 0.0
    %1562 = vmatpush1.msra.mxu0 0.0
    %1563 = vmatprep.subr.mxu0 0.0
    %1564 = vmatpush1.msra.mxu0 0.0
    %1565 = vmatprep.subr.mxu0 0.0
    %1566 = vmatpush1.msra.mxu0 0.0
    %1567 = vmatprep.subr.mxu0 0.0
    %1568 = vmatpush1.msra.mxu0 %v1494
    %1569 = vmatprep.subr.mxu0 0.0
    %1570 = vmatpush1.msra.mxu0 %v1493
    %1571 = vmatprep.subr.mxu0 0.0
    %1572 = vmatpush1.msra.mxu0 %v1492
    %1573 = vmatprep.subr.mxu0 0.0
    %1574 = vmatpush1.msra.mxu0 %v1491
    %1575 = vmatprep.subr.mxu0 0.0
    %1576 = vmatpush2.msra.mxu0 0.0
    %1577 = vmatprep.subr.mxu0 0.0
    %1578 = vmatpush2.msra.mxu0 0.0
    %1579 = vmatprep.subr.mxu0 0.0
    %1580 = vmatpush2.msra.mxu0 0.0
    %1581 = vmatprep.subr.mxu0 0.0
    %1582 = vmatpush2.msra.mxu0 0.0
    %1583 = vmatprep.subr.mxu0 0.0
    %1584 = vmatpush2.msra.mxu0 0.0
    %1585 = vmatprep.subr.mxu0 0.0
    %1586 = vmatpush2.msra.mxu0 0.0
    %1587 = vmatprep.subr.mxu0 0.0
    %1588 = vmatpush2.msra.mxu0 0.0
    %1589 = vmatprep.subr.mxu0 0.0
    %1590 = vmatpush2.msra.mxu0 0.0
    %1591 = vmatprep.subr.mxu0 0.0
    %1592 = vmatpush2.msra.mxu0 0.0
    %1593 = vmatprep.subr.mxu0 0.0
    %1594 = vmatpush2.msra.mxu0 0.0
    %1595 = vmatprep.subr.mxu0 0.0
    %1596 = vmatpush2.msra.mxu0 0.0
    %1597 = vmatprep.subr.mxu0 0.0
    %1598 = vmatpush2.msra.mxu0 0.0
    %1599 = vmatprep.subr.mxu0 0.0
    %1600 = vmatpush2.msra.mxu0 0.0
    %1601 = vmatprep.subr.mxu0 0.0
    %1602 = vmatpush2.msra.mxu0 0.0
    %1603 = vmatprep.subr.mxu0 0.0
    %1604 = vmatpush2.msra.mxu0 0.0
    %1605 = vmatprep.subr.mxu0 0.0
    %1606 = vmatpush2.msra.mxu0 0.0
    %1607 = vmatprep.mubr.f32.mxu0 0.0
    %1608 = vmatmul.mubr.f32.gmra.mxu0 %v1496
    %v1609 = vpop.f32.mrf.mxu0
    %v1610 = vadd.f32 0.0, %v1609
    %v1611 = vpop.f32.mrf.mxu0
    %1612 = vmatprep.mubr.f32.mxu0 0.0
    %1613 = vmatmul.mubr.f32.gmra.mxu0 %v1499
    %v1614 = vpop.f32.mrf.mxu0
    %v1615 = vadd.f32 0.0, %v1614
    %v1616 = vpop.f32.mrf.mxu0
    %1617 = vmatprep.mubr.f32.mxu0 0.0
    %1618 = vmatmul.mubr.f32.gmra.mxu0 %v1502
    %v1619 = vpop.f32.mrf.mxu0
    %v1620 = vadd.f32 0.0, %v1619
    %v1621 = vpop.f32.mrf.mxu0
    %1622 = vmatprep.mubr.f32.mxu0 0.0
    %1623 = vmatmul.mubr.f32.gmra.mxu0 %v1505
    %v1624 = vpop.f32.mrf.mxu0
    %v1625 = vadd.f32 0.0, %v1624
    %v1626 = vpop.f32.mrf.mxu0
    %1627 = vmatprep.mubr.f32.mxu0 0.0
    %1628 = vmatmul.mubr.f32.gmra.mxu0 %v1508
    %v1629 = vpop.f32.mrf.mxu0
    %v1630 = vadd.f32 0.0, %v1629
    %v1631 = vpop.f32.mrf.mxu0
    %1632 = vmatprep.mubr.f32.mxu0 0.0
    %1633 = vmatmul.mubr.f32.gmra.mxu0 %v1511
    %v1634 = vpop.f32.mrf.mxu0
    %v1635 = vadd.f32 0.0, %v1634
    %v1636 = vpop.f32.mrf.mxu0
    %1637 = vmatprep.mubr.f32.mxu0 0.0
    %1638 = vmatmul.mubr.f32.gmra.mxu0 %v1514
    %v1639 = vpop.f32.mrf.mxu0
    %v1640 = vadd.f32 0.0, %v1639
    %v1641 = vpop.f32.mrf.mxu0
    %1642 = vmatprep.mubr.f32.mxu0 0.0
    %1643 = vmatmul.mubr.f32.gmra.mxu0 %v1517
    %v1644 = vpop.f32.mrf.mxu0
    %v1645 = vadd.f32 0.0, %v1644
    %v1646 = vpop.f32.mrf.mxu0
    %1647 = vmatprep.mubr.f32.mxu0 0.0
    %1648 = vmatmul.mubr.f32.gmra.mxu0 %v1520
    %v1649 = vpop.f32.mrf.mxu0
    %v1650 = vadd.f32 0.0, %v1649
    %v1651 = vpop.f32.mrf.mxu0
    %1652 = vmatprep.mubr.f32.mxu0 0.0
    %1653 = vmatmul.mubr.f32.gmra.mxu0 %v1523
    %v1654 = vpop.f32.mrf.mxu0
    %v1655 = vadd.f32 0.0, %v1654
    %v1656 = vpop.f32.mrf.mxu0
    %1657 = vmatprep.mubr.f32.mxu0 0.0
    %1658 = vmatmul.mubr.f32.gmra.mxu0 %v1526
    %v1659 = vpop.f32.mrf.mxu0
    %v1660 = vadd.f32 0.0, %v1659
    %v1661 = vpop.f32.mrf.mxu0
    %1662 = vmatprep.mubr.f32.mxu0 0.0
    %1663 = vmatmul.mubr.f32.gmra.mxu0 %v1529
    %v1664 = vpop.f32.mrf.mxu0
    %v1665 = vadd.f32 0.0, %v1664
    %v1666 = vpop.f32.mrf.mxu0
    %1667 = vmatprep.mubr.f32.mxu0 0.0
    %1668 = vmatmul.mubr.f32.gmra.mxu0 %v1532
    %v1669 = vpop.f32.mrf.mxu0
    %v1670 = vadd.f32 0.0, %v1669
    %v1671 = vpop.f32.mrf.mxu0
    %1672 = vmatprep.mubr.f32.mxu0 0.0
    %1673 = vmatmul.mubr.f32.gmra.mxu0 %v1535
    %v1674 = vpop.f32.mrf.mxu0
    %v1675 = vadd.f32 0.0, %v1674
    %v1676 = vpop.f32.mrf.mxu0
    %1677 = vmatprep.mubr.f32.mxu0 0.0
    %1678 = vmatmul.mubr.f32.gmra.mxu0 %v1538
    %v1679 = vpop.f32.mrf.mxu0
    %v1680 = vadd.f32 0.0, %v1679
    %v1681 = vpop.f32.mrf.mxu0
    %1682 = vmatprep.mubr.f32.mxu0 0.0
    %1683 = vmatmul.mubr.f32.gmra.mxu0 %v1541
    %v1684 = vpop.f32.mrf.mxu0
    %v1685 = vadd.f32 0.0, %v1684
    %v1686 = vpop.f32.mrf.mxu0
    %1687 = vdwg.mxu0
    %v1688 = vadd.f32 %v1457, %v1610
    %v1689 = vadd.f32 %v1458, %v1615
    %v1690 = vadd.f32 %v1459, %v1620
    %v1691 = vadd.f32 %v1460, %v1625
    %v1692 = vadd.f32 %v1461, %v1630
    %v1693 = vadd.f32 %v1462, %v1635
    %v1694 = vadd.f32 %v1463, %v1640
    %v1695 = vadd.f32 %v1464, %v1645
    %v1696 = vadd.f32 %v1465, %v1650
    %v1697 = vadd.f32 %v1466, %v1655
    %v1698 = vadd.f32 %v1467, %v1660
    %v1699 = vadd.f32 %v1468, %v1665
    %v1700 = vadd.f32 %v1469, %v1670
    %v1701 = vadd.f32 %v1470, %v1675
    %v1702 = vadd.f32 %v1471, %v1680
    %v1703 = vadd.f32 %v1472, %v1685
    %v1704 = vld [vmem:[%s1473 + $0x1] sm:$0xff]
    %v1705 = vld [vmem:[%s1473 + $0x11] sm:$0xff]
    %v1706 = vld [vmem:[%s1473 + $0x21] sm:$0xff]
    %v1707 = vld [vmem:[%s1473 + $0x31] sm:$0xff]
    %v1708 = vld [vmem:[%s1473 + $0x41] sm:$0xff]
    %v1709 = vld [vmem:[%s1473 + $0x51] sm:$0xff]
    %v1710 = vld [vmem:[%s1473 + $0x61] sm:$0xff]
    %v1711 = vld [vmem:[%s1473 + $0x71] sm:$0xff]
    %v1712 = vld [vmem:[%s1473 + $0xa1] sm:$0xff]
    %v1713 = vld [vmem:[%s1473 + $0xb1] sm:$0xff]
    %v1714 = vld [vmem:[%s1473 + $0xc1] sm:$0xff]
    %v1715 = vld [vmem:[%s1473 + $0xd1] sm:$0xff]
    %v1716 = vld [vmem:[%s1473 + $0xe1] sm:$0xff]
    %v1717 = vld [vmem:[%s1473 + $0xf1] sm:$0xff]
    %v1718 = vld [vmem:[%s1473 + $0x101] sm:$0xff]
    %v1719 = vld [vmem:[%s1473 + $0x111] sm:$0xff]
    %s1720 = scalar_lea.vmem %s1, 224
    %v1721 = vld [vmem:[%s1720] sm:$0xff]
    %v1722 = vld [vmem:[%s1720 + $0x8] sm:$0xff]
    %v1723 = vld [vmem:[%s1720 + $0x10] sm:$0xff]
    %v1724 = vld [vmem:[%s1720 + $0x18] sm:$0xff]
    %v1726 = vsel %vm49, %v1704, 0
    %v1729 = vsel %vm49, %v1705, 0
    %v1732 = vsel %vm49, %v1706, 0
    %v1735 = vsel %vm49, %v1707, 0
    %v1738 = vsel %vm49, %v1708, 0
    %v1741 = vsel %vm49, %v1709, 0
    %v1744 = vsel %vm49, %v1710, 0
    %v1747 = vsel %vm49, %v1711, 0
    %v1750 = vsel %vm49, %v1712, 0
    %v1753 = vsel %vm49, %v1713, 0
    %v1756 = vsel %vm49, %v1714, 0
    %v1759 = vsel %vm49, %v1715, 0
    %v1762 = vsel %vm49, %v1716, 0
    %v1765 = vsel %vm49, %v1717, 0
    %v1768 = vsel %vm49, %v1718, 0
    %v1771 = vsel %vm49, %v1719, 0
    %1773 = vmatprep.subr.mxu0 0.0
    %1774 = vmatpush1.msra.mxu0 0.0
    %1775 = vmatprep.subr.mxu0 0.0
    %1776 = vmatpush1.msra.mxu0 0.0
    %1777 = vmatprep.subr.mxu0 0.0
    %1778 = vmatpush1.msra.mxu0 0.0
    %1779 = vmatprep.subr.mxu0 0.0
    %1780 = vmatpush1.msra.mxu0 0.0
    %1781 = vmatprep.subr.mxu0 0.0
    %1782 = vmatpush1.msra.mxu0 0.0
    %1783 = vmatprep.subr.mxu0 0.0
    %1784 = vmatpush1.msra.mxu0 0.0
    %1785 = vmatprep.subr.mxu0 0.0
    %1786 = vmatpush1.msra.mxu0 0.0
    %1787 = vmatprep.subr.mxu0 0.0
    %1788 = vmatpush1.msra.mxu0 0.0
    %1789 = vmatprep.subr.mxu0 0.0
    %1790 = vmatpush1.msra.mxu0 0.0
    %1791 = vmatprep.subr.mxu0 0.0
    %1792 = vmatpush1.msra.mxu0 0.0
    %1793 = vmatprep.subr.mxu0 0.0
    %1794 = vmatpush1.msra.mxu0 0.0
    %1795 = vmatprep.subr.mxu0 0.0
    %1796 = vmatpush1.msra.mxu0 0.0
    %1797 = vmatprep.subr.mxu0 0.0
    %1798 = vmatpush1.msra.mxu0 %v1724
    %1799 = vmatprep.subr.mxu0 0.0
    %1800 = vmatpush1.msra.mxu0 %v1723
    %1801 = vmatprep.subr.mxu0 0.0
    %1802 = vmatpush1.msra.mxu0 %v1722
    %1803 = vmatprep.subr.mxu0 0.0
    %1804 = vmatpush1.msra.mxu0 %v1721
    %1805 = vmatprep.subr.mxu0 0.0
    %1806 = vmatpush2.msra.mxu0 0.0
    %1807 = vmatprep.subr.mxu0 0.0
    %1808 = vmatpush2.msra.mxu0 0.0
    %1809 = vmatprep.subr.mxu0 0.0
    %1810 = vmatpush2.msra.mxu0 0.0
    %1811 = vmatprep.subr.mxu0 0.0
    %1812 = vmatpush2.msra.mxu0 0.0
    %1813 = vmatprep.subr.mxu0 0.0
    %1814 = vmatpush2.msra.mxu0 0.0
    %1815 = vmatprep.subr.mxu0 0.0
    %1816 = vmatpush2.msra.mxu0 0.0
    %1817 = vmatprep.subr.mxu0 0.0
    %1818 = vmatpush2.msra.mxu0 0.0
    %1819 = vmatprep.subr.mxu0 0.0
    %1820 = vmatpush2.msra.mxu0 0.0
    %1821 = vmatprep.subr.mxu0 0.0
    %1822 = vmatpush2.msra.mxu0 0.0
    %1823 = vmatprep.subr.mxu0 0.0
    %1824 = vmatpush2.msra.mxu0 0.0
    %1825 = vmatprep.subr.mxu0 0.0
    %1826 = vmatpush2.msra.mxu0 0.0
    %1827 = vmatprep.subr.mxu0 0.0
    %1828 = vmatpush2.msra.mxu0 0.0
    %1829 = vmatprep.subr.mxu0 0.0
    %1830 = vmatpush2.msra.mxu0 0.0
    %1831 = vmatprep.subr.mxu0 0.0
    %1832 = vmatpush2.msra.mxu0 0.0
    %1833 = vmatprep.subr.mxu0 0.0
    %1834 = vmatpush2.msra.mxu0 0.0
    %1835 = vmatprep.subr.mxu0 0.0
    %1836 = vmatpush2.msra.mxu0 0.0
    %1837 = vmatprep.mubr.f32.mxu0 0.0
    %1838 = vmatmul.mubr.f32.gmra.mxu0 %v1726
    %v1839 = vpop.f32.mrf.mxu0
    %v1840 = vadd.f32 0.0, %v1839
    %v1841 = vpop.f32.mrf.mxu0
    %1842 = vmatprep.mubr.f32.mxu0 0.0
    %1843 = vmatmul.mubr.f32.gmra.mxu0 %v1729
    %v1844 = vpop.f32.mrf.mxu0
    %v1845 = vadd.f32 0.0, %v1844
    %v1846 = vpop.f32.mrf.mxu0
    %1847 = vmatprep.mubr.f32.mxu0 0.0
    %1848 = vmatmul.mubr.f32.gmra.mxu0 %v1732
    %v1849 = vpop.f32.mrf.mxu0
    %v1850 = vadd.f32 0.0, %v1849
    %v1851 = vpop.f32.mrf.mxu0
    %1852 = vmatprep.mubr.f32.mxu0 0.0
    %1853 = vmatmul.mubr.f32.gmra.mxu0 %v1735
    %v1854 = vpop.f32.mrf.mxu0
    %v1855 = vadd.f32 0.0, %v1854
    %v1856 = vpop.f32.mrf.mxu0
    %1857 = vmatprep.mubr.f32.mxu0 0.0
    %1858 = vmatmul.mubr.f32.gmra.mxu0 %v1738
    %v1859 = vpop.f32.mrf.mxu0
    %v1860 = vadd.f32 0.0, %v1859
    %v1861 = vpop.f32.mrf.mxu0
    %1862 = vmatprep.mubr.f32.mxu0 0.0
    %1863 = vmatmul.mubr.f32.gmra.mxu0 %v1741
    %v1864 = vpop.f32.mrf.mxu0
    %v1865 = vadd.f32 0.0, %v1864
    %v1866 = vpop.f32.mrf.mxu0
    %1867 = vmatprep.mubr.f32.mxu0 0.0
    %1868 = vmatmul.mubr.f32.gmra.mxu0 %v1744
    %v1869 = vpop.f32.mrf.mxu0
    %v1870 = vadd.f32 0.0, %v1869
    %v1871 = vpop.f32.mrf.mxu0
    %1872 = vmatprep.mubr.f32.mxu0 0.0
    %1873 = vmatmul.mubr.f32.gmra.mxu0 %v1747
    %v1874 = vpop.f32.mrf.mxu0
    %v1875 = vadd.f32 0.0, %v1874
    %v1876 = vpop.f32.mrf.mxu0
    %1877 = vmatprep.mubr.f32.mxu0 0.0
    %1878 = vmatmul.mubr.f32.gmra.mxu0 %v1750
    %v1879 = vpop.f32.mrf.mxu0
    %v1880 = vadd.f32 0.0, %v1879
    %v1881 = vpop.f32.mrf.mxu0
    %1882 = vmatprep.mubr.f32.mxu0 0.0
    %1883 = vmatmul.mubr.f32.gmra.mxu0 %v1753
    %v1884 = vpop.f32.mrf.mxu0
    %v1885 = vadd.f32 0.0, %v1884
    %v1886 = vpop.f32.mrf.mxu0
    %1887 = vmatprep.mubr.f32.mxu0 0.0
    %1888 = vmatmul.mubr.f32.gmra.mxu0 %v1756
    %v1889 = vpop.f32.mrf.mxu0
    %v1890 = vadd.f32 0.0, %v1889
    %v1891 = vpop.f32.mrf.mxu0
    %1892 = vmatprep.mubr.f32.mxu0 0.0
    %1893 = vmatmul.mubr.f32.gmra.mxu0 %v1759
    %v1894 = vpop.f32.mrf.mxu0
    %v1895 = vadd.f32 0.0, %v1894
    %v1896 = vpop.f32.mrf.mxu0
    %1897 = vmatprep.mubr.f32.mxu0 0.0
    %1898 = vmatmul.mubr.f32.gmra.mxu0 %v1762
    %v1899 = vpop.f32.mrf.mxu0
    %v1900 = vadd.f32 0.0, %v1899
    %v1901 = vpop.f32.mrf.mxu0
    %1902 = vmatprep.mubr.f32.mxu0 0.0
    %1903 = vmatmul.mubr.f32.gmra.mxu0 %v1765
    %v1904 = vpop.f32.mrf.mxu0
    %v1905 = vadd.f32 0.0, %v1904
    %v1906 = vpop.f32.mrf.mxu0
    %1907 = vmatprep.mubr.f32.mxu0 0.0
    %1908 = vmatmul.mubr.f32.gmra.mxu0 %v1768
    %v1909 = vpop.f32.mrf.mxu0
    %v1910 = vadd.f32 0.0, %v1909
    %v1911 = vpop.f32.mrf.mxu0
    %1912 = vmatprep.mubr.f32.mxu0 0.0
    %1913 = vmatmul.mubr.f32.gmra.mxu0 %v1771
    %v1914 = vpop.f32.mrf.mxu0
    %v1915 = vadd.f32 0.0, %v1914
    %v1916 = vpop.f32.mrf.mxu0
    %1917 = vdwg.mxu0
    %v1918 = vadd.f32 %v1688, %v1840
    %v1919 = vadd.f32 %v1689, %v1845
    %v1920 = vadd.f32 %v1690, %v1850
    %v1921 = vadd.f32 %v1691, %v1855
    %v1922 = vadd.f32 %v1692, %v1860
    %v1923 = vadd.f32 %v1693, %v1865
    %v1924 = vadd.f32 %v1694, %v1870
    %v1925 = vadd.f32 %v1695, %v1875
    %v1926 = vadd.f32 %v1696, %v1880
    %v1927 = vadd.f32 %v1697, %v1885
    %v1928 = vadd.f32 %v1698, %v1890
    %v1929 = vadd.f32 %v1699, %v1895
    %v1930 = vadd.f32 %v1700, %v1900
    %v1931 = vadd.f32 %v1701, %v1905
    %v1932 = vadd.f32 %v1702, %v1910
    %v1933 = vadd.f32 %v1703, %v1915
    %v1934 = vld [vmem:[%s1473 + $0x2] sm:$0xff]
    %v1935 = vld [vmem:[%s1473 + $0x12] sm:$0xff]
    %v1936 = vld [vmem:[%s1473 + $0x22] sm:$0xff]
    %v1937 = vld [vmem:[%s1473 + $0x32] sm:$0xff]
    %v1938 = vld [vmem:[%s1473 + $0x42] sm:$0xff]
    %v1939 = vld [vmem:[%s1473 + $0x52] sm:$0xff]
    %v1940 = vld [vmem:[%s1473 + $0x62] sm:$0xff]
    %v1941 = vld [vmem:[%s1473 + $0x72] sm:$0xff]
    %v1942 = vld [vmem:[%s1473 + $0xa2] sm:$0xff]
    %v1943 = vld [vmem:[%s1473 + $0xb2] sm:$0xff]
    %v1944 = vld [vmem:[%s1473 + $0xc2] sm:$0xff]
    %v1945 = vld [vmem:[%s1473 + $0xd2] sm:$0xff]
    %v1946 = vld [vmem:[%s1473 + $0xe2] sm:$0xff]
    %v1947 = vld [vmem:[%s1473 + $0xf2] sm:$0xff]
    %v1948 = vld [vmem:[%s1473 + $0x102] sm:$0xff]
    %v1949 = vld [vmem:[%s1473 + $0x112] sm:$0xff]
    %s1950 = scalar_lea.vmem %s1, 256
    %v1951 = vld [vmem:[%s1950] sm:$0xff]
    %v1952 = vld [vmem:[%s1950 + $0x8] sm:$0xff]
    %v1953 = vld [vmem:[%s1950 + $0x10] sm:$0xff]
    %v1954 = vld [vmem:[%s1950 + $0x18] sm:$0xff]
    %v1956 = vsel %vm49, %v1934, 0
    %v1959 = vsel %vm49, %v1935, 0
    %v1962 = vsel %vm49, %v1936, 0
    %v1965 = vsel %vm49, %v1937, 0
    %v1968 = vsel %vm49, %v1938, 0
    %v1971 = vsel %vm49, %v1939, 0
    %v1974 = vsel %vm49, %v1940, 0
    %v1977 = vsel %vm49, %v1941, 0
    %v1980 = vsel %vm49, %v1942, 0
    %v1983 = vsel %vm49, %v1943, 0
    %v1986 = vsel %vm49, %v1944, 0
    %v1989 = vsel %vm49, %v1945, 0
    %v1992 = vsel %vm49, %v1946, 0
    %v1995 = vsel %vm49, %v1947, 0
    %v1998 = vsel %vm49, %v1948, 0
    %v2001 = vsel %vm49, %v1949, 0
    %2003 = vmatprep.subr.mxu0 0.0
    %2004 = vmatpush1.msra.mxu0 0.0
    %2005 = vmatprep.subr.mxu0 0.0
    %2006 = vmatpush1.msra.mxu0 0.0
    %2007 = vmatprep.subr.mxu0 0.0
    %2008 = vmatpush1.msra.mxu0 0.0
    %2009 = vmatprep.subr.mxu0 0.0
    %2010 = vmatpush1.msra.mxu0 0.0
    %2011 = vmatprep.subr.mxu0 0.0
    %2012 = vmatpush1.msra.mxu0 0.0
    %2013 = vmatprep.subr.mxu0 0.0
    %2014 = vmatpush1.msra.mxu0 0.0
    %2015 = vmatprep.subr.mxu0 0.0
    %2016 = vmatpush1.msra.mxu0 0.0
    %2017 = vmatprep.subr.mxu0 0.0
    %2018 = vmatpush1.msra.mxu0 0.0
    %2019 = vmatprep.subr.mxu0 0.0
    %2020 = vmatpush1.msra.mxu0 0.0
    %2021 = vmatprep.subr.mxu0 0.0
    %2022 = vmatpush1.msra.mxu0 0.0
    %2023 = vmatprep.subr.mxu0 0.0
    %2024 = vmatpush1.msra.mxu0 0.0
    %2025 = vmatprep.subr.mxu0 0.0
    %2026 = vmatpush1.msra.mxu0 0.0
    %2027 = vmatprep.subr.mxu0 0.0
    %2028 = vmatpush1.msra.mxu0 %v1954
    %2029 = vmatprep.subr.mxu0 0.0
    %2030 = vmatpush1.msra.mxu0 %v1953
    %2031 = vmatprep.subr.mxu0 0.0
    %2032 = vmatpush1.msra.mxu0 %v1952
    %2033 = vmatprep.subr.mxu0 0.0
    %2034 = vmatpush1.msra.mxu0 %v1951
    %2035 = vmatprep.subr.mxu0 0.0
    %2036 = vmatpush2.msra.mxu0 0.0
    %2037 = vmatprep.subr.mxu0 0.0
    %2038 = vmatpush2.msra.mxu0 0.0
    %2039 = vmatprep.subr.mxu0 0.0
    %2040 = vmatpush2.msra.mxu0 0.0
    %2041 = vmatprep.subr.mxu0 0.0
    %2042 = vmatpush2.msra.mxu0 0.0
    %2043 = vmatprep.subr.mxu0 0.0
    %2044 = vmatpush2.msra.mxu0 0.0
    %2045 = vmatprep.subr.mxu0 0.0
    %2046 = vmatpush2.msra.mxu0 0.0
    %2047 = vmatprep.subr.mxu0 0.0
    %2048 = vmatpush2.msra.mxu0 0.0
    %2049 = vmatprep.subr.mxu0 0.0
    %2050 = vmatpush2.msra.mxu0 0.0
    %2051 = vmatprep.subr.mxu0 0.0
    %2052 = vmatpush2.msra.mxu0 0.0
    %2053 = vmatprep.subr.mxu0 0.0
    %2054 = vmatpush2.msra.mxu0 0.0
    %2055 = vmatprep.subr.mxu0 0.0
    %2056 = vmatpush2.msra.mxu0 0.0
    %2057 = vmatprep.subr.mxu0 0.0
    %2058 = vmatpush2.msra.mxu0 0.0
    %2059 = vmatprep.subr.mxu0 0.0
    %2060 = vmatpush2.msra.mxu0 0.0
    %2061 = vmatprep.subr.mxu0 0.0
    %2062 = vmatpush2.msra.mxu0 0.0
    %2063 = vmatprep.subr.mxu0 0.0
    %2064 = vmatpush2.msra.mxu0 0.0
    %2065 = vmatprep.subr.mxu0 0.0
    %2066 = vmatpush2.msra.mxu0 0.0
    %2067 = vmatprep.mubr.f32.mxu0 0.0
    %2068 = vmatmul.mubr.f32.gmra.mxu0 %v1956
    %v2069 = vpop.f32.mrf.mxu0
    %v2070 = vadd.f32 0.0, %v2069
    %v2071 = vpop.f32.mrf.mxu0
    %2072 = vmatprep.mubr.f32.mxu0 0.0
    %2073 = vmatmul.mubr.f32.gmra.mxu0 %v1959
    %v2074 = vpop.f32.mrf.mxu0
    %v2075 = vadd.f32 0.0, %v2074
    %v2076 = vpop.f32.mrf.mxu0
    %2077 = vmatprep.mubr.f32.mxu0 0.0
    %2078 = vmatmul.mubr.f32.gmra.mxu0 %v1962
    %v2079 = vpop.f32.mrf.mxu0
    %v2080 = vadd.f32 0.0, %v2079
    %v2081 = vpop.f32.mrf.mxu0
    %2082 = vmatprep.mubr.f32.mxu0 0.0
    %2083 = vmatmul.mubr.f32.gmra.mxu0 %v1965
    %v2084 = vpop.f32.mrf.mxu0
    %v2085 = vadd.f32 0.0, %v2084
    %v2086 = vpop.f32.mrf.mxu0
    %2087 = vmatprep.mubr.f32.mxu0 0.0
    %2088 = vmatmul.mubr.f32.gmra.mxu0 %v1968
    %v2089 = vpop.f32.mrf.mxu0
    %v2090 = vadd.f32 0.0, %v2089
    %v2091 = vpop.f32.mrf.mxu0
    %2092 = vmatprep.mubr.f32.mxu0 0.0
    %2093 = vmatmul.mubr.f32.gmra.mxu0 %v1971
    %v2094 = vpop.f32.mrf.mxu0
    %v2095 = vadd.f32 0.0, %v2094
    %v2096 = vpop.f32.mrf.mxu0
    %2097 = vmatprep.mubr.f32.mxu0 0.0
    %2098 = vmatmul.mubr.f32.gmra.mxu0 %v1974
    %v2099 = vpop.f32.mrf.mxu0
    %v2100 = vadd.f32 0.0, %v2099
    %v2101 = vpop.f32.mrf.mxu0
    %2102 = vmatprep.mubr.f32.mxu0 0.0
    %2103 = vmatmul.mubr.f32.gmra.mxu0 %v1977
    %v2104 = vpop.f32.mrf.mxu0
    %v2105 = vadd.f32 0.0, %v2104
    %v2106 = vpop.f32.mrf.mxu0
    %2107 = vmatprep.mubr.f32.mxu0 0.0
    %2108 = vmatmul.mubr.f32.gmra.mxu0 %v1980
    %v2109 = vpop.f32.mrf.mxu0
    %v2110 = vadd.f32 0.0, %v2109
    %v2111 = vpop.f32.mrf.mxu0
    %2112 = vmatprep.mubr.f32.mxu0 0.0
    %2113 = vmatmul.mubr.f32.gmra.mxu0 %v1983
    %v2114 = vpop.f32.mrf.mxu0
    %v2115 = vadd.f32 0.0, %v2114
    %v2116 = vpop.f32.mrf.mxu0
    %2117 = vmatprep.mubr.f32.mxu0 0.0
    %2118 = vmatmul.mubr.f32.gmra.mxu0 %v1986
    %v2119 = vpop.f32.mrf.mxu0
    %v2120 = vadd.f32 0.0, %v2119
    %v2121 = vpop.f32.mrf.mxu0
    %2122 = vmatprep.mubr.f32.mxu0 0.0
    %2123 = vmatmul.mubr.f32.gmra.mxu0 %v1989
    %v2124 = vpop.f32.mrf.mxu0
    %v2125 = vadd.f32 0.0, %v2124
    %v2126 = vpop.f32.mrf.mxu0
    %2127 = vmatprep.mubr.f32.mxu0 0.0
    %2128 = vmatmul.mubr.f32.gmra.mxu0 %v1992
    %v2129 = vpop.f32.mrf.mxu0
    %v2130 = vadd.f32 0.0, %v2129
    %v2131 = vpop.f32.mrf.mxu0
    %2132 = vmatprep.mubr.f32.mxu0 0.0
    %2133 = vmatmul.mubr.f32.gmra.mxu0 %v1995
    %v2134 = vpop.f32.mrf.mxu0
    %v2135 = vadd.f32 0.0, %v2134
    %v2136 = vpop.f32.mrf.mxu0
    %2137 = vmatprep.mubr.f32.mxu0 0.0
    %2138 = vmatmul.mubr.f32.gmra.mxu0 %v1998
    %v2139 = vpop.f32.mrf.mxu0
    %v2140 = vadd.f32 0.0, %v2139
    %v2141 = vpop.f32.mrf.mxu0
    %2142 = vmatprep.mubr.f32.mxu0 0.0
    %2143 = vmatmul.mubr.f32.gmra.mxu0 %v2001
    %v2144 = vpop.f32.mrf.mxu0
    %v2145 = vadd.f32 0.0, %v2144
    %v2146 = vpop.f32.mrf.mxu0
    %2147 = vdwg.mxu0
    %v2148 = vadd.f32 %v1918, %v2070
    %v2149 = vadd.f32 %v1919, %v2075
    %v2150 = vadd.f32 %v1920, %v2080
    %v2151 = vadd.f32 %v1921, %v2085
    %v2152 = vadd.f32 %v1922, %v2090
    %v2153 = vadd.f32 %v1923, %v2095
    %v2154 = vadd.f32 %v1924, %v2100
    %v2155 = vadd.f32 %v1925, %v2105
    %v2156 = vadd.f32 %v1926, %v2110
    %v2157 = vadd.f32 %v1927, %v2115
    %v2158 = vadd.f32 %v1928, %v2120
    %v2159 = vadd.f32 %v1929, %v2125
    %v2160 = vadd.f32 %v1930, %v2130
    %v2161 = vadd.f32 %v1931, %v2135
    %v2162 = vadd.f32 %v1932, %v2140
    %v2163 = vadd.f32 %v1933, %v2145
    %vm2164 = vcmask 64512
    %v2165 = vsel %vm2164, %v2148, 0.0
    %v2166 = vsel %vm2164, %v2149, 0.0
    %v2167 = vadd.f32 %v2165, %v2166
    %v2168 = vsel %vm2164, %v2150, 0.0
    %v2169 = vadd.f32 %v2167, %v2168
    %v2170 = vsel %vm2164, %v2151, 0.0
    %v2171 = vadd.f32 %v2169, %v2170
    %v2172 = vsel %vm2164, %v2152, 0.0
    %v2173 = vadd.f32 %v2171, %v2172
    %v2174 = vsel %vm2164, %v2153, 0.0
    %v2175 = vadd.f32 %v2173, %v2174
    %v2176 = vsel %vm2164, %v2154, 0.0
    %v2177 = vadd.f32 %v2175, %v2176
    %v2178 = vsel %vm2164, %v2155, 0.0
    %v2179 = vadd.f32 %v2177, %v2178
    %v2180 = vsel %vm2164, %v2156, 0.0
    %v2181 = vadd.f32 %v2179, %v2180
    %v2182 = vsel %vm2164, %v2157, 0.0
    %v2183 = vadd.f32 %v2181, %v2182
    %v2184 = vsel %vm2164, %v2158, 0.0
    %v2185 = vadd.f32 %v2183, %v2184
    %v2186 = vsel %vm2164, %v2159, 0.0
    %v2187 = vadd.f32 %v2185, %v2186
    %v2188 = vsel %vm2164, %v2160, 0.0
    %v2189 = vadd.f32 %v2187, %v2188
    %v2190 = vsel %vm2164, %v2161, 0.0
    %v2191 = vadd.f32 %v2189, %v2190
    %v2192 = vsel %vm2164, %v2162, 0.0
    %v2193 = vadd.f32 %v2191, %v2192
    %v2194 = vsel %vm2164, %v2163, 0.0
    %v2195 = vadd.f32 %v2193, %v2194
    %v2196 = vrot.slane %v2195, 4
    %v2197 = vadd.f32 %v2195, %v2196
    %v2198 = vrot.slane %v2197, 2
    %v2199 = vadd.f32 %v2197, %v2198
    %v2200 = vrot.slane %v2199, 1
    %v2201 = vadd.f32 %v2199, %v2200
    %v2202 = vmul.f32 %v2148, %v2148
    %v2203 = vmul.f32 %v2149, %v2149
    %v2204 = vmul.f32 %v2150, %v2150
    %v2205 = vmul.f32 %v2151, %v2151
    %v2206 = vmul.f32 %v2152, %v2152
    %v2207 = vmul.f32 %v2153, %v2153
    %v2208 = vmul.f32 %v2154, %v2154
    %v2209 = vmul.f32 %v2155, %v2155
    %v2210 = vmul.f32 %v2156, %v2156
    %v2211 = vmul.f32 %v2157, %v2157
    %v2212 = vmul.f32 %v2158, %v2158
    %v2213 = vmul.f32 %v2159, %v2159
    %v2214 = vmul.f32 %v2160, %v2160
    %v2215 = vmul.f32 %v2161, %v2161
    %v2216 = vmul.f32 %v2162, %v2162
    %v2217 = vmul.f32 %v2163, %v2163
    %v2218 = vsel %vm2164, %v2202, 0.0
    %v2219 = vsel %vm2164, %v2203, 0.0
    %v2220 = vadd.f32 %v2218, %v2219
    %v2221 = vsel %vm2164, %v2204, 0.0
    %v2222 = vadd.f32 %v2220, %v2221
    %v2223 = vsel %vm2164, %v2205, 0.0
    %v2224 = vadd.f32 %v2222, %v2223
    %v2225 = vsel %vm2164, %v2206, 0.0
    %v2226 = vadd.f32 %v2224, %v2225
    %v2227 = vsel %vm2164, %v2207, 0.0
    %v2228 = vadd.f32 %v2226, %v2227
    %v2229 = vsel %vm2164, %v2208, 0.0
    %v2230 = vadd.f32 %v2228, %v2229
    %v2231 = vsel %vm2164, %v2209, 0.0
    %v2232 = vadd.f32 %v2230, %v2231
    %v2233 = vsel %vm2164, %v2210, 0.0
    %v2234 = vadd.f32 %v2232, %v2233
    %v2235 = vsel %vm2164, %v2211, 0.0
    %v2236 = vadd.f32 %v2234, %v2235
    %v2237 = vsel %vm2164, %v2212, 0.0
    %v2238 = vadd.f32 %v2236, %v2237
    %v2239 = vsel %vm2164, %v2213, 0.0
    %v2240 = vadd.f32 %v2238, %v2239
    %v2241 = vsel %vm2164, %v2214, 0.0
    %v2242 = vadd.f32 %v2240, %v2241
    %v2243 = vsel %vm2164, %v2215, 0.0
    %v2244 = vadd.f32 %v2242, %v2243
    %v2245 = vsel %vm2164, %v2216, 0.0
    %v2246 = vadd.f32 %v2244, %v2245
    %v2247 = vsel %vm2164, %v2217, 0.0
    %v2248 = vadd.f32 %v2246, %v2247
    %v2249 = vrot.slane %v2248, 4
    %v2250 = vadd.f32 %v2248, %v2249
    %v2251 = vrot.slane %v2250, 2
    %v2252 = vadd.f32 %v2250, %v2251
    %v2253 = vrot.slane %v2252, 1
    %v2254 = vadd.f32 %v2252, %v2253
    %v2255 = vrcp.pop 128.0
    %v2256 = vmul.f32 %v2201, %v2255
    %v2257 = vmul.f32 %v2254, %v2255
    %v2258 = vmul.f32 %v2256, %v2256
    %v2259 = vsub.f32 %v2257, %v2258
    %v2260 = vmax.f32 %v2259, 0.0
    %v2261 = vld [vmem:[%s2] sm:$0x1]
    %v2262 = vadd.f32 %v2260, 1e-05
    %v2263 = vrsqrt.pop %v2262
    %v2264 = vmul.f32 %v2261, %v2263
    %v2265 = vld [vmem:[%s3] sm:$0x1]
    %v2266 = vmul.f32 %v2256, %v2264
    %v2267 = vsub.f32 %v2265, %v2266
    %v2269 = vlaneseq
    %v2270 = vshrl.u32 %v2269, 7
    %v2271 = vsub.s32 0, %v2270
    %v2272 = vrot.slane %v2264, %v2271
    %v2274 = vmul.f32 %v2148, %v2272
    %v2275 = vmul.f32 %v2149, %v2272
    %v2276 = vmul.f32 %v2150, %v2272
    %v2277 = vmul.f32 %v2151, %v2272
    %v2278 = vmul.f32 %v2152, %v2272
    %v2279 = vmul.f32 %v2153, %v2272
    %v2280 = vmul.f32 %v2154, %v2272
    %v2281 = vmul.f32 %v2155, %v2272
    %v2282 = vmul.f32 %v2156, %v2272
    %v2283 = vmul.f32 %v2157, %v2272
    %v2284 = vmul.f32 %v2158, %v2272
    %v2285 = vmul.f32 %v2159, %v2272
    %v2286 = vmul.f32 %v2160, %v2272
    %v2287 = vmul.f32 %v2161, %v2272
    %v2288 = vmul.f32 %v2162, %v2272
    %v2289 = vmul.f32 %v2163, %v2272
    %v2291 = vlaneseq
    %v2292 = vshrl.u32 %v2291, 7
    %v2293 = vsub.s32 0, %v2292
    %v2294 = vrot.slane %v2267, %v2293
    %v2296 = vadd.f32 %v2274, %v2294
    %v2297 = vadd.f32 %v2275, %v2294
    %v2298 = vadd.f32 %v2276, %v2294
    %v2299 = vadd.f32 %v2277, %v2294
    %v2300 = vadd.f32 %v2278, %v2294
    %v2301 = vadd.f32 %v2279, %v2294
    %v2302 = vadd.f32 %v2280, %v2294
    %v2303 = vadd.f32 %v2281, %v2294
    %v2304 = vadd.f32 %v2282, %v2294
    %v2305 = vadd.f32 %v2283, %v2294
    %v2306 = vadd.f32 %v2284, %v2294
    %v2307 = vadd.f32 %v2285, %v2294
    %v2308 = vadd.f32 %v2286, %v2294
    %v2309 = vadd.f32 %v2287, %v2294
    %v2310 = vadd.f32 %v2288, %v2294
    %v2311 = vadd.f32 %v2289, %v2294
    %v2312 = vmax.f32 %v2296, 0.0
    %v2313 = vmax.f32 %v2297, 0.0
    %v2314 = vmax.f32 %v2298, 0.0
    %v2315 = vmax.f32 %v2299, 0.0
    %v2316 = vmax.f32 %v2300, 0.0
    %v2317 = vmax.f32 %v2301, 0.0
    %v2318 = vmax.f32 %v2302, 0.0
    %v2319 = vmax.f32 %v2303, 0.0
    %v2320 = vmax.f32 %v2304, 0.0
    %v2321 = vmax.f32 %v2305, 0.0
    %v2322 = vmax.f32 %v2306, 0.0
    %v2323 = vmax.f32 %v2307, 0.0
    %v2324 = vmax.f32 %v2308, 0.0
    %v2325 = vmax.f32 %v2309, 0.0
    %v2326 = vmax.f32 %v2310, 0.0
    %v2327 = vmax.f32 %v2311, 0.0
    %s2328 = scalar_lea.vmem [#allocation3], 128
    %2329 = vst.msk [vmem:[%s2328] sm:$0xff] %vm2164, 0.0
    %vm2330 = vcmask 57344
    %2331 = vst.msk [vmem:[%s2328 + $0x8] sm:$0x1] %vm2330, 0.0
    %2332 = vst.msk [vmem:[%s2328 + $0x90] sm:$0xff] %vm2164, 0.0
    %2333 = vst.msk [vmem:[%s2328 + $0x98] sm:$0x1] %vm2330, 0.0
    %2334 = vst.msk [vmem:[#allocation3 + $0x8] sm:$0x1] %vm2330, 0.0
    %2335 = vst.msk [vmem:[#allocation3 + $0x18] sm:$0x1] %vm2330, 0.0
    %2336 = vst.msk [vmem:[#allocation3 + $0x28] sm:$0x1] %vm2330, 0.0
    %2337 = vst.msk [vmem:[#allocation3 + $0x38] sm:$0x1] %vm2330, 0.0
    %2338 = vst.msk [vmem:[#allocation3 + $0x48] sm:$0x1] %vm2330, 0.0
    %2339 = vst.msk [vmem:[#allocation3 + $0x58] sm:$0x1] %vm2330, 0.0
    %2340 = vst.msk [vmem:[#allocation3 + $0x68] sm:$0x1] %vm2330, 0.0
    %2341 = vst.msk [vmem:[#allocation3 + $0x78] sm:$0x1] %vm2330, 0.0
    %2342 = vst.msk [vmem:[#allocation3 + $0x98] sm:$0x1] %vm2330, 0.0
    %2343 = vst.msk [vmem:[#allocation3 + $0xa8] sm:$0x1] %vm2330, 0.0
    %2344 = vst.msk [vmem:[#allocation3 + $0xb8] sm:$0x1] %vm2330, 0.0
    %2345 = vst.msk [vmem:[#allocation3 + $0xc8] sm:$0x1] %vm2330, 0.0
    %2346 = vst.msk [vmem:[#allocation3 + $0xd8] sm:$0x1] %vm2330, 0.0
    %2347 = vst.msk [vmem:[#allocation3 + $0xe8] sm:$0x1] %vm2330, 0.0
    %2348 = vst.msk [vmem:[#allocation3 + $0xf8] sm:$0x1] %vm2330, 0.0
    %2349 = vst.msk [vmem:[#allocation3 + $0x108] sm:$0x1] %vm2330, 0.0
    %2350 = vst.msk [vmem:[#allocation3] sm:$0xff] %vm2164, %v2312
    %2351 = vst.msk [vmem:[#allocation3 + $0x10] sm:$0xff] %vm2164, %v2313
    %2352 = vst.msk [vmem:[#allocation3 + $0x20] sm:$0xff] %vm2164, %v2314
    %2353 = vst.msk [vmem:[#allocation3 + $0x30] sm:$0xff] %vm2164, %v2315
    %2354 = vst.msk [vmem:[#allocation3 + $0x40] sm:$0xff] %vm2164, %v2316
    %2355 = vst.msk [vmem:[#allocation3 + $0x50] sm:$0xff] %vm2164, %v2317
    %2356 = vst.msk [vmem:[#allocation3 + $0x60] sm:$0xff] %vm2164, %v2318
    %2357 = vst.msk [vmem:[#allocation3 + $0x70] sm:$0xff] %vm2164, %v2319
    %2358 = vst.msk [vmem:[#allocation3 + $0x90] sm:$0xff] %vm2164, %v2320
    %2359 = vst.msk [vmem:[#allocation3 + $0xa0] sm:$0xff] %vm2164, %v2321
    %2360 = vst.msk [vmem:[#allocation3 + $0xb0] sm:$0xff] %vm2164, %v2322
    %2361 = vst.msk [vmem:[#allocation3 + $0xc0] sm:$0xff] %vm2164, %v2323
    %2362 = vst.msk [vmem:[#allocation3 + $0xd0] sm:$0xff] %vm2164, %v2324
    %2363 = vst.msk [vmem:[#allocation3 + $0xe0] sm:$0xff] %vm2164, %v2325
    %2364 = vst.msk [vmem:[#allocation3 + $0xf0] sm:$0xff] %vm2164, %v2326
    %2365 = vst.msk [vmem:[#allocation3 + $0x100] sm:$0xff] %vm2164, %v2327
    %v2366 = vld [vmem:[#allocation3] sm:$0xff]
    %v2367 = vld [vmem:[#allocation3 + $0x10] sm:$0xff]
    %v2368 = vld [vmem:[#allocation3 + $0x20] sm:$0xff]
    %v2369 = vld [vmem:[#allocation3 + $0x30] sm:$0xff]
    %v2370 = vld [vmem:[#allocation3 + $0x40] sm:$0xff]
    %v2371 = vld [vmem:[#allocation3 + $0x50] sm:$0xff]
    %v2372 = vld [vmem:[#allocation3 + $0x60] sm:$0xff]
    %v2373 = vld [vmem:[#allocation3 + $0x70] sm:$0xff]
    %v2374 = vld [vmem:[#allocation3 + $0x90] sm:$0xff]
    %v2375 = vld [vmem:[#allocation3 + $0xa0] sm:$0xff]
    %v2376 = vld [vmem:[#allocation3 + $0xb0] sm:$0xff]
    %v2377 = vld [vmem:[#allocation3 + $0xc0] sm:$0xff]
    %v2378 = vld [vmem:[#allocation3 + $0xd0] sm:$0xff]
    %v2379 = vld [vmem:[#allocation3 + $0xe0] sm:$0xff]
    %v2380 = vld [vmem:[#allocation3 + $0xf0] sm:$0xff]
    %v2381 = vld [vmem:[#allocation3 + $0x100] sm:$0xff]
    %v2382 = vld [vmem:[#allocation3 + $0x1] sm:$0xff]
    %v2383 = vld [vmem:[#allocation3 + $0x11] sm:$0xff]
    %v2384 = vld [vmem:[#allocation3 + $0x21] sm:$0xff]
    %v2385 = vld [vmem:[#allocation3 + $0x31] sm:$0xff]
    %v2386 = vld [vmem:[#allocation3 + $0x41] sm:$0xff]
    %v2387 = vld [vmem:[#allocation3 + $0x51] sm:$0xff]
    %v2388 = vld [vmem:[#allocation3 + $0x61] sm:$0xff]
    %v2389 = vld [vmem:[#allocation3 + $0x71] sm:$0xff]
    %v2390 = vld [vmem:[#allocation3 + $0x91] sm:$0xff]
    %v2391 = vld [vmem:[#allocation3 + $0xa1] sm:$0xff]
    %v2392 = vld [vmem:[#allocation3 + $0xb1] sm:$0xff]
    %v2393 = vld [vmem:[#allocation3 + $0xc1] sm:$0xff]
    %v2394 = vld [vmem:[#allocation3 + $0xd1] sm:$0xff]
    %v2395 = vld [vmem:[#allocation3 + $0xe1] sm:$0xff]
    %v2396 = vld [vmem:[#allocation3 + $0xf1] sm:$0xff]
    %v2397 = vld [vmem:[#allocation3 + $0x101] sm:$0xff]
    %s2398 = scalar_lea.vmem [#allocation3], 16
    %v2399 = vld [vmem:[%s2398] sm:$0xff]
    %v2400 = vld [vmem:[%s2398 + $0x10] sm:$0xff]
    %v2401 = vld [vmem:[%s2398 + $0x20] sm:$0xff]
    %v2402 = vld [vmem:[%s2398 + $0x30] sm:$0xff]
    %v2403 = vld [vmem:[%s2398 + $0x40] sm:$0xff]
    %v2404 = vld [vmem:[%s2398 + $0x50] sm:$0xff]
    %v2405 = vld [vmem:[%s2398 + $0x60] sm:$0xff]
    %v2406 = vld [vmem:[%s2398 + $0x70] sm:$0xff]
    %v2407 = vld [vmem:[%s2398 + $0x90] sm:$0xff]
    %v2408 = vld [vmem:[%s2398 + $0xa0] sm:$0xff]
    %v2409 = vld [vmem:[%s2398 + $0xb0] sm:$0xff]
    %v2410 = vld [vmem:[%s2398 + $0xc0] sm:$0xff]
    %v2411 = vld [vmem:[%s2398 + $0xd0] sm:$0xff]
    %v2412 = vld [vmem:[%s2398 + $0xe0] sm:$0xff]
    %v2413 = vld [vmem:[%s2398 + $0xf0] sm:$0xff]
    %v2414 = vld [vmem:[%s2398 + $0x100] sm:$0xff]
    %v2415 = vld [vmem:[%s2398 + $0x1] sm:$0xff]
    %v2416 = vld [vmem:[%s2398 + $0x11] sm:$0xff]
    %v2417 = vld [vmem:[%s2398 + $0x21] sm:$0xff]
    %v2418 = vld [vmem:[%s2398 + $0x31] sm:$0xff]
    %v2419 = vld [vmem:[%s2398 + $0x41] sm:$0xff]
    %v2420 = vld [vmem:[%s2398 + $0x51] sm:$0xff]
    %v2421 = vld [vmem:[%s2398 + $0x61] sm:$0xff]
    %v2422 = vld [vmem:[%s2398 + $0x71] sm:$0xff]
    %v2423 = vld [vmem:[%s2398 + $0x91] sm:$0xff]
    %v2424 = vld [vmem:[%s2398 + $0xa1] sm:$0xff]
    %v2425 = vld [vmem:[%s2398 + $0xb1] sm:$0xff]
    %v2426 = vld [vmem:[%s2398 + $0xc1] sm:$0xff]
    %v2427 = vld [vmem:[%s2398 + $0xd1] sm:$0xff]
    %v2428 = vld [vmem:[%s2398 + $0xe1] sm:$0xff]
    %v2429 = vld [vmem:[%s2398 + $0xf1] sm:$0xff]
    %v2430 = vld [vmem:[%s2398 + $0x101] sm:$0xff]
    %2447 = vrot.lane.b32.xlu0 %v2382, 8
    %v2448 = vpop.permute.xlu0 %2447
    %2449 = vrot.lane.b32.xlu0 %v2383, 8
    %v2450 = vpop.permute.xlu0 %2449
    %2451 = vrot.lane.b32.xlu0 %v2384, 8
    %v2452 = vpop.permute.xlu0 %2451
    %2453 = vrot.lane.b32.xlu0 %v2385, 8
    %v2454 = vpop.permute.xlu0 %2453
    %2455 = vrot.lane.b32.xlu0 %v2386, 8
    %v2456 = vpop.permute.xlu0 %2455
    %2457 = vrot.lane.b32.xlu0 %v2387, 8
    %v2458 = vpop.permute.xlu0 %2457
    %2459 = vrot.lane.b32.xlu0 %v2388, 8
    %v2460 = vpop.permute.xlu0 %2459
    %2461 = vrot.lane.b32.xlu0 %v2389, 8
    %v2462 = vpop.permute.xlu0 %2461
    %2463 = vrot.lane.b32.xlu0 %v2390, 8
    %v2464 = vpop.permute.xlu0 %2463
    %2465 = vrot.lane.b32.xlu0 %v2391, 8
    %v2466 = vpop.permute.xlu0 %2465
    %2467 = vrot.lane.b32.xlu0 %v2392, 8
    %v2468 = vpop.permute.xlu0 %2467
    %2469 = vrot.lane.b32.xlu0 %v2393, 8
    %v2470 = vpop.permute.xlu0 %2469
    %2471 = vrot.lane.b32.xlu0 %v2394, 8
    %v2472 = vpop.permute.xlu0 %2471
    %2473 = vrot.lane.b32.xlu0 %v2395, 8
    %v2474 = vpop.permute.xlu0 %2473
    %2475 = vrot.lane.b32.xlu0 %v2396, 8
    %v2476 = vpop.permute.xlu0 %2475
    %2477 = vrot.lane.b32.xlu0 %v2397, 8
    %v2478 = vpop.permute.xlu0 %2477
    %2511 = vrot.lane.b32.xlu0 %v2399, 16
    %v2512 = vpop.permute.xlu0 %2511
    %2513 = vrot.lane.b32.xlu0 %v2400, 16
    %v2514 = vpop.permute.xlu0 %2513
    %2515 = vrot.lane.b32.xlu0 %v2401, 16
    %v2516 = vpop.permute.xlu0 %2515
    %2517 = vrot.lane.b32.xlu0 %v2402, 16
    %v2518 = vpop.permute.xlu0 %2517
    %2519 = vrot.lane.b32.xlu0 %v2403, 16
    %v2520 = vpop.permute.xlu0 %2519
    %2521 = vrot.lane.b32.xlu0 %v2404, 16
    %v2522 = vpop.permute.xlu0 %2521
    %2523 = vrot.lane.b32.xlu0 %v2405, 16
    %v2524 = vpop.permute.xlu0 %2523
    %2525 = vrot.lane.b32.xlu0 %v2406, 16
    %v2526 = vpop.permute.xlu0 %2525
    %2527 = vrot.lane.b32.xlu0 %v2407, 16
    %v2528 = vpop.permute.xlu0 %2527
    %2529 = vrot.lane.b32.xlu0 %v2408, 16
    %v2530 = vpop.permute.xlu0 %2529
    %2531 = vrot.lane.b32.xlu0 %v2409, 16
    %v2532 = vpop.permute.xlu0 %2531
    %2533 = vrot.lane.b32.xlu0 %v2410, 16
    %v2534 = vpop.permute.xlu0 %2533
    %2535 = vrot.lane.b32.xlu0 %v2411, 16
    %v2536 = vpop.permute.xlu0 %2535
    %2537 = vrot.lane.b32.xlu0 %v2412, 16
    %v2538 = vpop.permute.xlu0 %2537
    %2539 = vrot.lane.b32.xlu0 %v2413, 16
    %v2540 = vpop.permute.xlu0 %2539
    %2541 = vrot.lane.b32.xlu0 %v2414, 16
    %v2542 = vpop.permute.xlu0 %2541
    %2575 = vrot.lane.b32.xlu0 %v2415, 24
    %v2576 = vpop.permute.xlu0 %2575
    %2577 = vrot.lane.b32.xlu0 %v2416, 24
    %v2578 = vpop.permute.xlu0 %2577
    %2579 = vrot.lane.b32.xlu0 %v2417, 24
    %v2580 = vpop.permute.xlu0 %2579
    %2581 = vrot.lane.b32.xlu0 %v2418, 24
    %v2582 = vpop.permute.xlu0 %2581
    %2583 = vrot.lane.b32.xlu0 %v2419, 24
    %v2584 = vpop.permute.xlu0 %2583
    %2585 = vrot.lane.b32.xlu0 %v2420, 24
    %v2586 = vpop.permute.xlu0 %2585
    %2587 = vrot.lane.b32.xlu0 %v2421, 24
    %v2588 = vpop.permute.xlu0 %2587
    %2589 = vrot.lane.b32.xlu0 %v2422, 24
    %v2590 = vpop.permute.xlu0 %2589
    %2591 = vrot.lane.b32.xlu0 %v2423, 24
    %v2592 = vpop.permute.xlu0 %2591
    %2593 = vrot.lane.b32.xlu0 %v2424, 24
    %v2594 = vpop.permute.xlu0 %2593
    %2595 = vrot.lane.b32.xlu0 %v2425, 24
    %v2596 = vpop.permute.xlu0 %2595
    %2597 = vrot.lane.b32.xlu0 %v2426, 24
    %v2598 = vpop.permute.xlu0 %2597
    %2599 = vrot.lane.b32.xlu0 %v2427, 24
    %v2600 = vpop.permute.xlu0 %2599
    %2601 = vrot.lane.b32.xlu0 %v2428, 24
    %v2602 = vpop.permute.xlu0 %2601
    %2603 = vrot.lane.b32.xlu0 %v2429, 24
    %v2604 = vpop.permute.xlu0 %2603
    %2605 = vrot.lane.b32.xlu0 %v2430, 24
    %v2606 = vpop.permute.xlu0 %2605
    %v2623 = vsel %vm2164, %v2366, %v2448
    %v2624 = vsel %vm2164, %v2367, %v2450
    %v2625 = vsel %vm2164, %v2368, %v2452
    %v2626 = vsel %vm2164, %v2369, %v2454
    %v2627 = vsel %vm2164, %v2370, %v2456
    %v2628 = vsel %vm2164, %v2371, %v2458
    %v2629 = vsel %vm2164, %v2372, %v2460
    %v2630 = vsel %vm2164, %v2373, %v2462
    %v2631 = vsel %vm2164, %v2374, %v2464
    %v2632 = vsel %vm2164, %v2375, %v2466
    %v2633 = vsel %vm2164, %v2376, %v2468
    %v2634 = vsel %vm2164, %v2377, %v2470
    %v2635 = vsel %vm2164, %v2378, %v2472
    %v2636 = vsel %vm2164, %v2379, %v2474
    %v2637 = vsel %vm2164, %v2380, %v2476
    %v2638 = vsel %vm2164, %v2381, %v2478
    %vm2639 = vcmask 130048
    %v2640 = vsel %vm2639, %v2623, %v2512
    %v2641 = vsel %vm2639, %v2624, %v2514
    %v2642 = vsel %vm2639, %v2625, %v2516
    %v2643 = vsel %vm2639, %v2626, %v2518
    %v2644 = vsel %vm2639, %v2627, %v2520
    %v2645 = vsel %vm2639, %v2628, %v2522
    %v2646 = vsel %vm2639, %v2629, %v2524
    %v2647 = vsel %vm2639, %v2630, %v2526
    %v2648 = vsel %vm2639, %v2631, %v2528
    %v2649 = vsel %vm2639, %v2632, %v2530
    %v2650 = vsel %vm2639, %v2633, %v2532
    %v2651 = vsel %vm2639, %v2634, %v2534
    %v2652 = vsel %vm2639, %v2635, %v2536
    %v2653 = vsel %vm2639, %v2636, %v2538
    %v2654 = vsel %vm2639, %v2637, %v2540
    %v2655 = vsel %vm2639, %v2638, %v2542
    %vm2656 = vcmask 195584
    %v2657 = vsel %vm2656, %v2640, %v2576
    %v2658 = vsel %vm2656, %v2641, %v2578
    %v2659 = vsel %vm2656, %v2642, %v2580
    %v2660 = vsel %vm2656, %v2643, %v2582
    %v2661 = vsel %vm2656, %v2644, %v2584
    %v2662 = vsel %vm2656, %v2645, %v2586
    %v2663 = vsel %vm2656, %v2646, %v2588
    %v2664 = vsel %vm2656, %v2647, %v2590
    %v2665 = vsel %vm2656, %v2648, %v2592
    %v2666 = vsel %vm2656, %v2649, %v2594
    %v2667 = vsel %vm2656, %v2650, %v2596
    %v2668 = vsel %vm2656, %v2651, %v2598
    %v2669 = vsel %vm2656, %v2652, %v2600
    %v2670 = vsel %vm2656, %v2653, %v2602
    %v2671 = vsel %vm2656, %v2654, %v2604
    %v2672 = vsel %vm2656, %v2655, %v2606
    %v2673 = vld [vmem:[%s4] sm:$0xff]
    %v2674 = vld [vmem:[%s4 + $0x8] sm:$0xff]
    %v2675 = vld [vmem:[%s4 + $0x10] sm:$0xff]
    %v2676 = vld [vmem:[%s4 + $0x18] sm:$0xff]
    %v2678 = vsel %vm49, %v2657, 0
    %v2681 = vsel %vm49, %v2658, 0
    %v2684 = vsel %vm49, %v2659, 0
    %v2687 = vsel %vm49, %v2660, 0
    %v2690 = vsel %vm49, %v2661, 0
    %v2693 = vsel %vm49, %v2662, 0
    %v2696 = vsel %vm49, %v2663, 0
    %v2699 = vsel %vm49, %v2664, 0
    %v2702 = vsel %vm49, %v2665, 0
    %v2705 = vsel %vm49, %v2666, 0
    %v2708 = vsel %vm49, %v2667, 0
    %v2711 = vsel %vm49, %v2668, 0
    %v2714 = vsel %vm49, %v2669, 0
    %v2717 = vsel %vm49, %v2670, 0
    %v2720 = vsel %vm49, %v2671, 0
    %v2723 = vsel %vm49, %v2672, 0
    %2725 = vmatprep.subr.mxu0 0.0
    %2726 = vmatpush1.msra.mxu0 0.0
    %2727 = vmatprep.subr.mxu0 0.0
    %2728 = vmatpush1.msra.mxu0 0.0
    %2729 = vmatprep.subr.mxu0 0.0
    %2730 = vmatpush1.msra.mxu0 0.0
    %2731 = vmatprep.subr.mxu0 0.0
    %2732 = vmatpush1.msra.mxu0 0.0
    %2733 = vmatprep.subr.mxu0 0.0
    %2734 = vmatpush1.msra.mxu0 0.0
    %2735 = vmatprep.subr.mxu0 0.0
    %2736 = vmatpush1.msra.mxu0 0.0
    %2737 = vmatprep.subr.mxu0 0.0
    %2738 = vmatpush1.msra.mxu0 0.0
    %2739 = vmatprep.subr.mxu0 0.0
    %2740 = vmatpush1.msra.mxu0 0.0
    %2741 = vmatprep.subr.mxu0 0.0
    %2742 = vmatpush1.msra.mxu0 0.0
    %2743 = vmatprep.subr.mxu0 0.0
    %2744 = vmatpush1.msra.mxu0 0.0
    %2745 = vmatprep.subr.mxu0 0.0
    %2746 = vmatpush1.msra.mxu0 0.0
    %2747 = vmatprep.subr.mxu0 0.0
    %2748 = vmatpush1.msra.mxu0 0.0
    %2749 = vmatprep.subr.mxu0 0.0
    %2750 = vmatpush1.msra.mxu0 %v2676
    %2751 = vmatprep.subr.mxu0 0.0
    %2752 = vmatpush1.msra.mxu0 %v2675
    %2753 = vmatprep.subr.mxu0 0.0
    %2754 = vmatpush1.msra.mxu0 %v2674
    %2755 = vmatprep.subr.mxu0 0.0
    %2756 = vmatpush1.msra.mxu0 %v2673
    %2757 = vmatprep.subr.mxu0 0.0
    %2758 = vmatpush2.msra.mxu0 0.0
    %2759 = vmatprep.subr.mxu0 0.0
    %2760 = vmatpush2.msra.mxu0 0.0
    %2761 = vmatprep.subr.mxu0 0.0
    %2762 = vmatpush2.msra.mxu0 0.0
    %2763 = vmatprep.subr.mxu0 0.0
    %2764 = vmatpush2.msra.mxu0 0.0
    %2765 = vmatprep.subr.mxu0 0.0
    %2766 = vmatpush2.msra.mxu0 0.0
    %2767 = vmatprep.subr.mxu0 0.0
    %2768 = vmatpush2.msra.mxu0 0.0
    %2769 = vmatprep.subr.mxu0 0.0
    %2770 = vmatpush2.msra.mxu0 0.0
    %2771 = vmatprep.subr.mxu0 0.0
    %2772 = vmatpush2.msra.mxu0 0.0
    %2773 = vmatprep.subr.mxu0 0.0
    %2774 = vmatpush2.msra.mxu0 0.0
    %2775 = vmatprep.subr.mxu0 0.0
    %2776 = vmatpush2.msra.mxu0 0.0
    %2777 = vmatprep.subr.mxu0 0.0
    %2778 = vmatpush2.msra.mxu0 0.0
    %2779 = vmatprep.subr.mxu0 0.0
    %2780 = vmatpush2.msra.mxu0 0.0
    %2781 = vmatprep.subr.mxu0 0.0
    %2782 = vmatpush2.msra.mxu0 0.0
    %2783 = vmatprep.subr.mxu0 0.0
    %2784 = vmatpush2.msra.mxu0 0.0
    %2785 = vmatprep.subr.mxu0 0.0
    %2786 = vmatpush2.msra.mxu0 0.0
    %2787 = vmatprep.subr.mxu0 0.0
    %2788 = vmatpush2.msra.mxu0 0.0
    %2789 = vmatprep.mubr.f32.mxu0 0.0
    %2790 = vmatmul.mubr.f32.gmra.mxu0 %v2678
    %v2791 = vpop.f32.mrf.mxu0
    %v2792 = vadd.f32 0.0, %v2791
    %v2793 = vpop.f32.mrf.mxu0
    %2794 = vmatprep.mubr.f32.mxu0 0.0
    %2795 = vmatmul.mubr.f32.gmra.mxu0 %v2681
    %v2796 = vpop.f32.mrf.mxu0
    %v2797 = vadd.f32 0.0, %v2796
    %v2798 = vpop.f32.mrf.mxu0
    %2799 = vmatprep.mubr.f32.mxu0 0.0
    %2800 = vmatmul.mubr.f32.gmra.mxu0 %v2684
    %v2801 = vpop.f32.mrf.mxu0
    %v2802 = vadd.f32 0.0, %v2801
    %v2803 = vpop.f32.mrf.mxu0
    %2804 = vmatprep.mubr.f32.mxu0 0.0
    %2805 = vmatmul.mubr.f32.gmra.mxu0 %v2687
    %v2806 = vpop.f32.mrf.mxu0
    %v2807 = vadd.f32 0.0, %v2806
    %v2808 = vpop.f32.mrf.mxu0
    %2809 = vmatprep.mubr.f32.mxu0 0.0
    %2810 = vmatmul.mubr.f32.gmra.mxu0 %v2690
    %v2811 = vpop.f32.mrf.mxu0
    %v2812 = vadd.f32 0.0, %v2811
    %v2813 = vpop.f32.mrf.mxu0
    %2814 = vmatprep.mubr.f32.mxu0 0.0
    %2815 = vmatmul.mubr.f32.gmra.mxu0 %v2693
    %v2816 = vpop.f32.mrf.mxu0
    %v2817 = vadd.f32 0.0, %v2816
    %v2818 = vpop.f32.mrf.mxu0
    %2819 = vmatprep.mubr.f32.mxu0 0.0
    %2820 = vmatmul.mubr.f32.gmra.mxu0 %v2696
    %v2821 = vpop.f32.mrf.mxu0
    %v2822 = vadd.f32 0.0, %v2821
    %v2823 = vpop.f32.mrf.mxu0
    %2824 = vmatprep.mubr.f32.mxu0 0.0
    %2825 = vmatmul.mubr.f32.gmra.mxu0 %v2699
    %v2826 = vpop.f32.mrf.mxu0
    %v2827 = vadd.f32 0.0, %v2826
    %v2828 = vpop.f32.mrf.mxu0
    %2829 = vmatprep.mubr.f32.mxu0 0.0
    %2830 = vmatmul.mubr.f32.gmra.mxu0 %v2702
    %v2831 = vpop.f32.mrf.mxu0
    %v2832 = vadd.f32 0.0, %v2831
    %v2833 = vpop.f32.mrf.mxu0
    %2834 = vmatprep.mubr.f32.mxu0 0.0
    %2835 = vmatmul.mubr.f32.gmra.mxu0 %v2705
    %v2836 = vpop.f32.mrf.mxu0
    %v2837 = vadd.f32 0.0, %v2836
    %v2838 = vpop.f32.mrf.mxu0
    %2839 = vmatprep.mubr.f32.mxu0 0.0
    %2840 = vmatmul.mubr.f32.gmra.mxu0 %v2708
    %v2841 = vpop.f32.mrf.mxu0
    %v2842 = vadd.f32 0.0, %v2841
    %v2843 = vpop.f32.mrf.mxu0
    %2844 = vmatprep.mubr.f32.mxu0 0.0
    %2845 = vmatmul.mubr.f32.gmra.mxu0 %v2711
    %v2846 = vpop.f32.mrf.mxu0
    %v2847 = vadd.f32 0.0, %v2846
    %v2848 = vpop.f32.mrf.mxu0
    %2849 = vmatprep.mubr.f32.mxu0 0.0
    %2850 = vmatmul.mubr.f32.gmra.mxu0 %v2714
    %v2851 = vpop.f32.mrf.mxu0
    %v2852 = vadd.f32 0.0, %v2851
    %v2853 = vpop.f32.mrf.mxu0
    %2854 = vmatprep.mubr.f32.mxu0 0.0
    %2855 = vmatmul.mubr.f32.gmra.mxu0 %v2717
    %v2856 = vpop.f32.mrf.mxu0
    %v2857 = vadd.f32 0.0, %v2856
    %v2858 = vpop.f32.mrf.mxu0
    %2859 = vmatprep.mubr.f32.mxu0 0.0
    %2860 = vmatmul.mubr.f32.gmra.mxu0 %v2720
    %v2861 = vpop.f32.mrf.mxu0
    %v2862 = vadd.f32 0.0, %v2861
    %v2863 = vpop.f32.mrf.mxu0
    %2864 = vmatprep.mubr.f32.mxu0 0.0
    %2865 = vmatmul.mubr.f32.gmra.mxu0 %v2723
    %v2866 = vpop.f32.mrf.mxu0
    %v2867 = vadd.f32 0.0, %v2866
    %v2868 = vpop.f32.mrf.mxu0
    %2869 = vdwg.mxu0
    %v2870 = vsel %vm49, %v2792, 0.0
    %v2871 = vsel %vm49, %v2797, 0.0
    %v2872 = vadd.f32 %v2870, %v2871
    %v2873 = vsel %vm49, %v2802, 0.0
    %v2874 = vadd.f32 %v2872, %v2873
    %v2875 = vsel %vm49, %v2807, 0.0
    %v2876 = vadd.f32 %v2874, %v2875
    %v2877 = vsel %vm49, %v2812, 0.0
    %v2878 = vadd.f32 %v2876, %v2877
    %v2879 = vsel %vm49, %v2817, 0.0
    %v2880 = vadd.f32 %v2878, %v2879
    %v2881 = vsel %vm49, %v2822, 0.0
    %v2882 = vadd.f32 %v2880, %v2881
    %v2883 = vsel %vm49, %v2827, 0.0
    %v2884 = vadd.f32 %v2882, %v2883
    %v2885 = vsel %vm49, %v2832, 0.0
    %v2886 = vadd.f32 %v2884, %v2885
    %v2887 = vsel %vm49, %v2837, 0.0
    %v2888 = vadd.f32 %v2886, %v2887
    %v2889 = vsel %vm49, %v2842, 0.0
    %v2890 = vadd.f32 %v2888, %v2889
    %v2891 = vsel %vm49, %v2847, 0.0
    %v2892 = vadd.f32 %v2890, %v2891
    %v2893 = vsel %vm49, %v2852, 0.0
    %v2894 = vadd.f32 %v2892, %v2893
    %v2895 = vsel %vm49, %v2857, 0.0
    %v2896 = vadd.f32 %v2894, %v2895
    %v2897 = vsel %vm49, %v2862, 0.0
    %v2898 = vadd.f32 %v2896, %v2897
    %v2899 = vsel %vm49, %v2867, 0.0
    %v2900 = vadd.f32 %v2898, %v2899
    %v2901 = vrot.slane %v2900, 4
    %v2902 = vadd.f32 %v2900, %v2901
    %v2903 = vrot.slane %v2902, 2
    %v2904 = vadd.f32 %v2902, %v2903
    %v2905 = vrot.slane %v2904, 1
    %v2906 = vadd.f32 %v2904, %v2905
    %v2907 = vmul.f32 %v2792, %v2792
    %v2908 = vmul.f32 %v2797, %v2797
    %v2909 = vmul.f32 %v2802, %v2802
    %v2910 = vmul.f32 %v2807, %v2807
    %v2911 = vmul.f32 %v2812, %v2812
    %v2912 = vmul.f32 %v2817, %v2817
    %v2913 = vmul.f32 %v2822, %v2822
    %v2914 = vmul.f32 %v2827, %v2827
    %v2915 = vmul.f32 %v2832, %v2832
    %v2916 = vmul.f32 %v2837, %v2837
    %v2917 = vmul.f32 %v2842, %v2842
    %v2918 = vmul.f32 %v2847, %v2847
    %v2919 = vmul.f32 %v2852, %v2852
    %v2920 = vmul.f32 %v2857, %v2857
    %v2921 = vmul.f32 %v2862, %v2862
    %v2922 = vmul.f32 %v2867, %v2867
    %v2923 = vsel %vm49, %v2907, 0.0
    %v2924 = vsel %vm49, %v2908, 0.0
    %v2925 = vadd.f32 %v2923, %v2924
    %v2926 = vsel %vm49, %v2909, 0.0
    %v2927 = vadd.f32 %v2925, %v2926
    %v2928 = vsel %vm49, %v2910, 0.0
    %v2929 = vadd.f32 %v2927, %v2928
    %v2930 = vsel %vm49, %v2911, 0.0
    %v2931 = vadd.f32 %v2929, %v2930
    %v2932 = vsel %vm49, %v2912, 0.0
    %v2933 = vadd.f32 %v2931, %v2932
    %v2934 = vsel %vm49, %v2913, 0.0
    %v2935 = vadd.f32 %v2933, %v2934
    %v2936 = vsel %vm49, %v2914, 0.0
    %v2937 = vadd.f32 %v2935, %v2936
    %v2938 = vsel %vm49, %v2915, 0.0
    %v2939 = vadd.f32 %v2937, %v2938
    %v2940 = vsel %vm49, %v2916, 0.0
    %v2941 = vadd.f32 %v2939, %v2940
    %v2942 = vsel %vm49, %v2917, 0.0
    %v2943 = vadd.f32 %v2941, %v2942
    %v2944 = vsel %vm49, %v2918, 0.0
    %v2945 = vadd.f32 %v2943, %v2944
    %v2946 = vsel %vm49, %v2919, 0.0
    %v2947 = vadd.f32 %v2945, %v2946
    %v2948 = vsel %vm49, %v2920, 0.0
    %v2949 = vadd.f32 %v2947, %v2948
    %v2950 = vsel %vm49, %v2921, 0.0
    %v2951 = vadd.f32 %v2949, %v2950
    %v2952 = vsel %vm49, %v2922, 0.0
    %v2953 = vadd.f32 %v2951, %v2952
    %v2954 = vrot.slane %v2953, 4
    %v2955 = vadd.f32 %v2953, %v2954
    %v2956 = vrot.slane %v2955, 2
    %v2957 = vadd.f32 %v2955, %v2956
    %v2958 = vrot.slane %v2957, 1
    %v2959 = vadd.f32 %v2957, %v2958
    %2961 = vrot.lane.b32.xlu0 %v2906, 120
    %v2962 = vpop.permute.xlu0 %2961
    %v2964 = vadd.f32 %v2906, %v2962
    %2965 = vrot.lane.b32.xlu0 %v2906, 112
    %v2966 = vpop.permute.xlu0 %2965
    %v2968 = vadd.f32 %v2964, %v2966
    %2969 = vrot.lane.b32.xlu0 %v2906, 104
    %v2970 = vpop.permute.xlu0 %2969
    %v2972 = vadd.f32 %v2968, %v2970
    %2974 = vrot.lane.b32.xlu0 %v2959, 120
    %v2975 = vpop.permute.xlu0 %2974
    %v2977 = vadd.f32 %v2959, %v2975
    %2978 = vrot.lane.b32.xlu0 %v2959, 112
    %v2979 = vpop.permute.xlu0 %2978
    %v2981 = vadd.f32 %v2977, %v2979
    %2982 = vrot.lane.b32.xlu0 %v2959, 104
    %v2983 = vpop.permute.xlu0 %2982
    %v2985 = vadd.f32 %v2981, %v2983
    %v2986 = vrcp.pop 512.0
    %v2987 = vmul.f32 %v2972, %v2986
    %v2988 = vmul.f32 %v2985, %v2986
    %v2989 = vmul.f32 %v2987, %v2987
    %v2990 = vsub.f32 %v2988, %v2989
    %v2991 = vmax.f32 %v2990, 0.0
    %v2992 = vld [vmem:[%s5] sm:$0x1]
    %v2993 = vadd.f32 %v2991, 1e-05
    %v2994 = vrsqrt.pop %v2993
    %v2995 = vmul.f32 %v2992, %v2994
    %v2996 = vld [vmem:[%s6] sm:$0x1]
    %v2997 = vmul.f32 %v2987, %v2995
    %v2998 = vsub.f32 %v2996, %v2997
    %v3000 = vlaneseq
    %v3001 = vshrl.u32 %v3000, 7
    %v3002 = vsub.s32 0, %v3001
    %v3003 = vrot.slane %v2995, %v3002
    %3004 = vrot.lane.b32.xlu0 %v3003, 8
    %v3005 = vpop.permute.xlu0 %3004
    %3007 = vrot.lane.b32.xlu0 %v3003, 16
    %v3008 = vpop.permute.xlu0 %3007
    %3010 = vrot.lane.b32.xlu0 %v3003, 24
    %v3011 = vpop.permute.xlu0 %3010
    %v3013 = vsel %vm2164, %v2995, %v3005
    %v3014 = vsel %vm2639, %v3013, %v3008
    %v3015 = vsel %vm2656, %v3014, %v3011
    %v3017 = vlaneseq
    %v3018 = vshrl.u32 %v3017, 7
    %v3019 = vsub.s32 0, %v3018
    %v3020 = vrot.slane %v2998, %v3019
    %3021 = vrot.lane.b32.xlu0 %v3020, 8
    %v3022 = vpop.permute.xlu0 %3021
    %3024 = vrot.lane.b32.xlu0 %v3020, 16
    %v3025 = vpop.permute.xlu0 %3024
    %3027 = vrot.lane.b32.xlu0 %v3020, 24
    %v3028 = vpop.permute.xlu0 %3027
    %v3030 = vsel %vm2164, %v2998, %v3022
    %v3031 = vsel %vm2639, %v3030, %v3025
    %v3032 = vsel %vm2656, %v3031, %v3028
    %v3033 = vlaneseq
    %v3034 = vshrl.u32 %v3033, 7
    %v3035 = vsub.s32 0, %v3034
    %v3036 = vrot.slane %v3015, %v3035
    %v3037 = vmul.f32 %v2792, %v3036
    %v3038 = vmul.f32 %v2797, %v3036
    %v3039 = vmul.f32 %v2802, %v3036
    %v3040 = vmul.f32 %v2807, %v3036
    %v3041 = vmul.f32 %v2812, %v3036
    %v3042 = vmul.f32 %v2817, %v3036
    %v3043 = vmul.f32 %v2822, %v3036
    %v3044 = vmul.f32 %v2827, %v3036
    %v3045 = vmul.f32 %v2832, %v3036
    %v3046 = vmul.f32 %v2837, %v3036
    %v3047 = vmul.f32 %v2842, %v3036
    %v3048 = vmul.f32 %v2847, %v3036
    %v3049 = vmul.f32 %v2852, %v3036
    %v3050 = vmul.f32 %v2857, %v3036
    %v3051 = vmul.f32 %v2862, %v3036
    %v3052 = vmul.f32 %v2867, %v3036
    %v3053 = vlaneseq
    %v3054 = vshrl.u32 %v3053, 7
    %v3055 = vsub.s32 0, %v3054
    %v3056 = vrot.slane %v3032, %v3055
    %v3057 = vadd.f32 %v3037, %v3056
    %v3058 = vadd.f32 %v3038, %v3056
    %v3059 = vadd.f32 %v3039, %v3056
    %v3060 = vadd.f32 %v3040, %v3056
    %v3061 = vadd.f32 %v3041, %v3056
    %v3062 = vadd.f32 %v3042, %v3056
    %v3063 = vadd.f32 %v3043, %v3056
    %v3064 = vadd.f32 %v3044, %v3056
    %v3065 = vadd.f32 %v3045, %v3056
    %v3066 = vadd.f32 %v3046, %v3056
    %v3067 = vadd.f32 %v3047, %v3056
    %v3068 = vadd.f32 %v3048, %v3056
    %v3069 = vadd.f32 %v3049, %v3056
    %v3070 = vadd.f32 %v3050, %v3056
    %v3071 = vadd.f32 %v3051, %v3056
    %v3072 = vadd.f32 %v3052, %v3056
    %v3073 = vmax.f32 %v3057, 0.0
    %v3074 = vmax.f32 %v3058, 0.0
    %v3075 = vmax.f32 %v3059, 0.0
    %v3076 = vmax.f32 %v3060, 0.0
    %v3077 = vmax.f32 %v3061, 0.0
    %v3078 = vmax.f32 %v3062, 0.0
    %v3079 = vmax.f32 %v3063, 0.0
    %v3080 = vmax.f32 %v3064, 0.0
    %v3081 = vmax.f32 %v3065, 0.0
    %v3082 = vmax.f32 %v3066, 0.0
    %v3083 = vmax.f32 %v3067, 0.0
    %v3084 = vmax.f32 %v3068, 0.0
    %v3085 = vmax.f32 %v3069, 0.0
    %v3086 = vmax.f32 %v3070, 0.0
    %v3087 = vmax.f32 %v3071, 0.0
    %v3088 = vmax.f32 %v3072, 0.0
    %3089 = vst.msk [vmem:[#allocation4] sm:$0xff] %vm49, 0.0
    %3090 = vst.msk [vmem:[#allocation4 + $0x8] sm:$0x3] %vm51, 0.0
    %3091 = vst.msk [vmem:[#allocation4 + $0xa0] sm:$0xff] %vm49, 0.0
    %3092 = vst.msk [vmem:[#allocation4 + $0xa8] sm:$0x3] %vm51, 0.0
    %s3093 = scalar_lea.vmem [#allocation4], 144
    %3094 = vst.msk [vmem:[%s3093] sm:$0xff] %vm49, 0.0
    %3095 = vst.msk [vmem:[%s3093 + $0x8] sm:$0x3] %vm51, 0.0
    %3096 = vst.msk [vmem:[%s3093 + $0xa0] sm:$0xff] %vm49, 0.0
    %3097 = vst.msk [vmem:[%s3093 + $0xa8] sm:$0x3] %vm51, 0.0
    %s3098 = scalar_lea.vmem [#allocation4], 16
    %3099 = vst.msk [vmem:[%s3098] sm:$0x1] %vm61, 0.0
    %3100 = vst.msk [vmem:[%s3098 + $0x10] sm:$0x1] %vm61, 0.0
    %3101 = vst.msk [vmem:[%s3098 + $0x20] sm:$0x1] %vm61, 0.0
    %3102 = vst.msk [vmem:[%s3098 + $0x30] sm:$0x1] %vm61, 0.0
    %3103 = vst.msk [vmem:[%s3098 + $0x40] sm:$0x1] %vm61, 0.0
    %3104 = vst.msk [vmem:[%s3098 + $0x50] sm:$0x1] %vm61, 0.0
    %3105 = vst.msk [vmem:[%s3098 + $0x60] sm:$0x1] %vm61, 0.0
    %3106 = vst.msk [vmem:[%s3098 + $0x70] sm:$0x1] %vm61, 0.0
    %3107 = vst.msk [vmem:[%s3098 + $0xa0] sm:$0x1] %vm61, 0.0
    %3108 = vst.msk [vmem:[%s3098 + $0xb0] sm:$0x1] %vm61, 0.0
    %3109 = vst.msk [vmem:[%s3098 + $0xc0] sm:$0x1] %vm61, 0.0
    %3110 = vst.msk [vmem:[%s3098 + $0xd0] sm:$0x1] %vm61, 0.0
    %3111 = vst.msk [vmem:[%s3098 + $0xe0] sm:$0x1] %vm61, 0.0
    %3112 = vst.msk [vmem:[%s3098 + $0xf0] sm:$0x1] %vm61, 0.0
    %3113 = vst.msk [vmem:[%s3098 + $0x100] sm:$0x1] %vm61, 0.0
    %3114 = vst.msk [vmem:[%s3098 + $0x110] sm:$0x1] %vm61, 0.0
    %3115 = vst.msk [vmem:[%s3098 + $0x9] sm:$0x1] %vm61, 0.0
    %3116 = vst.msk [vmem:[%s3098 + $0x19] sm:$0x1] %vm61, 0.0
    %3117 = vst.msk [vmem:[%s3098 + $0x29] sm:$0x1] %vm61, 0.0
    %3118 = vst.msk [vmem:[%s3098 + $0x39] sm:$0x1] %vm61, 0.0
    %3119 = vst.msk [vmem:[%s3098 + $0x49] sm:$0x1] %vm61, 0.0
    %3120 = vst.msk [vmem:[%s3098 + $0x59] sm:$0x1] %vm61, 0.0
    %3121 = vst.msk [vmem:[%s3098 + $0x69] sm:$0x1] %vm61, 0.0
    %3122 = vst.msk [vmem:[%s3098 + $0x79] sm:$0x1] %vm61, 0.0
    %3123 = vst.msk [vmem:[%s3098 + $0xa9] sm:$0x1] %vm61, 0.0
    %3124 = vst.msk [vmem:[%s3098 + $0xb9] sm:$0x1] %vm61, 0.0
    %3125 = vst.msk [vmem:[%s3098 + $0xc9] sm:$0x1] %vm61, 0.0
    %3126 = vst.msk [vmem:[%s3098 + $0xd9] sm:$0x1] %vm61, 0.0
    %3127 = vst.msk [vmem:[%s3098 + $0xe9] sm:$0x1] %vm61, 0.0
    %3128 = vst.msk [vmem:[%s3098 + $0xf9] sm:$0x1] %vm61, 0.0
    %3129 = vst.msk [vmem:[%s3098 + $0x109] sm:$0x1] %vm61, 0.0
    %3130 = vst.msk [vmem:[%s3098 + $0x119] sm:$0x1] %vm61, 0.0
    %3131 = vst.msk [vmem:[%s3098 + $0x1] sm:$0xff] %vm49, %v3073
    %3132 = vst.msk [vmem:[%s3098 + $0x11] sm:$0xff] %vm49, %v3074
    %3133 = vst.msk [vmem:[%s3098 + $0x21] sm:$0xff] %vm49, %v3075
    %3134 = vst.msk [vmem:[%s3098 + $0x31] sm:$0xff] %vm49, %v3076
    %3135 = vst.msk [vmem:[%s3098 + $0x41] sm:$0xff] %vm49, %v3077
    %3136 = vst.msk [vmem:[%s3098 + $0x51] sm:$0xff] %vm49, %v3078
    %3137 = vst.msk [vmem:[%s3098 + $0x61] sm:$0xff] %vm49, %v3079
    %3138 = vst.msk [vmem:[%s3098 + $0x71] sm:$0xff] %vm49, %v3080
    %3139 = vst.msk [vmem:[%s3098 + $0xa1] sm:$0xff] %vm49, %v3081
    %3140 = vst.msk [vmem:[%s3098 + $0xb1] sm:$0xff] %vm49, %v3082
    %3141 = vst.msk [vmem:[%s3098 + $0xc1] sm:$0xff] %vm49, %v3083
    %3142 = vst.msk [vmem:[%s3098 + $0xd1] sm:$0xff] %vm49, %v3084
    %3143 = vst.msk [vmem:[%s3098 + $0xe1] sm:$0xff] %vm49, %v3085
    %3144 = vst.msk [vmem:[%s3098 + $0xf1] sm:$0xff] %vm49, %v3086
    %3145 = vst.msk [vmem:[%s3098 + $0x101] sm:$0xff] %vm49, %v3087
    %3146 = vst.msk [vmem:[%s3098 + $0x111] sm:$0xff] %vm49, %v3088
    %v3147 = vld [vmem:[#allocation4] sm:$0xff]
    %v3148 = vld [vmem:[#allocation4 + $0x10] sm:$0xff]
    %v3149 = vld [vmem:[#allocation4 + $0x20] sm:$0xff]
    %v3150 = vld [vmem:[#allocation4 + $0x30] sm:$0xff]
    %v3151 = vld [vmem:[#allocation4 + $0x40] sm:$0xff]
    %v3152 = vld [vmem:[#allocation4 + $0x50] sm:$0xff]
    %v3153 = vld [vmem:[#allocation4 + $0x60] sm:$0xff]
    %v3154 = vld [vmem:[#allocation4 + $0x70] sm:$0xff]
    %v3155 = vld [vmem:[#allocation4 + $0xa0] sm:$0xff]
    %v3156 = vld [vmem:[#allocation4 + $0xb0] sm:$0xff]
    %v3157 = vld [vmem:[#allocation4 + $0xc0] sm:$0xff]
    %v3158 = vld [vmem:[#allocation4 + $0xd0] sm:$0xff]
    %v3159 = vld [vmem:[#allocation4 + $0xe0] sm:$0xff]
    %v3160 = vld [vmem:[#allocation4 + $0xf0] sm:$0xff]
    %v3161 = vld [vmem:[#allocation4 + $0x100] sm:$0xff]
    %v3162 = vld [vmem:[#allocation4 + $0x110] sm:$0xff]
    %v3163 = vld [vmem:[%s7] sm:$0xff]
    %v3164 = vld [vmem:[%s7 + $0x8] sm:$0xff]
    %v3165 = vld [vmem:[%s7 + $0x10] sm:$0xff]
    %v3166 = vld [vmem:[%s7 + $0x18] sm:$0xff]
    %v3167 = vld [vmem:[#allocation4 + $0x1] sm:$0xff]
    %v3168 = vld [vmem:[#allocation4 + $0x11] sm:$0xff]
    %v3169 = vld [vmem:[#allocation4 + $0x21] sm:$0xff]
    %v3170 = vld [vmem:[#allocation4 + $0x31] sm:$0xff]
    %v3171 = vld [vmem:[#allocation4 + $0x41] sm:$0xff]
    %v3172 = vld [vmem:[#allocation4 + $0x51] sm:$0xff]
    %v3173 = vld [vmem:[#allocation4 + $0x61] sm:$0xff]
    %v3174 = vld [vmem:[#allocation4 + $0x71] sm:$0xff]
    %v3175 = vld [vmem:[#allocation4 + $0xa1] sm:$0xff]
    %v3176 = vld [vmem:[#allocation4 + $0xb1] sm:$0xff]
    %v3177 = vld [vmem:[#allocation4 + $0xc1] sm:$0xff]
    %v3178 = vld [vmem:[#allocation4 + $0xd1] sm:$0xff]
    %v3179 = vld [vmem:[#allocation4 + $0xe1] sm:$0xff]
    %v3180 = vld [vmem:[#allocation4 + $0xf1] sm:$0xff]
    %v3181 = vld [vmem:[#allocation4 + $0x101] sm:$0xff]
    %v3182 = vld [vmem:[#allocation4 + $0x111] sm:$0xff]
    %s3183 = scalar_lea.vmem %s7, 32
    %v3184 = vld [vmem:[%s3183] sm:$0xff]
    %v3185 = vld [vmem:[%s3183 + $0x8] sm:$0xff]
    %v3186 = vld [vmem:[%s3183 + $0x10] sm:$0xff]
    %v3187 = vld [vmem:[%s3183 + $0x18] sm:$0xff]
    %v3189 = vsel %vm49, %v3167, 0
    %v3192 = vsel %vm49, %v3168, 0
    %v3195 = vsel %vm49, %v3169, 0
    %v3198 = vsel %vm49, %v3170, 0
    %v3201 = vsel %vm49, %v3171, 0
    %v3204 = vsel %vm49, %v3172, 0
    %v3207 = vsel %vm49, %v3173, 0
    %v3210 = vsel %vm49, %v3174, 0
    %v3213 = vsel %vm49, %v3175, 0
    %v3216 = vsel %vm49, %v3176, 0
    %v3219 = vsel %vm49, %v3177, 0
    %v3222 = vsel %vm49, %v3178, 0
    %v3225 = vsel %vm49, %v3179, 0
    %v3228 = vsel %vm49, %v3180, 0
    %v3231 = vsel %vm49, %v3181, 0
    %v3234 = vsel %vm49, %v3182, 0
    %3236 = vmatprep.subr.mxu0 0.0
    %3237 = vmatpush1.msra.mxu0 0.0
    %3238 = vmatprep.subr.mxu0 0.0
    %3239 = vmatpush1.msra.mxu0 0.0
    %3240 = vmatprep.subr.mxu0 0.0
    %3241 = vmatpush1.msra.mxu0 0.0
    %3242 = vmatprep.subr.mxu0 0.0
    %3243 = vmatpush1.msra.mxu0 0.0
    %3244 = vmatprep.subr.mxu0 0.0
    %3245 = vmatpush1.msra.mxu0 0.0
    %3246 = vmatprep.subr.mxu0 0.0
    %3247 = vmatpush1.msra.mxu0 0.0
    %3248 = vmatprep.subr.mxu0 0.0
    %3249 = vmatpush1.msra.mxu0 0.0
    %3250 = vmatprep.subr.mxu0 0.0
    %3251 = vmatpush1.msra.mxu0 0.0
    %3252 = vmatprep.subr.mxu0 0.0
    %3253 = vmatpush1.msra.mxu0 0.0
    %3254 = vmatprep.subr.mxu0 0.0
    %3255 = vmatpush1.msra.mxu0 0.0
    %3256 = vmatprep.subr.mxu0 0.0
    %3257 = vmatpush1.msra.mxu0 0.0
    %3258 = vmatprep.subr.mxu0 0.0
    %3259 = vmatpush1.msra.mxu0 0.0
    %3260 = vmatprep.subr.mxu0 0.0
    %3261 = vmatpush1.msra.mxu0 %v3187
    %3262 = vmatprep.subr.mxu0 0.0
    %3263 = vmatpush1.msra.mxu0 %v3186
    %3264 = vmatprep.subr.mxu0 0.0
    %3265 = vmatpush1.msra.mxu0 %v3185
    %3266 = vmatprep.subr.mxu0 0.0
    %3267 = vmatpush1.msra.mxu0 %v3184
    %3268 = vmatprep.subr.mxu0 0.0
    %3269 = vmatpush2.msra.mxu0 0.0
    %3270 = vmatprep.subr.mxu0 0.0
    %3271 = vmatpush2.msra.mxu0 0.0
    %3272 = vmatprep.subr.mxu0 0.0
    %3273 = vmatpush2.msra.mxu0 0.0
    %3274 = vmatprep.subr.mxu0 0.0
    %3275 = vmatpush2.msra.mxu0 0.0
    %3276 = vmatprep.subr.mxu0 0.0
    %3277 = vmatpush2.msra.mxu0 0.0
    %3278 = vmatprep.subr.mxu0 0.0
    %3279 = vmatpush2.msra.mxu0 0.0
    %3280 = vmatprep.subr.mxu0 0.0
    %3281 = vmatpush2.msra.mxu0 0.0
    %3282 = vmatprep.subr.mxu0 0.0
    %3283 = vmatpush2.msra.mxu0 0.0
    %3284 = vmatprep.subr.mxu0 0.0
    %3285 = vmatpush2.msra.mxu0 0.0
    %3286 = vmatprep.subr.mxu0 0.0
    %3287 = vmatpush2.msra.mxu0 0.0
    %3288 = vmatprep.subr.mxu0 0.0
    %3289 = vmatpush2.msra.mxu0 0.0
    %3290 = vmatprep.subr.mxu0 0.0
    %3291 = vmatpush2.msra.mxu0 0.0
    %3292 = vmatprep.subr.mxu0 0.0
    %3293 = vmatpush2.msra.mxu0 0.0
    %3294 = vmatprep.subr.mxu0 0.0
    %3295 = vmatpush2.msra.mxu0 0.0
    %3296 = vmatprep.subr.mxu0 0.0
    %3297 = vmatpush2.msra.mxu0 0.0
    %3298 = vmatprep.subr.mxu0 0.0
    %3299 = vmatpush2.msra.mxu0 0.0
    %3300 = vmatprep.mubr.f32.mxu0 0.0
    %3301 = vmatmul.mubr.f32.gmra.mxu0 %v3189
    %v3302 = vpop.f32.mrf.mxu0
    %v3303 = vadd.f32 0.0, %v3302
    %v3304 = vpop.f32.mrf.mxu0
    %3305 = vmatprep.mubr.f32.mxu0 0.0
    %3306 = vmatmul.mubr.f32.gmra.mxu0 %v3192
    %v3307 = vpop.f32.mrf.mxu0
    %v3308 = vadd.f32 0.0, %v3307
    %v3309 = vpop.f32.mrf.mxu0
    %3310 = vmatprep.mubr.f32.mxu0 0.0
    %3311 = vmatmul.mubr.f32.gmra.mxu0 %v3195
    %v3312 = vpop.f32.mrf.mxu0
    %v3313 = vadd.f32 0.0, %v3312
    %v3314 = vpop.f32.mrf.mxu0
    %3315 = vmatprep.mubr.f32.mxu0 0.0
    %3316 = vmatmul.mubr.f32.gmra.mxu0 %v3198
    %v3317 = vpop.f32.mrf.mxu0
    %v3318 = vadd.f32 0.0, %v3317
    %v3319 = vpop.f32.mrf.mxu0
    %3320 = vmatprep.mubr.f32.mxu0 0.0
    %3321 = vmatmul.mubr.f32.gmra.mxu0 %v3201
    %v3322 = vpop.f32.mrf.mxu0
    %v3323 = vadd.f32 0.0, %v3322
    %v3324 = vpop.f32.mrf.mxu0
    %3325 = vmatprep.mubr.f32.mxu0 0.0
    %3326 = vmatmul.mubr.f32.gmra.mxu0 %v3204
    %v3327 = vpop.f32.mrf.mxu0
    %v3328 = vadd.f32 0.0, %v3327
    %v3329 = vpop.f32.mrf.mxu0
    %3330 = vmatprep.mubr.f32.mxu0 0.0
    %3331 = vmatmul.mubr.f32.gmra.mxu0 %v3207
    %v3332 = vpop.f32.mrf.mxu0
    %v3333 = vadd.f32 0.0, %v3332
    %v3334 = vpop.f32.mrf.mxu0
    %3335 = vmatprep.mubr.f32.mxu0 0.0
    %3336 = vmatmul.mubr.f32.gmra.mxu0 %v3210
    %v3337 = vpop.f32.mrf.mxu0
    %v3338 = vadd.f32 0.0, %v3337
    %v3339 = vpop.f32.mrf.mxu0
    %3340 = vmatprep.mubr.f32.mxu0 0.0
    %3341 = vmatmul.mubr.f32.gmra.mxu0 %v3213
    %v3342 = vpop.f32.mrf.mxu0
    %v3343 = vadd.f32 0.0, %v3342
    %v3344 = vpop.f32.mrf.mxu0
    %3345 = vmatprep.mubr.f32.mxu0 0.0
    %3346 = vmatmul.mubr.f32.gmra.mxu0 %v3216
    %v3347 = vpop.f32.mrf.mxu0
    %v3348 = vadd.f32 0.0, %v3347
    %v3349 = vpop.f32.mrf.mxu0
    %3350 = vmatprep.mubr.f32.mxu0 0.0
    %3351 = vmatmul.mubr.f32.gmra.mxu0 %v3219
    %v3352 = vpop.f32.mrf.mxu0
    %v3353 = vadd.f32 0.0, %v3352
    %v3354 = vpop.f32.mrf.mxu0
    %3355 = vmatprep.mubr.f32.mxu0 0.0
    %3356 = vmatmul.mubr.f32.gmra.mxu0 %v3222
    %v3357 = vpop.f32.mrf.mxu0
    %v3358 = vadd.f32 0.0, %v3357
    %v3359 = vpop.f32.mrf.mxu0
    %3360 = vmatprep.mubr.f32.mxu0 0.0
    %3361 = vmatmul.mubr.f32.gmra.mxu0 %v3225
    %v3362 = vpop.f32.mrf.mxu0
    %v3363 = vadd.f32 0.0, %v3362
    %v3364 = vpop.f32.mrf.mxu0
    %3365 = vmatprep.mubr.f32.mxu0 0.0
    %3366 = vmatmul.mubr.f32.gmra.mxu0 %v3228
    %v3367 = vpop.f32.mrf.mxu0
    %v3368 = vadd.f32 0.0, %v3367
    %v3369 = vpop.f32.mrf.mxu0
    %3370 = vmatprep.mubr.f32.mxu0 0.0
    %3371 = vmatmul.mubr.f32.gmra.mxu0 %v3231
    %v3372 = vpop.f32.mrf.mxu0
    %v3373 = vadd.f32 0.0, %v3372
    %v3374 = vpop.f32.mrf.mxu0
    %3375 = vmatprep.mubr.f32.mxu0 0.0
    %3376 = vmatmul.mubr.f32.gmra.mxu0 %v3234
    %v3377 = vpop.f32.mrf.mxu0
    %v3378 = vadd.f32 0.0, %v3377
    %v3379 = vpop.f32.mrf.mxu0
    %3380 = vdwg.mxu0
    %v3382 = vsel %vm49, %v3147, 0
    %v3385 = vsel %vm49, %v3148, 0
    %v3388 = vsel %vm49, %v3149, 0
    %v3391 = vsel %vm49, %v3150, 0
    %v3394 = vsel %vm49, %v3151, 0
    %v3397 = vsel %vm49, %v3152, 0
    %v3400 = vsel %vm49, %v3153, 0
    %v3403 = vsel %vm49, %v3154, 0
    %v3406 = vsel %vm49, %v3155, 0
    %v3409 = vsel %vm49, %v3156, 0
    %v3412 = vsel %vm49, %v3157, 0
    %v3415 = vsel %vm49, %v3158, 0
    %v3418 = vsel %vm49, %v3159, 0
    %v3421 = vsel %vm49, %v3160, 0
    %v3424 = vsel %vm49, %v3161, 0
    %v3427 = vsel %vm49, %v3162, 0
    %3429 = vmatprep.subr.mxu0 0.0
    %3430 = vmatpush1.msra.mxu0 0.0
    %3431 = vmatprep.subr.mxu0 0.0
    %3432 = vmatpush1.msra.mxu0 0.0
    %3433 = vmatprep.subr.mxu0 0.0
    %3434 = vmatpush1.msra.mxu0 0.0
    %3435 = vmatprep.subr.mxu0 0.0
    %3436 = vmatpush1.msra.mxu0 0.0
    %3437 = vmatprep.subr.mxu0 0.0
    %3438 = vmatpush1.msra.mxu0 0.0
    %3439 = vmatprep.subr.mxu0 0.0
    %3440 = vmatpush1.msra.mxu0 0.0
    %3441 = vmatprep.subr.mxu0 0.0
    %3442 = vmatpush1.msra.mxu0 0.0
    %3443 = vmatprep.subr.mxu0 0.0
    %3444 = vmatpush1.msra.mxu0 0.0
    %3445 = vmatprep.subr.mxu0 0.0
    %3446 = vmatpush1.msra.mxu0 0.0
    %3447 = vmatprep.subr.mxu0 0.0
    %3448 = vmatpush1.msra.mxu0 0.0
    %3449 = vmatprep.subr.mxu0 0.0
    %3450 = vmatpush1.msra.mxu0 0.0
    %3451 = vmatprep.subr.mxu0 0.0
    %3452 = vmatpush1.msra.mxu0 0.0
    %3453 = vmatprep.subr.mxu0 0.0
    %3454 = vmatpush1.msra.mxu0 %v3166
    %3455 = vmatprep.subr.mxu0 0.0
    %3456 = vmatpush1.msra.mxu0 %v3165
    %3457 = vmatprep.subr.mxu0 0.0
    %3458 = vmatpush1.msra.mxu0 %v3164
    %3459 = vmatprep.subr.mxu0 0.0
    %3460 = vmatpush1.msra.mxu0 %v3163
    %3461 = vmatprep.subr.mxu0 0.0
    %3462 = vmatpush2.msra.mxu0 0.0
    %3463 = vmatprep.subr.mxu0 0.0
    %3464 = vmatpush2.msra.mxu0 0.0
    %3465 = vmatprep.subr.mxu0 0.0
    %3466 = vmatpush2.msra.mxu0 0.0
    %3467 = vmatprep.subr.mxu0 0.0
    %3468 = vmatpush2.msra.mxu0 0.0
    %3469 = vmatprep.subr.mxu0 0.0
    %3470 = vmatpush2.msra.mxu0 0.0
    %3471 = vmatprep.subr.mxu0 0.0
    %3472 = vmatpush2.msra.mxu0 0.0
    %3473 = vmatprep.subr.mxu0 0.0
    %3474 = vmatpush2.msra.mxu0 0.0
    %3475 = vmatprep.subr.mxu0 0.0
    %3476 = vmatpush2.msra.mxu0 0.0
    %3477 = vmatprep.subr.mxu0 0.0
    %3478 = vmatpush2.msra.mxu0 0.0
    %3479 = vmatprep.subr.mxu0 0.0
    %3480 = vmatpush2.msra.mxu0 0.0
    %3481 = vmatprep.subr.mxu0 0.0
    %3482 = vmatpush2.msra.mxu0 0.0
    %3483 = vmatprep.subr.mxu0 0.0
    %3484 = vmatpush2.msra.mxu0 0.0
    %3485 = vmatprep.subr.mxu0 0.0
    %3486 = vmatpush2.msra.mxu0 0.0
    %3487 = vmatprep.subr.mxu0 0.0
    %3488 = vmatpush2.msra.mxu0 0.0
    %3489 = vmatprep.subr.mxu0 0.0
    %3490 = vmatpush2.msra.mxu0 0.0
    %3491 = vmatprep.subr.mxu0 0.0
    %3492 = vmatpush2.msra.mxu0 0.0
    %3493 = vmatprep.mubr.f32.mxu0 0.0
    %3494 = vmatmul.mubr.f32.gmra.mxu0 %v3382
    %v3495 = vpop.f32.mrf.mxu0
    %v3496 = vadd.f32 %v3303, %v3495
    %v3497 = vpop.f32.mrf.mxu0
    %3498 = vmatprep.mubr.f32.mxu0 0.0
    %3499 = vmatmul.mubr.f32.gmra.mxu0 %v3385
    %v3500 = vpop.f32.mrf.mxu0
    %v3501 = vadd.f32 %v3308, %v3500
    %v3502 = vpop.f32.mrf.mxu0
    %3503 = vmatprep.mubr.f32.mxu0 0.0
    %3504 = vmatmul.mubr.f32.gmra.mxu0 %v3388
    %v3505 = vpop.f32.mrf.mxu0
    %v3506 = vadd.f32 %v3313, %v3505
    %v3507 = vpop.f32.mrf.mxu0
    %3508 = vmatprep.mubr.f32.mxu0 0.0
    %3509 = vmatmul.mubr.f32.gmra.mxu0 %v3391
    %v3510 = vpop.f32.mrf.mxu0
    %v3511 = vadd.f32 %v3318, %v3510
    %v3512 = vpop.f32.mrf.mxu0
    %3513 = vmatprep.mubr.f32.mxu0 0.0
    %3514 = vmatmul.mubr.f32.gmra.mxu0 %v3394
    %v3515 = vpop.f32.mrf.mxu0
    %v3516 = vadd.f32 %v3323, %v3515
    %v3517 = vpop.f32.mrf.mxu0
    %3518 = vmatprep.mubr.f32.mxu0 0.0
    %3519 = vmatmul.mubr.f32.gmra.mxu0 %v3397
    %v3520 = vpop.f32.mrf.mxu0
    %v3521 = vadd.f32 %v3328, %v3520
    %v3522 = vpop.f32.mrf.mxu0
    %3523 = vmatprep.mubr.f32.mxu0 0.0
    %3524 = vmatmul.mubr.f32.gmra.mxu0 %v3400
    %v3525 = vpop.f32.mrf.mxu0
    %v3526 = vadd.f32 %v3333, %v3525
    %v3527 = vpop.f32.mrf.mxu0
    %3528 = vmatprep.mubr.f32.mxu0 0.0
    %3529 = vmatmul.mubr.f32.gmra.mxu0 %v3403
    %v3530 = vpop.f32.mrf.mxu0
    %v3531 = vadd.f32 %v3338, %v3530
    %v3532 = vpop.f32.mrf.mxu0
    %3533 = vmatprep.mubr.f32.mxu0 0.0
    %3534 = vmatmul.mubr.f32.gmra.mxu0 %v3406
    %v3535 = vpop.f32.mrf.mxu0
    %v3536 = vadd.f32 %v3343, %v3535
    %v3537 = vpop.f32.mrf.mxu0
    %3538 = vmatprep.mubr.f32.mxu0 0.0
    %3539 = vmatmul.mubr.f32.gmra.mxu0 %v3409
    %v3540 = vpop.f32.mrf.mxu0
    %v3541 = vadd.f32 %v3348, %v3540
    %v3542 = vpop.f32.mrf.mxu0
    %3543 = vmatprep.mubr.f32.mxu0 0.0
    %3544 = vmatmul.mubr.f32.gmra.mxu0 %v3412
    %v3545 = vpop.f32.mrf.mxu0
    %v3546 = vadd.f32 %v3353, %v3545
    %v3547 = vpop.f32.mrf.mxu0
    %3548 = vmatprep.mubr.f32.mxu0 0.0
    %3549 = vmatmul.mubr.f32.gmra.mxu0 %v3415
    %v3550 = vpop.f32.mrf.mxu0
    %v3551 = vadd.f32 %v3358, %v3550
    %v3552 = vpop.f32.mrf.mxu0
    %3553 = vmatprep.mubr.f32.mxu0 0.0
    %3554 = vmatmul.mubr.f32.gmra.mxu0 %v3418
    %v3555 = vpop.f32.mrf.mxu0
    %v3556 = vadd.f32 %v3363, %v3555
    %v3557 = vpop.f32.mrf.mxu0
    %3558 = vmatprep.mubr.f32.mxu0 0.0
    %3559 = vmatmul.mubr.f32.gmra.mxu0 %v3421
    %v3560 = vpop.f32.mrf.mxu0
    %v3561 = vadd.f32 %v3368, %v3560
    %v3562 = vpop.f32.mrf.mxu0
    %3563 = vmatprep.mubr.f32.mxu0 0.0
    %3564 = vmatmul.mubr.f32.gmra.mxu0 %v3424
    %v3565 = vpop.f32.mrf.mxu0
    %v3566 = vadd.f32 %v3373, %v3565
    %v3567 = vpop.f32.mrf.mxu0
    %3568 = vmatprep.mubr.f32.mxu0 0.0
    %3569 = vmatmul.mubr.f32.gmra.mxu0 %v3427
    %v3570 = vpop.f32.mrf.mxu0
    %v3571 = vadd.f32 %v3378, %v3570
    %v3572 = vpop.f32.mrf.mxu0
    %3573 = vdwg.mxu0
    %v3574 = vld [vmem:[#allocation4 + $0x2] sm:$0xff]
    %v3575 = vld [vmem:[#allocation4 + $0x12] sm:$0xff]
    %v3576 = vld [vmem:[#allocation4 + $0x22] sm:$0xff]
    %v3577 = vld [vmem:[#allocation4 + $0x32] sm:$0xff]
    %v3578 = vld [vmem:[#allocation4 + $0x42] sm:$0xff]
    %v3579 = vld [vmem:[#allocation4 + $0x52] sm:$0xff]
    %v3580 = vld [vmem:[#allocation4 + $0x62] sm:$0xff]
    %v3581 = vld [vmem:[#allocation4 + $0x72] sm:$0xff]
    %v3582 = vld [vmem:[#allocation4 + $0xa2] sm:$0xff]
    %v3583 = vld [vmem:[#allocation4 + $0xb2] sm:$0xff]
    %v3584 = vld [vmem:[#allocation4 + $0xc2] sm:$0xff]
    %v3585 = vld [vmem:[#allocation4 + $0xd2] sm:$0xff]
    %v3586 = vld [vmem:[#allocation4 + $0xe2] sm:$0xff]
    %v3587 = vld [vmem:[#allocation4 + $0xf2] sm:$0xff]
    %v3588 = vld [vmem:[#allocation4 + $0x102] sm:$0xff]
    %v3589 = vld [vmem:[#allocation4 + $0x112] sm:$0xff]
    %s3590 = scalar_lea.vmem %s7, 64
    %v3591 = vld [vmem:[%s3590] sm:$0xff]
    %v3592 = vld [vmem:[%s3590 + $0x8] sm:$0xff]
    %v3593 = vld [vmem:[%s3590 + $0x10] sm:$0xff]
    %v3594 = vld [vmem:[%s3590 + $0x18] sm:$0xff]
    %v3596 = vsel %vm49, %v3574, 0
    %v3599 = vsel %vm49, %v3575, 0
    %v3602 = vsel %vm49, %v3576, 0
    %v3605 = vsel %vm49, %v3577, 0
    %v3608 = vsel %vm49, %v3578, 0
    %v3611 = vsel %vm49, %v3579, 0
    %v3614 = vsel %vm49, %v3580, 0
    %v3617 = vsel %vm49, %v3581, 0
    %v3620 = vsel %vm49, %v3582, 0
    %v3623 = vsel %vm49, %v3583, 0
    %v3626 = vsel %vm49, %v3584, 0
    %v3629 = vsel %vm49, %v3585, 0
    %v3632 = vsel %vm49, %v3586, 0
    %v3635 = vsel %vm49, %v3587, 0
    %v3638 = vsel %vm49, %v3588, 0
    %v3641 = vsel %vm49, %v3589, 0
    %3643 = vmatprep.subr.mxu0 0.0
    %3644 = vmatpush1.msra.mxu0 0.0
    %3645 = vmatprep.subr.mxu0 0.0
    %3646 = vmatpush1.msra.mxu0 0.0
    %3647 = vmatprep.subr.mxu0 0.0
    %3648 = vmatpush1.msra.mxu0 0.0
    %3649 = vmatprep.subr.mxu0 0.0
    %3650 = vmatpush1.msra.mxu0 0.0
    %3651 = vmatprep.subr.mxu0 0.0
    %3652 = vmatpush1.msra.mxu0 0.0
    %3653 = vmatprep.subr.mxu0 0.0
    %3654 = vmatpush1.msra.mxu0 0.0
    %3655 = vmatprep.subr.mxu0 0.0
    %3656 = vmatpush1.msra.mxu0 0.0
    %3657 = vmatprep.subr.mxu0 0.0
    %3658 = vmatpush1.msra.mxu0 0.0
    %3659 = vmatprep.subr.mxu0 0.0
    %3660 = vmatpush1.msra.mxu0 0.0
    %3661 = vmatprep.subr.mxu0 0.0
    %3662 = vmatpush1.msra.mxu0 0.0
    %3663 = vmatprep.subr.mxu0 0.0
    %3664 = vmatpush1.msra.mxu0 0.0
    %3665 = vmatprep.subr.mxu0 0.0
    %3666 = vmatpush1.msra.mxu0 0.0
    %3667 = vmatprep.subr.mxu0 0.0
    %3668 = vmatpush1.msra.mxu0 %v3594
    %3669 = vmatprep.subr.mxu0 0.0
    %3670 = vmatpush1.msra.mxu0 %v3593
    %3671 = vmatprep.subr.mxu0 0.0
    %3672 = vmatpush1.msra.mxu0 %v3592
    %3673 = vmatprep.subr.mxu0 0.0
    %3674 = vmatpush1.msra.mxu0 %v3591
    %3675 = vmatprep.subr.mxu0 0.0
    %3676 = vmatpush2.msra.mxu0 0.0
    %3677 = vmatprep.subr.mxu0 0.0
    %3678 = vmatpush2.msra.mxu0 0.0
    %3679 = vmatprep.subr.mxu0 0.0
    %3680 = vmatpush2.msra.mxu0 0.0
    %3681 = vmatprep.subr.mxu0 0.0
    %3682 = vmatpush2.msra.mxu0 0.0
    %3683 = vmatprep.subr.mxu0 0.0
    %3684 = vmatpush2.msra.mxu0 0.0
    %3685 = vmatprep.subr.mxu0 0.0
    %3686 = vmatpush2.msra.mxu0 0.0
    %3687 = vmatprep.subr.mxu0 0.0
    %3688 = vmatpush2.msra.mxu0 0.0
    %3689 = vmatprep.subr.mxu0 0.0
    %3690 = vmatpush2.msra.mxu0 0.0
    %3691 = vmatprep.subr.mxu0 0.0
    %3692 = vmatpush2.msra.mxu0 0.0
    %3693 = vmatprep.subr.mxu0 0.0
    %3694 = vmatpush2.msra.mxu0 0.0
    %3695 = vmatprep.subr.mxu0 0.0
    %3696 = vmatpush2.msra.mxu0 0.0
    %3697 = vmatprep.subr.mxu0 0.0
    %3698 = vmatpush2.msra.mxu0 0.0
    %3699 = vmatprep.subr.mxu0 0.0
    %3700 = vmatpush2.msra.mxu0 0.0
    %3701 = vmatprep.subr.mxu0 0.0
    %3702 = vmatpush2.msra.mxu0 0.0
    %3703 = vmatprep.subr.mxu0 0.0
    %3704 = vmatpush2.msra.mxu0 0.0
    %3705 = vmatprep.subr.mxu0 0.0
    %3706 = vmatpush2.msra.mxu0 0.0
    %3707 = vmatprep.mubr.f32.mxu0 0.0
    %3708 = vmatmul.mubr.f32.gmra.mxu0 %v3596
    %v3709 = vpop.f32.mrf.mxu0
    %v3710 = vadd.f32 0.0, %v3709
    %v3711 = vpop.f32.mrf.mxu0
    %3712 = vmatprep.mubr.f32.mxu0 0.0
    %3713 = vmatmul.mubr.f32.gmra.mxu0 %v3599
    %v3714 = vpop.f32.mrf.mxu0
    %v3715 = vadd.f32 0.0, %v3714
    %v3716 = vpop.f32.mrf.mxu0
    %3717 = vmatprep.mubr.f32.mxu0 0.0
    %3718 = vmatmul.mubr.f32.gmra.mxu0 %v3602
    %v3719 = vpop.f32.mrf.mxu0
    %v3720 = vadd.f32 0.0, %v3719
    %v3721 = vpop.f32.mrf.mxu0
    %3722 = vmatprep.mubr.f32.mxu0 0.0
    %3723 = vmatmul.mubr.f32.gmra.mxu0 %v3605
    %v3724 = vpop.f32.mrf.mxu0
    %v3725 = vadd.f32 0.0, %v3724
    %v3726 = vpop.f32.mrf.mxu0
    %3727 = vmatprep.mubr.f32.mxu0 0.0
    %3728 = vmatmul.mubr.f32.gmra.mxu0 %v3608
    %v3729 = vpop.f32.mrf.mxu0
    %v3730 = vadd.f32 0.0, %v3729
    %v3731 = vpop.f32.mrf.mxu0
    %3732 = vmatprep.mubr.f32.mxu0 0.0
    %3733 = vmatmul.mubr.f32.gmra.mxu0 %v3611
    %v3734 = vpop.f32.mrf.mxu0
    %v3735 = vadd.f32 0.0, %v3734
    %v3736 = vpop.f32.mrf.mxu0
    %3737 = vmatprep.mubr.f32.mxu0 0.0
    %3738 = vmatmul.mubr.f32.gmra.mxu0 %v3614
    %v3739 = vpop.f32.mrf.mxu0
    %v3740 = vadd.f32 0.0, %v3739
    %v3741 = vpop.f32.mrf.mxu0
    %3742 = vmatprep.mubr.f32.mxu0 0.0
    %3743 = vmatmul.mubr.f32.gmra.mxu0 %v3617
    %v3744 = vpop.f32.mrf.mxu0
    %v3745 = vadd.f32 0.0, %v3744
    %v3746 = vpop.f32.mrf.mxu0
    %3747 = vmatprep.mubr.f32.mxu0 0.0
    %3748 = vmatmul.mubr.f32.gmra.mxu0 %v3620
    %v3749 = vpop.f32.mrf.mxu0
    %v3750 = vadd.f32 0.0, %v3749
    %v3751 = vpop.f32.mrf.mxu0
    %3752 = vmatprep.mubr.f32.mxu0 0.0
    %3753 = vmatmul.mubr.f32.gmra.mxu0 %v3623
    %v3754 = vpop.f32.mrf.mxu0
    %v3755 = vadd.f32 0.0, %v3754
    %v3756 = vpop.f32.mrf.mxu0
    %3757 = vmatprep.mubr.f32.mxu0 0.0
    %3758 = vmatmul.mubr.f32.gmra.mxu0 %v3626
    %v3759 = vpop.f32.mrf.mxu0
    %v3760 = vadd.f32 0.0, %v3759
    %v3761 = vpop.f32.mrf.mxu0
    %3762 = vmatprep.mubr.f32.mxu0 0.0
    %3763 = vmatmul.mubr.f32.gmra.mxu0 %v3629
    %v3764 = vpop.f32.mrf.mxu0
    %v3765 = vadd.f32 0.0, %v3764
    %v3766 = vpop.f32.mrf.mxu0
    %3767 = vmatprep.mubr.f32.mxu0 0.0
    %3768 = vmatmul.mubr.f32.gmra.mxu0 %v3632
    %v3769 = vpop.f32.mrf.mxu0
    %v3770 = vadd.f32 0.0, %v3769
    %v3771 = vpop.f32.mrf.mxu0
    %3772 = vmatprep.mubr.f32.mxu0 0.0
    %3773 = vmatmul.mubr.f32.gmra.mxu0 %v3635
    %v3774 = vpop.f32.mrf.mxu0
    %v3775 = vadd.f32 0.0, %v3774
    %v3776 = vpop.f32.mrf.mxu0
    %3777 = vmatprep.mubr.f32.mxu0 0.0
    %3778 = vmatmul.mubr.f32.gmra.mxu0 %v3638
    %v3779 = vpop.f32.mrf.mxu0
    %v3780 = vadd.f32 0.0, %v3779
    %v3781 = vpop.f32.mrf.mxu0
    %3782 = vmatprep.mubr.f32.mxu0 0.0
    %3783 = vmatmul.mubr.f32.gmra.mxu0 %v3641
    %v3784 = vpop.f32.mrf.mxu0
    %v3785 = vadd.f32 0.0, %v3784
    %v3786 = vpop.f32.mrf.mxu0
    %3787 = vdwg.mxu0
    %v3788 = vadd.f32 %v3496, %v3710
    %v3789 = vadd.f32 %v3501, %v3715
    %v3790 = vadd.f32 %v3506, %v3720
    %v3791 = vadd.f32 %v3511, %v3725
    %v3792 = vadd.f32 %v3516, %v3730
    %v3793 = vadd.f32 %v3521, %v3735
    %v3794 = vadd.f32 %v3526, %v3740
    %v3795 = vadd.f32 %v3531, %v3745
    %v3796 = vadd.f32 %v3536, %v3750
    %v3797 = vadd.f32 %v3541, %v3755
    %v3798 = vadd.f32 %v3546, %v3760
    %v3799 = vadd.f32 %v3551, %v3765
    %v3800 = vadd.f32 %v3556, %v3770
    %v3801 = vadd.f32 %v3561, %v3775
    %v3802 = vadd.f32 %v3566, %v3780
    %v3803 = vadd.f32 %v3571, %v3785
    %v3804 = vld [vmem:[%s3098] sm:$0xff]
    %v3805 = vld [vmem:[%s3098 + $0x10] sm:$0xff]
    %v3806 = vld [vmem:[%s3098 + $0x20] sm:$0xff]
    %v3807 = vld [vmem:[%s3098 + $0x30] sm:$0xff]
    %v3808 = vld [vmem:[%s3098 + $0x40] sm:$0xff]
    %v3809 = vld [vmem:[%s3098 + $0x50] sm:$0xff]
    %v3810 = vld [vmem:[%s3098 + $0x60] sm:$0xff]
    %v3811 = vld [vmem:[%s3098 + $0x70] sm:$0xff]
    %v3812 = vld [vmem:[%s3098 + $0xa0] sm:$0xff]
    %v3813 = vld [vmem:[%s3098 + $0xb0] sm:$0xff]
    %v3814 = vld [vmem:[%s3098 + $0xc0] sm:$0xff]
    %v3815 = vld [vmem:[%s3098 + $0xd0] sm:$0xff]
    %v3816 = vld [vmem:[%s3098 + $0xe0] sm:$0xff]
    %v3817 = vld [vmem:[%s3098 + $0xf0] sm:$0xff]
    %v3818 = vld [vmem:[%s3098 + $0x100] sm:$0xff]
    %v3819 = vld [vmem:[%s3098 + $0x110] sm:$0xff]
    %s3820 = scalar_lea.vmem %s7, 96
    %v3821 = vld [vmem:[%s3820] sm:$0xff]
    %v3822 = vld [vmem:[%s3820 + $0x8] sm:$0xff]
    %v3823 = vld [vmem:[%s3820 + $0x10] sm:$0xff]
    %v3824 = vld [vmem:[%s3820 + $0x18] sm:$0xff]
    %v3826 = vsel %vm49, %v3804, 0
    %v3829 = vsel %vm49, %v3805, 0
    %v3832 = vsel %vm49, %v3806, 0
    %v3835 = vsel %vm49, %v3807, 0
    %v3838 = vsel %vm49, %v3808, 0
    %v3841 = vsel %vm49, %v3809, 0
    %v3844 = vsel %vm49, %v3810, 0
    %v3847 = vsel %vm49, %v3811, 0
    %v3850 = vsel %vm49, %v3812, 0
    %v3853 = vsel %vm49, %v3813, 0
    %v3856 = vsel %vm49, %v3814, 0
    %v3859 = vsel %vm49, %v3815, 0
    %v3862 = vsel %vm49, %v3816, 0
    %v3865 = vsel %vm49, %v3817, 0
    %v3868 = vsel %vm49, %v3818, 0
    %v3871 = vsel %vm49, %v3819, 0
    %3873 = vmatprep.subr.mxu0 0.0
    %3874 = vmatpush1.msra.mxu0 0.0
    %3875 = vmatprep.subr.mxu0 0.0
    %3876 = vmatpush1.msra.mxu0 0.0
    %3877 = vmatprep.subr.mxu0 0.0
    %3878 = vmatpush1.msra.mxu0 0.0
    %3879 = vmatprep.subr.mxu0 0.0
    %3880 = vmatpush1.msra.mxu0 0.0
    %3881 = vmatprep.subr.mxu0 0.0
    %3882 = vmatpush1.msra.mxu0 0.0
    %3883 = vmatprep.subr.mxu0 0.0
    %3884 = vmatpush1.msra.mxu0 0.0
    %3885 = vmatprep.subr.mxu0 0.0
    %3886 = vmatpush1.msra.mxu0 0.0
    %3887 = vmatprep.subr.mxu0 0.0
    %3888 = vmatpush1.msra.mxu0 0.0
    %3889 = vmatprep.subr.mxu0 0.0
    %3890 = vmatpush1.msra.mxu0 0.0
    %3891 = vmatprep.subr.mxu0 0.0
    %3892 = vmatpush1.msra.mxu0 0.0
    %3893 = vmatprep.subr.mxu0 0.0
    %3894 = vmatpush1.msra.mxu0 0.0
    %3895 = vmatprep.subr.mxu0 0.0
    %3896 = vmatpush1.msra.mxu0 0.0
    %3897 = vmatprep.subr.mxu0 0.0
    %3898 = vmatpush1.msra.mxu0 %v3824
    %3899 = vmatprep.subr.mxu0 0.0
    %3900 = vmatpush1.msra.mxu0 %v3823
    %3901 = vmatprep.subr.mxu0 0.0
    %3902 = vmatpush1.msra.mxu0 %v3822
    %3903 = vmatprep.subr.mxu0 0.0
    %3904 = vmatpush1.msra.mxu0 %v3821
    %3905 = vmatprep.subr.mxu0 0.0
    %3906 = vmatpush2.msra.mxu0 0.0
    %3907 = vmatprep.subr.mxu0 0.0
    %3908 = vmatpush2.msra.mxu0 0.0
    %3909 = vmatprep.subr.mxu0 0.0
    %3910 = vmatpush2.msra.mxu0 0.0
    %3911 = vmatprep.subr.mxu0 0.0
    %3912 = vmatpush2.msra.mxu0 0.0
    %3913 = vmatprep.subr.mxu0 0.0
    %3914 = vmatpush2.msra.mxu0 0.0
    %3915 = vmatprep.subr.mxu0 0.0
    %3916 = vmatpush2.msra.mxu0 0.0
    %3917 = vmatprep.subr.mxu0 0.0
    %3918 = vmatpush2.msra.mxu0 0.0
    %3919 = vmatprep.subr.mxu0 0.0
    %3920 = vmatpush2.msra.mxu0 0.0
    %3921 = vmatprep.subr.mxu0 0.0
    %3922 = vmatpush2.msra.mxu0 0.0
    %3923 = vmatprep.subr.mxu0 0.0
    %3924 = vmatpush2.msra.mxu0 0.0
    %3925 = vmatprep.subr.mxu0 0.0
    %3926 = vmatpush2.msra.mxu0 0.0
    %3927 = vmatprep.subr.mxu0 0.0
    %3928 = vmatpush2.msra.mxu0 0.0
    %3929 = vmatprep.subr.mxu0 0.0
    %3930 = vmatpush2.msra.mxu0 0.0
    %3931 = vmatprep.subr.mxu0 0.0
    %3932 = vmatpush2.msra.mxu0 0.0
    %3933 = vmatprep.subr.mxu0 0.0
    %3934 = vmatpush2.msra.mxu0 0.0
    %3935 = vmatprep.subr.mxu0 0.0
    %3936 = vmatpush2.msra.mxu0 0.0
    %3937 = vmatprep.mubr.f32.mxu0 0.0
    %3938 = vmatmul.mubr.f32.gmra.mxu0 %v3826
    %v3939 = vpop.f32.mrf.mxu0
    %v3940 = vadd.f32 0.0, %v3939
    %v3941 = vpop.f32.mrf.mxu0
    %3942 = vmatprep.mubr.f32.mxu0 0.0
    %3943 = vmatmul.mubr.f32.gmra.mxu0 %v3829
    %v3944 = vpop.f32.mrf.mxu0
    %v3945 = vadd.f32 0.0, %v3944
    %v3946 = vpop.f32.mrf.mxu0
    %3947 = vmatprep.mubr.f32.mxu0 0.0
    %3948 = vmatmul.mubr.f32.gmra.mxu0 %v3832
    %v3949 = vpop.f32.mrf.mxu0
    %v3950 = vadd.f32 0.0, %v3949
    %v3951 = vpop.f32.mrf.mxu0
    %3952 = vmatprep.mubr.f32.mxu0 0.0
    %3953 = vmatmul.mubr.f32.gmra.mxu0 %v3835
    %v3954 = vpop.f32.mrf.mxu0
    %v3955 = vadd.f32 0.0, %v3954
    %v3956 = vpop.f32.mrf.mxu0
    %3957 = vmatprep.mubr.f32.mxu0 0.0
    %3958 = vmatmul.mubr.f32.gmra.mxu0 %v3838
    %v3959 = vpop.f32.mrf.mxu0
    %v3960 = vadd.f32 0.0, %v3959
    %v3961 = vpop.f32.mrf.mxu0
    %3962 = vmatprep.mubr.f32.mxu0 0.0
    %3963 = vmatmul.mubr.f32.gmra.mxu0 %v3841
    %v3964 = vpop.f32.mrf.mxu0
    %v3965 = vadd.f32 0.0, %v3964
    %v3966 = vpop.f32.mrf.mxu0
    %3967 = vmatprep.mubr.f32.mxu0 0.0
    %3968 = vmatmul.mubr.f32.gmra.mxu0 %v3844
    %v3969 = vpop.f32.mrf.mxu0
    %v3970 = vadd.f32 0.0, %v3969
    %v3971 = vpop.f32.mrf.mxu0
    %3972 = vmatprep.mubr.f32.mxu0 0.0
    %3973 = vmatmul.mubr.f32.gmra.mxu0 %v3847
    %v3974 = vpop.f32.mrf.mxu0
    %v3975 = vadd.f32 0.0, %v3974
    %v3976 = vpop.f32.mrf.mxu0
    %3977 = vmatprep.mubr.f32.mxu0 0.0
    %3978 = vmatmul.mubr.f32.gmra.mxu0 %v3850
    %v3979 = vpop.f32.mrf.mxu0
    %v3980 = vadd.f32 0.0, %v3979
    %v3981 = vpop.f32.mrf.mxu0
    %3982 = vmatprep.mubr.f32.mxu0 0.0
    %3983 = vmatmul.mubr.f32.gmra.mxu0 %v3853
    %v3984 = vpop.f32.mrf.mxu0
    %v3985 = vadd.f32 0.0, %v3984
    %v3986 = vpop.f32.mrf.mxu0
    %3987 = vmatprep.mubr.f32.mxu0 0.0
    %3988 = vmatmul.mubr.f32.gmra.mxu0 %v3856
    %v3989 = vpop.f32.mrf.mxu0
    %v3990 = vadd.f32 0.0, %v3989
    %v3991 = vpop.f32.mrf.mxu0
    %3992 = vmatprep.mubr.f32.mxu0 0.0
    %3993 = vmatmul.mubr.f32.gmra.mxu0 %v3859
    %v3994 = vpop.f32.mrf.mxu0
    %v3995 = vadd.f32 0.0, %v3994
    %v3996 = vpop.f32.mrf.mxu0
    %3997 = vmatprep.mubr.f32.mxu0 0.0
    %3998 = vmatmul.mubr.f32.gmra.mxu0 %v3862
    %v3999 = vpop.f32.mrf.mxu0
    %v4000 = vadd.f32 0.0, %v3999
    %v4001 = vpop.f32.mrf.mxu0
    %4002 = vmatprep.mubr.f32.mxu0 0.0
    %4003 = vmatmul.mubr.f32.gmra.mxu0 %v3865
    %v4004 = vpop.f32.mrf.mxu0
    %v4005 = vadd.f32 0.0, %v4004
    %v4006 = vpop.f32.mrf.mxu0
    %4007 = vmatprep.mubr.f32.mxu0 0.0
    %4008 = vmatmul.mubr.f32.gmra.mxu0 %v3868
    %v4009 = vpop.f32.mrf.mxu0
    %v4010 = vadd.f32 0.0, %v4009
    %v4011 = vpop.f32.mrf.mxu0
    %4012 = vmatprep.mubr.f32.mxu0 0.0
    %4013 = vmatmul.mubr.f32.gmra.mxu0 %v3871
    %v4014 = vpop.f32.mrf.mxu0
    %v4015 = vadd.f32 0.0, %v4014
    %v4016 = vpop.f32.mrf.mxu0
    %4017 = vdwg.mxu0
    %v4018 = vadd.f32 %v3788, %v3940
    %v4019 = vadd.f32 %v3789, %v3945
    %v4020 = vadd.f32 %v3790, %v3950
    %v4021 = vadd.f32 %v3791, %v3955
    %v4022 = vadd.f32 %v3792, %v3960
    %v4023 = vadd.f32 %v3793, %v3965
    %v4024 = vadd.f32 %v3794, %v3970
    %v4025 = vadd.f32 %v3795, %v3975
    %v4026 = vadd.f32 %v3796, %v3980
    %v4027 = vadd.f32 %v3797, %v3985
    %v4028 = vadd.f32 %v3798, %v3990
    %v4029 = vadd.f32 %v3799, %v3995
    %v4030 = vadd.f32 %v3800, %v4000
    %v4031 = vadd.f32 %v3801, %v4005
    %v4032 = vadd.f32 %v3802, %v4010
    %v4033 = vadd.f32 %v3803, %v4015
    %v4034 = vld [vmem:[%s3098 + $0x1] sm:$0xff]
    %v4035 = vld [vmem:[%s3098 + $0x11] sm:$0xff]
    %v4036 = vld [vmem:[%s3098 + $0x21] sm:$0xff]
    %v4037 = vld [vmem:[%s3098 + $0x31] sm:$0xff]
    %v4038 = vld [vmem:[%s3098 + $0x41] sm:$0xff]
    %v4039 = vld [vmem:[%s3098 + $0x51] sm:$0xff]
    %v4040 = vld [vmem:[%s3098 + $0x61] sm:$0xff]
    %v4041 = vld [vmem:[%s3098 + $0x71] sm:$0xff]
    %v4042 = vld [vmem:[%s3098 + $0xa1] sm:$0xff]
    %v4043 = vld [vmem:[%s3098 + $0xb1] sm:$0xff]
    %v4044 = vld [vmem:[%s3098 + $0xc1] sm:$0xff]
    %v4045 = vld [vmem:[%s3098 + $0xd1] sm:$0xff]
    %v4046 = vld [vmem:[%s3098 + $0xe1] sm:$0xff]
    %v4047 = vld [vmem:[%s3098 + $0xf1] sm:$0xff]
    %v4048 = vld [vmem:[%s3098 + $0x101] sm:$0xff]
    %v4049 = vld [vmem:[%s3098 + $0x111] sm:$0xff]
    %s4050 = scalar_lea.vmem %s7, 128
    %v4051 = vld [vmem:[%s4050] sm:$0xff]
    %v4052 = vld [vmem:[%s4050 + $0x8] sm:$0xff]
    %v4053 = vld [vmem:[%s4050 + $0x10] sm:$0xff]
    %v4054 = vld [vmem:[%s4050 + $0x18] sm:$0xff]
    %v4056 = vsel %vm49, %v4034, 0
    %v4059 = vsel %vm49, %v4035, 0
    %v4062 = vsel %vm49, %v4036, 0
    %v4065 = vsel %vm49, %v4037, 0
    %v4068 = vsel %vm49, %v4038, 0
    %v4071 = vsel %vm49, %v4039, 0
    %v4074 = vsel %vm49, %v4040, 0
    %v4077 = vsel %vm49, %v4041, 0
    %v4080 = vsel %vm49, %v4042, 0
    %v4083 = vsel %vm49, %v4043, 0
    %v4086 = vsel %vm49, %v4044, 0
    %v4089 = vsel %vm49, %v4045, 0
    %v4092 = vsel %vm49, %v4046, 0
    %v4095 = vsel %vm49, %v4047, 0
    %v4098 = vsel %vm49, %v4048, 0
    %v4101 = vsel %vm49, %v4049, 0
    %4103 = vmatprep.subr.mxu0 0.0
    %4104 = vmatpush1.msra.mxu0 0.0
    %4105 = vmatprep.subr.mxu0 0.0
    %4106 = vmatpush1.msra.mxu0 0.0
    %4107 = vmatprep.subr.mxu0 0.0
    %4108 = vmatpush1.msra.mxu0 0.0
    %4109 = vmatprep.subr.mxu0 0.0
    %4110 = vmatpush1.msra.mxu0 0.0
    %4111 = vmatprep.subr.mxu0 0.0
    %4112 = vmatpush1.msra.mxu0 0.0
    %4113 = vmatprep.subr.mxu0 0.0
    %4114 = vmatpush1.msra.mxu0 0.0
    %4115 = vmatprep.subr.mxu0 0.0
    %4116 = vmatpush1.msra.mxu0 0.0
    %4117 = vmatprep.subr.mxu0 0.0
    %4118 = vmatpush1.msra.mxu0 0.0
    %4119 = vmatprep.subr.mxu0 0.0
    %4120 = vmatpush1.msra.mxu0 0.0
    %4121 = vmatprep.subr.mxu0 0.0
    %4122 = vmatpush1.msra.mxu0 0.0
    %4123 = vmatprep.subr.mxu0 0.0
    %4124 = vmatpush1.msra.mxu0 0.0
    %4125 = vmatprep.subr.mxu0 0.0
    %4126 = vmatpush1.msra.mxu0 0.0
    %4127 = vmatprep.subr.mxu0 0.0
    %4128 = vmatpush1.msra.mxu0 %v4054
    %4129 = vmatprep.subr.mxu0 0.0
    %4130 = vmatpush1.msra.mxu0 %v4053
    %4131 = vmatprep.subr.mxu0 0.0
    %4132 = vmatpush1.msra.mxu0 %v4052
    %4133 = vmatprep.subr.mxu0 0.0
    %4134 = vmatpush1.msra.mxu0 %v4051
    %4135 = vmatprep.subr.mxu0 0.0
    %4136 = vmatpush2.msra.mxu0 0.0
    %4137 = vmatprep.subr.mxu0 0.0
    %4138 = vmatpush2.msra.mxu0 0.0
    %4139 = vmatprep.subr.mxu0 0.0
    %4140 = vmatpush2.msra.mxu0 0.0
    %4141 = vmatprep.subr.mxu0 0.0
    %4142 = vmatpush2.msra.mxu0 0.0
    %4143 = vmatprep.subr.mxu0 0.0
    %4144 = vmatpush2.msra.mxu0 0.0
    %4145 = vmatprep.subr.mxu0 0.0
    %4146 = vmatpush2.msra.mxu0 0.0
    %4147 = vmatprep.subr.mxu0 0.0
    %4148 = vmatpush2.msra.mxu0 0.0
    %4149 = vmatprep.subr.mxu0 0.0
    %4150 = vmatpush2.msra.mxu0 0.0
    %4151 = vmatprep.subr.mxu0 0.0
    %4152 = vmatpush2.msra.mxu0 0.0
    %4153 = vmatprep.subr.mxu0 0.0
    %4154 = vmatpush2.msra.mxu0 0.0
    %4155 = vmatprep.subr.mxu0 0.0
    %4156 = vmatpush2.msra.mxu0 0.0
    %4157 = vmatprep.subr.mxu0 0.0
    %4158 = vmatpush2.msra.mxu0 0.0
    %4159 = vmatprep.subr.mxu0 0.0
    %4160 = vmatpush2.msra.mxu0 0.0
    %4161 = vmatprep.subr.mxu0 0.0
    %4162 = vmatpush2.msra.mxu0 0.0
    %4163 = vmatprep.subr.mxu0 0.0
    %4164 = vmatpush2.msra.mxu0 0.0
    %4165 = vmatprep.subr.mxu0 0.0
    %4166 = vmatpush2.msra.mxu0 0.0
    %4167 = vmatprep.mubr.f32.mxu0 0.0
    %4168 = vmatmul.mubr.f32.gmra.mxu0 %v4056
    %v4169 = vpop.f32.mrf.mxu0
    %v4170 = vadd.f32 0.0, %v4169
    %v4171 = vpop.f32.mrf.mxu0
    %4172 = vmatprep.mubr.f32.mxu0 0.0
    %4173 = vmatmul.mubr.f32.gmra.mxu0 %v4059
    %v4174 = vpop.f32.mrf.mxu0
    %v4175 = vadd.f32 0.0, %v4174
    %v4176 = vpop.f32.mrf.mxu0
    %4177 = vmatprep.mubr.f32.mxu0 0.0
    %4178 = vmatmul.mubr.f32.gmra.mxu0 %v4062
    %v4179 = vpop.f32.mrf.mxu0
    %v4180 = vadd.f32 0.0, %v4179
    %v4181 = vpop.f32.mrf.mxu0
    %4182 = vmatprep.mubr.f32.mxu0 0.0
    %4183 = vmatmul.mubr.f32.gmra.mxu0 %v4065
    %v4184 = vpop.f32.mrf.mxu0
    %v4185 = vadd.f32 0.0, %v4184
    %v4186 = vpop.f32.mrf.mxu0
    %4187 = vmatprep.mubr.f32.mxu0 0.0
    %4188 = vmatmul.mubr.f32.gmra.mxu0 %v4068
    %v4189 = vpop.f32.mrf.mxu0
    %v4190 = vadd.f32 0.0, %v4189
    %v4191 = vpop.f32.mrf.mxu0
    %4192 = vmatprep.mubr.f32.mxu0 0.0
    %4193 = vmatmul.mubr.f32.gmra.mxu0 %v4071
    %v4194 = vpop.f32.mrf.mxu0
    %v4195 = vadd.f32 0.0, %v4194
    %v4196 = vpop.f32.mrf.mxu0
    %4197 = vmatprep.mubr.f32.mxu0 0.0
    %4198 = vmatmul.mubr.f32.gmra.mxu0 %v4074
    %v4199 = vpop.f32.mrf.mxu0
    %v4200 = vadd.f32 0.0, %v4199
    %v4201 = vpop.f32.mrf.mxu0
    %4202 = vmatprep.mubr.f32.mxu0 0.0
    %4203 = vmatmul.mubr.f32.gmra.mxu0 %v4077
    %v4204 = vpop.f32.mrf.mxu0
    %v4205 = vadd.f32 0.0, %v4204
    %v4206 = vpop.f32.mrf.mxu0
    %4207 = vmatprep.mubr.f32.mxu0 0.0
    %4208 = vmatmul.mubr.f32.gmra.mxu0 %v4080
    %v4209 = vpop.f32.mrf.mxu0
    %v4210 = vadd.f32 0.0, %v4209
    %v4211 = vpop.f32.mrf.mxu0
    %4212 = vmatprep.mubr.f32.mxu0 0.0
    %4213 = vmatmul.mubr.f32.gmra.mxu0 %v4083
    %v4214 = vpop.f32.mrf.mxu0
    %v4215 = vadd.f32 0.0, %v4214
    %v4216 = vpop.f32.mrf.mxu0
    %4217 = vmatprep.mubr.f32.mxu0 0.0
    %4218 = vmatmul.mubr.f32.gmra.mxu0 %v4086
    %v4219 = vpop.f32.mrf.mxu0
    %v4220 = vadd.f32 0.0, %v4219
    %v4221 = vpop.f32.mrf.mxu0
    %4222 = vmatprep.mubr.f32.mxu0 0.0
    %4223 = vmatmul.mubr.f32.gmra.mxu0 %v4089
    %v4224 = vpop.f32.mrf.mxu0
    %v4225 = vadd.f32 0.0, %v4224
    %v4226 = vpop.f32.mrf.mxu0
    %4227 = vmatprep.mubr.f32.mxu0 0.0
    %4228 = vmatmul.mubr.f32.gmra.mxu0 %v4092
    %v4229 = vpop.f32.mrf.mxu0
    %v4230 = vadd.f32 0.0, %v4229
    %v4231 = vpop.f32.mrf.mxu0
    %4232 = vmatprep.mubr.f32.mxu0 0.0
    %4233 = vmatmul.mubr.f32.gmra.mxu0 %v4095
    %v4234 = vpop.f32.mrf.mxu0
    %v4235 = vadd.f32 0.0, %v4234
    %v4236 = vpop.f32.mrf.mxu0
    %4237 = vmatprep.mubr.f32.mxu0 0.0
    %4238 = vmatmul.mubr.f32.gmra.mxu0 %v4098
    %v4239 = vpop.f32.mrf.mxu0
    %v4240 = vadd.f32 0.0, %v4239
    %v4241 = vpop.f32.mrf.mxu0
    %4242 = vmatprep.mubr.f32.mxu0 0.0
    %4243 = vmatmul.mubr.f32.gmra.mxu0 %v4101
    %v4244 = vpop.f32.mrf.mxu0
    %v4245 = vadd.f32 0.0, %v4244
    %v4246 = vpop.f32.mrf.mxu0
    %4247 = vdwg.mxu0
    %v4248 = vadd.f32 %v4018, %v4170
    %v4249 = vadd.f32 %v4019, %v4175
    %v4250 = vadd.f32 %v4020, %v4180
    %v4251 = vadd.f32 %v4021, %v4185
    %v4252 = vadd.f32 %v4022, %v4190
    %v4253 = vadd.f32 %v4023, %v4195
    %v4254 = vadd.f32 %v4024, %v4200
    %v4255 = vadd.f32 %v4025, %v4205
    %v4256 = vadd.f32 %v4026, %v4210
    %v4257 = vadd.f32 %v4027, %v4215
    %v4258 = vadd.f32 %v4028, %v4220
    %v4259 = vadd.f32 %v4029, %v4225
    %v4260 = vadd.f32 %v4030, %v4230
    %v4261 = vadd.f32 %v4031, %v4235
    %v4262 = vadd.f32 %v4032, %v4240
    %v4263 = vadd.f32 %v4033, %v4245
    %v4264 = vld [vmem:[%s3098 + $0x2] sm:$0xff]
    %v4265 = vld [vmem:[%s3098 + $0x12] sm:$0xff]
    %v4266 = vld [vmem:[%s3098 + $0x22] sm:$0xff]
    %v4267 = vld [vmem:[%s3098 + $0x32] sm:$0xff]
    %v4268 = vld [vmem:[%s3098 + $0x42] sm:$0xff]
    %v4269 = vld [vmem:[%s3098 + $0x52] sm:$0xff]
    %v4270 = vld [vmem:[%s3098 + $0x62] sm:$0xff]
    %v4271 = vld [vmem:[%s3098 + $0x72] sm:$0xff]
    %v4272 = vld [vmem:[%s3098 + $0xa2] sm:$0xff]
    %v4273 = vld [vmem:[%s3098 + $0xb2] sm:$0xff]
    %v4274 = vld [vmem:[%s3098 + $0xc2] sm:$0xff]
    %v4275 = vld [vmem:[%s3098 + $0xd2] sm:$0xff]
    %v4276 = vld [vmem:[%s3098 + $0xe2] sm:$0xff]
    %v4277 = vld [vmem:[%s3098 + $0xf2] sm:$0xff]
    %v4278 = vld [vmem:[%s3098 + $0x102] sm:$0xff]
    %v4279 = vld [vmem:[%s3098 + $0x112] sm:$0xff]
    %s4280 = scalar_lea.vmem %s7, 160
    %v4281 = vld [vmem:[%s4280] sm:$0xff]
    %v4282 = vld [vmem:[%s4280 + $0x8] sm:$0xff]
    %v4283 = vld [vmem:[%s4280 + $0x10] sm:$0xff]
    %v4284 = vld [vmem:[%s4280 + $0x18] sm:$0xff]
    %v4286 = vsel %vm49, %v4264, 0
    %v4289 = vsel %vm49, %v4265, 0
    %v4292 = vsel %vm49, %v4266, 0
    %v4295 = vsel %vm49, %v4267, 0
    %v4298 = vsel %vm49, %v4268, 0
    %v4301 = vsel %vm49, %v4269, 0
    %v4304 = vsel %vm49, %v4270, 0
    %v4307 = vsel %vm49, %v4271, 0
    %v4310 = vsel %vm49, %v4272, 0
    %v4313 = vsel %vm49, %v4273, 0
    %v4316 = vsel %vm49, %v4274, 0
    %v4319 = vsel %vm49, %v4275, 0
    %v4322 = vsel %vm49, %v4276, 0
    %v4325 = vsel %vm49, %v4277, 0
    %v4328 = vsel %vm49, %v4278, 0
    %v4331 = vsel %vm49, %v4279, 0
    %4333 = vmatprep.subr.mxu0 0.0
    %4334 = vmatpush1.msra.mxu0 0.0
    %4335 = vmatprep.subr.mxu0 0.0
    %4336 = vmatpush1.msra.mxu0 0.0
    %4337 = vmatprep.subr.mxu0 0.0
    %4338 = vmatpush1.msra.mxu0 0.0
    %4339 = vmatprep.subr.mxu0 0.0
    %4340 = vmatpush1.msra.mxu0 0.0
    %4341 = vmatprep.subr.mxu0 0.0
    %4342 = vmatpush1.msra.mxu0 0.0
    %4343 = vmatprep.subr.mxu0 0.0
    %4344 = vmatpush1.msra.mxu0 0.0
    %4345 = vmatprep.subr.mxu0 0.0
    %4346 = vmatpush1.msra.mxu0 0.0
    %4347 = vmatprep.subr.mxu0 0.0
    %4348 = vmatpush1.msra.mxu0 0.0
    %4349 = vmatprep.subr.mxu0 0.0
    %4350 = vmatpush1.msra.mxu0 0.0
    %4351 = vmatprep.subr.mxu0 0.0
    %4352 = vmatpush1.msra.mxu0 0.0
    %4353 = vmatprep.subr.mxu0 0.0
    %4354 = vmatpush1.msra.mxu0 0.0
    %4355 = vmatprep.subr.mxu0 0.0
    %4356 = vmatpush1.msra.mxu0 0.0
    %4357 = vmatprep.subr.mxu0 0.0
    %4358 = vmatpush1.msra.mxu0 %v4284
    %4359 = vmatprep.subr.mxu0 0.0
    %4360 = vmatpush1.msra.mxu0 %v4283
    %4361 = vmatprep.subr.mxu0 0.0
    %4362 = vmatpush1.msra.mxu0 %v4282
    %4363 = vmatprep.subr.mxu0 0.0
    %4364 = vmatpush1.msra.mxu0 %v4281
    %4365 = vmatprep.subr.mxu0 0.0
    %4366 = vmatpush2.msra.mxu0 0.0
    %4367 = vmatprep.subr.mxu0 0.0
    %4368 = vmatpush2.msra.mxu0 0.0
    %4369 = vmatprep.subr.mxu0 0.0
    %4370 = vmatpush2.msra.mxu0 0.0
    %4371 = vmatprep.subr.mxu0 0.0
    %4372 = vmatpush2.msra.mxu0 0.0
    %4373 = vmatprep.subr.mxu0 0.0
    %4374 = vmatpush2.msra.mxu0 0.0
    %4375 = vmatprep.subr.mxu0 0.0
    %4376 = vmatpush2.msra.mxu0 0.0
    %4377 = vmatprep.subr.mxu0 0.0
    %4378 = vmatpush2.msra.mxu0 0.0
    %4379 = vmatprep.subr.mxu0 0.0
    %4380 = vmatpush2.msra.mxu0 0.0
    %4381 = vmatprep.subr.mxu0 0.0
    %4382 = vmatpush2.msra.mxu0 0.0
    %4383 = vmatprep.subr.mxu0 0.0
    %4384 = vmatpush2.msra.mxu0 0.0
    %4385 = vmatprep.subr.mxu0 0.0
    %4386 = vmatpush2.msra.mxu0 0.0
    %4387 = vmatprep.subr.mxu0 0.0
    %4388 = vmatpush2.msra.mxu0 0.0
    %4389 = vmatprep.subr.mxu0 0.0
    %4390 = vmatpush2.msra.mxu0 0.0
    %4391 = vmatprep.subr.mxu0 0.0
    %4392 = vmatpush2.msra.mxu0 0.0
    %4393 = vmatprep.subr.mxu0 0.0
    %4394 = vmatpush2.msra.mxu0 0.0
    %4395 = vmatprep.subr.mxu0 0.0
    %4396 = vmatpush2.msra.mxu0 0.0
    %4397 = vmatprep.mubr.f32.mxu0 0.0
    %4398 = vmatmul.mubr.f32.gmra.mxu0 %v4286
    %v4399 = vpop.f32.mrf.mxu0
    %v4400 = vadd.f32 0.0, %v4399
    %v4401 = vpop.f32.mrf.mxu0
    %4402 = vmatprep.mubr.f32.mxu0 0.0
    %4403 = vmatmul.mubr.f32.gmra.mxu0 %v4289
    %v4404 = vpop.f32.mrf.mxu0
    %v4405 = vadd.f32 0.0, %v4404
    %v4406 = vpop.f32.mrf.mxu0
    %4407 = vmatprep.mubr.f32.mxu0 0.0
    %4408 = vmatmul.mubr.f32.gmra.mxu0 %v4292
    %v4409 = vpop.f32.mrf.mxu0
    %v4410 = vadd.f32 0.0, %v4409
    %v4411 = vpop.f32.mrf.mxu0
    %4412 = vmatprep.mubr.f32.mxu0 0.0
    %4413 = vmatmul.mubr.f32.gmra.mxu0 %v4295
    %v4414 = vpop.f32.mrf.mxu0
    %v4415 = vadd.f32 0.0, %v4414
    %v4416 = vpop.f32.mrf.mxu0
    %4417 = vmatprep.mubr.f32.mxu0 0.0
    %4418 = vmatmul.mubr.f32.gmra.mxu0 %v4298
    %v4419 = vpop.f32.mrf.mxu0
    %v4420 = vadd.f32 0.0, %v4419
    %v4421 = vpop.f32.mrf.mxu0
    %4422 = vmatprep.mubr.f32.mxu0 0.0
    %4423 = vmatmul.mubr.f32.gmra.mxu0 %v4301
    %v4424 = vpop.f32.mrf.mxu0
    %v4425 = vadd.f32 0.0, %v4424
    %v4426 = vpop.f32.mrf.mxu0
    %4427 = vmatprep.mubr.f32.mxu0 0.0
    %4428 = vmatmul.mubr.f32.gmra.mxu0 %v4304
    %v4429 = vpop.f32.mrf.mxu0
    %v4430 = vadd.f32 0.0, %v4429
    %v4431 = vpop.f32.mrf.mxu0
    %4432 = vmatprep.mubr.f32.mxu0 0.0
    %4433 = vmatmul.mubr.f32.gmra.mxu0 %v4307
    %v4434 = vpop.f32.mrf.mxu0
    %v4435 = vadd.f32 0.0, %v4434
    %v4436 = vpop.f32.mrf.mxu0
    %4437 = vmatprep.mubr.f32.mxu0 0.0
    %4438 = vmatmul.mubr.f32.gmra.mxu0 %v4310
    %v4439 = vpop.f32.mrf.mxu0
    %v4440 = vadd.f32 0.0, %v4439
    %v4441 = vpop.f32.mrf.mxu0
    %4442 = vmatprep.mubr.f32.mxu0 0.0
    %4443 = vmatmul.mubr.f32.gmra.mxu0 %v4313
    %v4444 = vpop.f32.mrf.mxu0
    %v4445 = vadd.f32 0.0, %v4444
    %v4446 = vpop.f32.mrf.mxu0
    %4447 = vmatprep.mubr.f32.mxu0 0.0
    %4448 = vmatmul.mubr.f32.gmra.mxu0 %v4316
    %v4449 = vpop.f32.mrf.mxu0
    %v4450 = vadd.f32 0.0, %v4449
    %v4451 = vpop.f32.mrf.mxu0
    %4452 = vmatprep.mubr.f32.mxu0 0.0
    %4453 = vmatmul.mubr.f32.gmra.mxu0 %v4319
    %v4454 = vpop.f32.mrf.mxu0
    %v4455 = vadd.f32 0.0, %v4454
    %v4456 = vpop.f32.mrf.mxu0
    %4457 = vmatprep.mubr.f32.mxu0 0.0
    %4458 = vmatmul.mubr.f32.gmra.mxu0 %v4322
    %v4459 = vpop.f32.mrf.mxu0
    %v4460 = vadd.f32 0.0, %v4459
    %v4461 = vpop.f32.mrf.mxu0
    %4462 = vmatprep.mubr.f32.mxu0 0.0
    %4463 = vmatmul.mubr.f32.gmra.mxu0 %v4325
    %v4464 = vpop.f32.mrf.mxu0
    %v4465 = vadd.f32 0.0, %v4464
    %v4466 = vpop.f32.mrf.mxu0
    %4467 = vmatprep.mubr.f32.mxu0 0.0
    %4468 = vmatmul.mubr.f32.gmra.mxu0 %v4328
    %v4469 = vpop.f32.mrf.mxu0
    %v4470 = vadd.f32 0.0, %v4469
    %v4471 = vpop.f32.mrf.mxu0
    %4472 = vmatprep.mubr.f32.mxu0 0.0
    %4473 = vmatmul.mubr.f32.gmra.mxu0 %v4331
    %v4474 = vpop.f32.mrf.mxu0
    %v4475 = vadd.f32 0.0, %v4474
    %v4476 = vpop.f32.mrf.mxu0
    %4477 = vdwg.mxu0
    %v4478 = vadd.f32 %v4248, %v4400
    %v4479 = vadd.f32 %v4249, %v4405
    %v4480 = vadd.f32 %v4250, %v4410
    %v4481 = vadd.f32 %v4251, %v4415
    %v4482 = vadd.f32 %v4252, %v4420
    %v4483 = vadd.f32 %v4253, %v4425
    %v4484 = vadd.f32 %v4254, %v4430
    %v4485 = vadd.f32 %v4255, %v4435
    %v4486 = vadd.f32 %v4256, %v4440
    %v4487 = vadd.f32 %v4257, %v4445
    %v4488 = vadd.f32 %v4258, %v4450
    %v4489 = vadd.f32 %v4259, %v4455
    %v4490 = vadd.f32 %v4260, %v4460
    %v4491 = vadd.f32 %v4261, %v4465
    %v4492 = vadd.f32 %v4262, %v4470
    %v4493 = vadd.f32 %v4263, %v4475
    %s4494 = scalar_lea.vmem [#allocation4], 32
    %v4495 = vld [vmem:[%s4494] sm:$0xff]
    %v4496 = vld [vmem:[%s4494 + $0x10] sm:$0xff]
    %v4497 = vld [vmem:[%s4494 + $0x20] sm:$0xff]
    %v4498 = vld [vmem:[%s4494 + $0x30] sm:$0xff]
    %v4499 = vld [vmem:[%s4494 + $0x40] sm:$0xff]
    %v4500 = vld [vmem:[%s4494 + $0x50] sm:$0xff]
    %v4501 = vld [vmem:[%s4494 + $0x60] sm:$0xff]
    %v4502 = vld [vmem:[%s4494 + $0x70] sm:$0xff]
    %v4503 = vld [vmem:[%s4494 + $0xa0] sm:$0xff]
    %v4504 = vld [vmem:[%s4494 + $0xb0] sm:$0xff]
    %v4505 = vld [vmem:[%s4494 + $0xc0] sm:$0xff]
    %v4506 = vld [vmem:[%s4494 + $0xd0] sm:$0xff]
    %v4507 = vld [vmem:[%s4494 + $0xe0] sm:$0xff]
    %v4508 = vld [vmem:[%s4494 + $0xf0] sm:$0xff]
    %v4509 = vld [vmem:[%s4494 + $0x100] sm:$0xff]
    %v4510 = vld [vmem:[%s4494 + $0x110] sm:$0xff]
    %s4511 = scalar_lea.vmem %s7, 192
    %v4512 = vld [vmem:[%s4511] sm:$0xff]
    %v4513 = vld [vmem:[%s4511 + $0x8] sm:$0xff]
    %v4514 = vld [vmem:[%s4511 + $0x10] sm:$0xff]
    %v4515 = vld [vmem:[%s4511 + $0x18] sm:$0xff]
    %v4517 = vsel %vm49, %v4495, 0
    %v4520 = vsel %vm49, %v4496, 0
    %v4523 = vsel %vm49, %v4497, 0
    %v4526 = vsel %vm49, %v4498, 0
    %v4529 = vsel %vm49, %v4499, 0
    %v4532 = vsel %vm49, %v4500, 0
    %v4535 = vsel %vm49, %v4501, 0
    %v4538 = vsel %vm49, %v4502, 0
    %v4541 = vsel %vm49, %v4503, 0
    %v4544 = vsel %vm49, %v4504, 0
    %v4547 = vsel %vm49, %v4505, 0
    %v4550 = vsel %vm49, %v4506, 0
    %v4553 = vsel %vm49, %v4507, 0
    %v4556 = vsel %vm49, %v4508, 0
    %v4559 = vsel %vm49, %v4509, 0
    %v4562 = vsel %vm49, %v4510, 0
    %4564 = vmatprep.subr.mxu0 0.0
    %4565 = vmatpush1.msra.mxu0 0.0
    %4566 = vmatprep.subr.mxu0 0.0
    %4567 = vmatpush1.msra.mxu0 0.0
    %4568 = vmatprep.subr.mxu0 0.0
    %4569 = vmatpush1.msra.mxu0 0.0
    %4570 = vmatprep.subr.mxu0 0.0
    %4571 = vmatpush1.msra.mxu0 0.0
    %4572 = vmatprep.subr.mxu0 0.0
    %4573 = vmatpush1.msra.mxu0 0.0
    %4574 = vmatprep.subr.mxu0 0.0
    %4575 = vmatpush1.msra.mxu0 0.0
    %4576 = vmatprep.subr.mxu0 0.0
    %4577 = vmatpush1.msra.mxu0 0.0
    %4578 = vmatprep.subr.mxu0 0.0
    %4579 = vmatpush1.msra.mxu0 0.0
    %4580 = vmatprep.subr.mxu0 0.0
    %4581 = vmatpush1.msra.mxu0 0.0
    %4582 = vmatprep.subr.mxu0 0.0
    %4583 = vmatpush1.msra.mxu0 0.0
    %4584 = vmatprep.subr.mxu0 0.0
    %4585 = vmatpush1.msra.mxu0 0.0
    %4586 = vmatprep.subr.mxu0 0.0
    %4587 = vmatpush1.msra.mxu0 0.0
    %4588 = vmatprep.subr.mxu0 0.0
    %4589 = vmatpush1.msra.mxu0 %v4515
    %4590 = vmatprep.subr.mxu0 0.0
    %4591 = vmatpush1.msra.mxu0 %v4514
    %4592 = vmatprep.subr.mxu0 0.0
    %4593 = vmatpush1.msra.mxu0 %v4513
    %4594 = vmatprep.subr.mxu0 0.0
    %4595 = vmatpush1.msra.mxu0 %v4512
    %4596 = vmatprep.subr.mxu0 0.0
    %4597 = vmatpush2.msra.mxu0 0.0
    %4598 = vmatprep.subr.mxu0 0.0
    %4599 = vmatpush2.msra.mxu0 0.0
    %4600 = vmatprep.subr.mxu0 0.0
    %4601 = vmatpush2.msra.mxu0 0.0
    %4602 = vmatprep.subr.mxu0 0.0
    %4603 = vmatpush2.msra.mxu0 0.0
    %4604 = vmatprep.subr.mxu0 0.0
    %4605 = vmatpush2.msra.mxu0 0.0
    %4606 = vmatprep.subr.mxu0 0.0
    %4607 = vmatpush2.msra.mxu0 0.0
    %4608 = vmatprep.subr.mxu0 0.0
    %4609 = vmatpush2.msra.mxu0 0.0
    %4610 = vmatprep.subr.mxu0 0.0
    %4611 = vmatpush2.msra.mxu0 0.0
    %4612 = vmatprep.subr.mxu0 0.0
    %4613 = vmatpush2.msra.mxu0 0.0
    %4614 = vmatprep.subr.mxu0 0.0
    %4615 = vmatpush2.msra.mxu0 0.0
    %4616 = vmatprep.subr.mxu0 0.0
    %4617 = vmatpush2.msra.mxu0 0.0
    %4618 = vmatprep.subr.mxu0 0.0
    %4619 = vmatpush2.msra.mxu0 0.0
    %4620 = vmatprep.subr.mxu0 0.0
    %4621 = vmatpush2.msra.mxu0 0.0
    %4622 = vmatprep.subr.mxu0 0.0
    %4623 = vmatpush2.msra.mxu0 0.0
    %4624 = vmatprep.subr.mxu0 0.0
    %4625 = vmatpush2.msra.mxu0 0.0
    %4626 = vmatprep.subr.mxu0 0.0
    %4627 = vmatpush2.msra.mxu0 0.0
    %4628 = vmatprep.mubr.f32.mxu0 0.0
    %4629 = vmatmul.mubr.f32.gmra.mxu0 %v4517
    %v4630 = vpop.f32.mrf.mxu0
    %v4631 = vadd.f32 0.0, %v4630
    %v4632 = vpop.f32.mrf.mxu0
    %4633 = vmatprep.mubr.f32.mxu0 0.0
    %4634 = vmatmul.mubr.f32.gmra.mxu0 %v4520
    %v4635 = vpop.f32.mrf.mxu0
    %v4636 = vadd.f32 0.0, %v4635
    %v4637 = vpop.f32.mrf.mxu0
    %4638 = vmatprep.mubr.f32.mxu0 0.0
    %4639 = vmatmul.mubr.f32.gmra.mxu0 %v4523
    %v4640 = vpop.f32.mrf.mxu0
    %v4641 = vadd.f32 0.0, %v4640
    %v4642 = vpop.f32.mrf.mxu0
    %4643 = vmatprep.mubr.f32.mxu0 0.0
    %4644 = vmatmul.mubr.f32.gmra.mxu0 %v4526
    %v4645 = vpop.f32.mrf.mxu0
    %v4646 = vadd.f32 0.0, %v4645
    %v4647 = vpop.f32.mrf.mxu0
    %4648 = vmatprep.mubr.f32.mxu0 0.0
    %4649 = vmatmul.mubr.f32.gmra.mxu0 %v4529
    %v4650 = vpop.f32.mrf.mxu0
    %v4651 = vadd.f32 0.0, %v4650
    %v4652 = vpop.f32.mrf.mxu0
    %4653 = vmatprep.mubr.f32.mxu0 0.0
    %4654 = vmatmul.mubr.f32.gmra.mxu0 %v4532
    %v4655 = vpop.f32.mrf.mxu0
    %v4656 = vadd.f32 0.0, %v4655
    %v4657 = vpop.f32.mrf.mxu0
    %4658 = vmatprep.mubr.f32.mxu0 0.0
    %4659 = vmatmul.mubr.f32.gmra.mxu0 %v4535
    %v4660 = vpop.f32.mrf.mxu0
    %v4661 = vadd.f32 0.0, %v4660
    %v4662 = vpop.f32.mrf.mxu0
    %4663 = vmatprep.mubr.f32.mxu0 0.0
    %4664 = vmatmul.mubr.f32.gmra.mxu0 %v4538
    %v4665 = vpop.f32.mrf.mxu0
    %v4666 = vadd.f32 0.0, %v4665
    %v4667 = vpop.f32.mrf.mxu0
    %4668 = vmatprep.mubr.f32.mxu0 0.0
    %4669 = vmatmul.mubr.f32.gmra.mxu0 %v4541
    %v4670 = vpop.f32.mrf.mxu0
    %v4671 = vadd.f32 0.0, %v4670
    %v4672 = vpop.f32.mrf.mxu0
    %4673 = vmatprep.mubr.f32.mxu0 0.0
    %4674 = vmatmul.mubr.f32.gmra.mxu0 %v4544
    %v4675 = vpop.f32.mrf.mxu0
    %v4676 = vadd.f32 0.0, %v4675
    %v4677 = vpop.f32.mrf.mxu0
    %4678 = vmatprep.mubr.f32.mxu0 0.0
    %4679 = vmatmul.mubr.f32.gmra.mxu0 %v4547
    %v4680 = vpop.f32.mrf.mxu0
    %v4681 = vadd.f32 0.0, %v4680
    %v4682 = vpop.f32.mrf.mxu0
    %4683 = vmatprep.mubr.f32.mxu0 0.0
    %4684 = vmatmul.mubr.f32.gmra.mxu0 %v4550
    %v4685 = vpop.f32.mrf.mxu0
    %v4686 = vadd.f32 0.0, %v4685
    %v4687 = vpop.f32.mrf.mxu0
    %4688 = vmatprep.mubr.f32.mxu0 0.0
    %4689 = vmatmul.mubr.f32.gmra.mxu0 %v4553
    %v4690 = vpop.f32.mrf.mxu0
    %v4691 = vadd.f32 0.0, %v4690
    %v4692 = vpop.f32.mrf.mxu0
    %4693 = vmatprep.mubr.f32.mxu0 0.0
    %4694 = vmatmul.mubr.f32.gmra.mxu0 %v4556
    %v4695 = vpop.f32.mrf.mxu0
    %v4696 = vadd.f32 0.0, %v4695
    %v4697 = vpop.f32.mrf.mxu0
    %4698 = vmatprep.mubr.f32.mxu0 0.0
    %4699 = vmatmul.mubr.f32.gmra.mxu0 %v4559
    %v4700 = vpop.f32.mrf.mxu0
    %v4701 = vadd.f32 0.0, %v4700
    %v4702 = vpop.f32.mrf.mxu0
    %4703 = vmatprep.mubr.f32.mxu0 0.0
    %4704 = vmatmul.mubr.f32.gmra.mxu0 %v4562
    %v4705 = vpop.f32.mrf.mxu0
    %v4706 = vadd.f32 0.0, %v4705
    %v4707 = vpop.f32.mrf.mxu0
    %4708 = vdwg.mxu0
    %v4709 = vadd.f32 %v4478, %v4631
    %v4710 = vadd.f32 %v4479, %v4636
    %v4711 = vadd.f32 %v4480, %v4641
    %v4712 = vadd.f32 %v4481, %v4646
    %v4713 = vadd.f32 %v4482, %v4651
    %v4714 = vadd.f32 %v4483, %v4656
    %v4715 = vadd.f32 %v4484, %v4661
    %v4716 = vadd.f32 %v4485, %v4666
    %v4717 = vadd.f32 %v4486, %v4671
    %v4718 = vadd.f32 %v4487, %v4676
    %v4719 = vadd.f32 %v4488, %v4681
    %v4720 = vadd.f32 %v4489, %v4686
    %v4721 = vadd.f32 %v4490, %v4691
    %v4722 = vadd.f32 %v4491, %v4696
    %v4723 = vadd.f32 %v4492, %v4701
    %v4724 = vadd.f32 %v4493, %v4706
    %v4725 = vld [vmem:[%s4494 + $0x1] sm:$0xff]
    %v4726 = vld [vmem:[%s4494 + $0x11] sm:$0xff]
    %v4727 = vld [vmem:[%s4494 + $0x21] sm:$0xff]
    %v4728 = vld [vmem:[%s4494 + $0x31] sm:$0xff]
    %v4729 = vld [vmem:[%s4494 + $0x41] sm:$0xff]
    %v4730 = vld [vmem:[%s4494 + $0x51] sm:$0xff]
    %v4731 = vld [vmem:[%s4494 + $0x61] sm:$0xff]
    %v4732 = vld [vmem:[%s4494 + $0x71] sm:$0xff]
    %v4733 = vld [vmem:[%s4494 + $0xa1] sm:$0xff]
    %v4734 = vld [vmem:[%s4494 + $0xb1] sm:$0xff]
    %v4735 = vld [vmem:[%s4494 + $0xc1] sm:$0xff]
    %v4736 = vld [vmem:[%s4494 + $0xd1] sm:$0xff]
    %v4737 = vld [vmem:[%s4494 + $0xe1] sm:$0xff]
    %v4738 = vld [vmem:[%s4494 + $0xf1] sm:$0xff]
    %v4739 = vld [vmem:[%s4494 + $0x101] sm:$0xff]
    %v4740 = vld [vmem:[%s4494 + $0x111] sm:$0xff]
    %s4741 = scalar_lea.vmem %s7, 224
    %v4742 = vld [vmem:[%s4741] sm:$0xff]
    %v4743 = vld [vmem:[%s4741 + $0x8] sm:$0xff]
    %v4744 = vld [vmem:[%s4741 + $0x10] sm:$0xff]
    %v4745 = vld [vmem:[%s4741 + $0x18] sm:$0xff]
    %v4747 = vsel %vm49, %v4725, 0
    %v4750 = vsel %vm49, %v4726, 0
    %v4753 = vsel %vm49, %v4727, 0
    %v4756 = vsel %vm49, %v4728, 0
    %v4759 = vsel %vm49, %v4729, 0
    %v4762 = vsel %vm49, %v4730, 0
    %v4765 = vsel %vm49, %v4731, 0
    %v4768 = vsel %vm49, %v4732, 0
    %v4771 = vsel %vm49, %v4733, 0
    %v4774 = vsel %vm49, %v4734, 0
    %v4777 = vsel %vm49, %v4735, 0
    %v4780 = vsel %vm49, %v4736, 0
    %v4783 = vsel %vm49, %v4737, 0
    %v4786 = vsel %vm49, %v4738, 0
    %v4789 = vsel %vm49, %v4739, 0
    %v4792 = vsel %vm49, %v4740, 0
    %4794 = vmatprep.subr.mxu0 0.0
    %4795 = vmatpush1.msra.mxu0 0.0
    %4796 = vmatprep.subr.mxu0 0.0
    %4797 = vmatpush1.msra.mxu0 0.0
    %4798 = vmatprep.subr.mxu0 0.0
    %4799 = vmatpush1.msra.mxu0 0.0
    %4800 = vmatprep.subr.mxu0 0.0
    %4801 = vmatpush1.msra.mxu0 0.0
    %4802 = vmatprep.subr.mxu0 0.0
    %4803 = vmatpush1.msra.mxu0 0.0
    %4804 = vmatprep.subr.mxu0 0.0
    %4805 = vmatpush1.msra.mxu0 0.0
    %4806 = vmatprep.subr.mxu0 0.0
    %4807 = vmatpush1.msra.mxu0 0.0
    %4808 = vmatprep.subr.mxu0 0.0
    %4809 = vmatpush1.msra.mxu0 0.0
    %4810 = vmatprep.subr.mxu0 0.0
    %4811 = vmatpush1.msra.mxu0 0.0
    %4812 = vmatprep.subr.mxu0 0.0
    %4813 = vmatpush1.msra.mxu0 0.0
    %4814 = vmatprep.subr.mxu0 0.0
    %4815 = vmatpush1.msra.mxu0 0.0
    %4816 = vmatprep.subr.mxu0 0.0
    %4817 = vmatpush1.msra.mxu0 0.0
    %4818 = vmatprep.subr.mxu0 0.0
    %4819 = vmatpush1.msra.mxu0 %v4745
    %4820 = vmatprep.subr.mxu0 0.0
    %4821 = vmatpush1.msra.mxu0 %v4744
    %4822 = vmatprep.subr.mxu0 0.0
    %4823 = vmatpush1.msra.mxu0 %v4743
    %4824 = vmatprep.subr.mxu0 0.0
    %4825 = vmatpush1.msra.mxu0 %v4742
    %4826 = vmatprep.subr.mxu0 0.0
    %4827 = vmatpush2.msra.mxu0 0.0
    %4828 = vmatprep.subr.mxu0 0.0
    %4829 = vmatpush2.msra.mxu0 0.0
    %4830 = vmatprep.subr.mxu0 0.0
    %4831 = vmatpush2.msra.mxu0 0.0
    %4832 = vmatprep.subr.mxu0 0.0
    %4833 = vmatpush2.msra.mxu0 0.0
    %4834 = vmatprep.subr.mxu0 0.0
    %4835 = vmatpush2.msra.mxu0 0.0
    %4836 = vmatprep.subr.mxu0 0.0
    %4837 = vmatpush2.msra.mxu0 0.0
    %4838 = vmatprep.subr.mxu0 0.0
    %4839 = vmatpush2.msra.mxu0 0.0
    %4840 = vmatprep.subr.mxu0 0.0
    %4841 = vmatpush2.msra.mxu0 0.0
    %4842 = vmatprep.subr.mxu0 0.0
    %4843 = vmatpush2.msra.mxu0 0.0
    %4844 = vmatprep.subr.mxu0 0.0
    %4845 = vmatpush2.msra.mxu0 0.0
    %4846 = vmatprep.subr.mxu0 0.0
    %4847 = vmatpush2.msra.mxu0 0.0
    %4848 = vmatprep.subr.mxu0 0.0
    %4849 = vmatpush2.msra.mxu0 0.0
    %4850 = vmatprep.subr.mxu0 0.0
    %4851 = vmatpush2.msra.mxu0 0.0
    %4852 = vmatprep.subr.mxu0 0.0
    %4853 = vmatpush2.msra.mxu0 0.0
    %4854 = vmatprep.subr.mxu0 0.0
    %4855 = vmatpush2.msra.mxu0 0.0
    %4856 = vmatprep.subr.mxu0 0.0
    %4857 = vmatpush2.msra.mxu0 0.0
    %4858 = vmatprep.mubr.f32.mxu0 0.0
    %4859 = vmatmul.mubr.f32.gmra.mxu0 %v4747
    %v4860 = vpop.f32.mrf.mxu0
    %v4861 = vadd.f32 0.0, %v4860
    %v4862 = vpop.f32.mrf.mxu0
    %4863 = vmatprep.mubr.f32.mxu0 0.0
    %4864 = vmatmul.mubr.f32.gmra.mxu0 %v4750
    %v4865 = vpop.f32.mrf.mxu0
    %v4866 = vadd.f32 0.0, %v4865
    %v4867 = vpop.f32.mrf.mxu0
    %4868 = vmatprep.mubr.f32.mxu0 0.0
    %4869 = vmatmul.mubr.f32.gmra.mxu0 %v4753
    %v4870 = vpop.f32.mrf.mxu0
    %v4871 = vadd.f32 0.0, %v4870
    %v4872 = vpop.f32.mrf.mxu0
    %4873 = vmatprep.mubr.f32.mxu0 0.0
    %4874 = vmatmul.mubr.f32.gmra.mxu0 %v4756
    %v4875 = vpop.f32.mrf.mxu0
    %v4876 = vadd.f32 0.0, %v4875
    %v4877 = vpop.f32.mrf.mxu0
    %4878 = vmatprep.mubr.f32.mxu0 0.0
    %4879 = vmatmul.mubr.f32.gmra.mxu0 %v4759
    %v4880 = vpop.f32.mrf.mxu0
    %v4881 = vadd.f32 0.0, %v4880
    %v4882 = vpop.f32.mrf.mxu0
    %4883 = vmatprep.mubr.f32.mxu0 0.0
    %4884 = vmatmul.mubr.f32.gmra.mxu0 %v4762
    %v4885 = vpop.f32.mrf.mxu0
    %v4886 = vadd.f32 0.0, %v4885
    %v4887 = vpop.f32.mrf.mxu0
    %4888 = vmatprep.mubr.f32.mxu0 0.0
    %4889 = vmatmul.mubr.f32.gmra.mxu0 %v4765
    %v4890 = vpop.f32.mrf.mxu0
    %v4891 = vadd.f32 0.0, %v4890
    %v4892 = vpop.f32.mrf.mxu0
    %4893 = vmatprep.mubr.f32.mxu0 0.0
    %4894 = vmatmul.mubr.f32.gmra.mxu0 %v4768
    %v4895 = vpop.f32.mrf.mxu0
    %v4896 = vadd.f32 0.0, %v4895
    %v4897 = vpop.f32.mrf.mxu0
    %4898 = vmatprep.mubr.f32.mxu0 0.0
    %4899 = vmatmul.mubr.f32.gmra.mxu0 %v4771
    %v4900 = vpop.f32.mrf.mxu0
    %v4901 = vadd.f32 0.0, %v4900
    %v4902 = vpop.f32.mrf.mxu0
    %4903 = vmatprep.mubr.f32.mxu0 0.0
    %4904 = vmatmul.mubr.f32.gmra.mxu0 %v4774
    %v4905 = vpop.f32.mrf.mxu0
    %v4906 = vadd.f32 0.0, %v4905
    %v4907 = vpop.f32.mrf.mxu0
    %4908 = vmatprep.mubr.f32.mxu0 0.0
    %4909 = vmatmul.mubr.f32.gmra.mxu0 %v4777
    %v4910 = vpop.f32.mrf.mxu0
    %v4911 = vadd.f32 0.0, %v4910
    %v4912 = vpop.f32.mrf.mxu0
    %4913 = vmatprep.mubr.f32.mxu0 0.0
    %4914 = vmatmul.mubr.f32.gmra.mxu0 %v4780
    %v4915 = vpop.f32.mrf.mxu0
    %v4916 = vadd.f32 0.0, %v4915
    %v4917 = vpop.f32.mrf.mxu0
    %4918 = vmatprep.mubr.f32.mxu0 0.0
    %4919 = vmatmul.mubr.f32.gmra.mxu0 %v4783
    %v4920 = vpop.f32.mrf.mxu0
    %v4921 = vadd.f32 0.0, %v4920
    %v4922 = vpop.f32.mrf.mxu0
    %4923 = vmatprep.mubr.f32.mxu0 0.0
    %4924 = vmatmul.mubr.f32.gmra.mxu0 %v4786
    %v4925 = vpop.f32.mrf.mxu0
    %v4926 = vadd.f32 0.0, %v4925
    %v4927 = vpop.f32.mrf.mxu0
    %4928 = vmatprep.mubr.f32.mxu0 0.0
    %4929 = vmatmul.mubr.f32.gmra.mxu0 %v4789
    %v4930 = vpop.f32.mrf.mxu0
    %v4931 = vadd.f32 0.0, %v4930
    %v4932 = vpop.f32.mrf.mxu0
    %4933 = vmatprep.mubr.f32.mxu0 0.0
    %4934 = vmatmul.mubr.f32.gmra.mxu0 %v4792
    %v4935 = vpop.f32.mrf.mxu0
    %v4936 = vadd.f32 0.0, %v4935
    %v4937 = vpop.f32.mrf.mxu0
    %4938 = vdwg.mxu0
    %v4939 = vadd.f32 %v4709, %v4861
    %v4940 = vadd.f32 %v4710, %v4866
    %v4941 = vadd.f32 %v4711, %v4871
    %v4942 = vadd.f32 %v4712, %v4876
    %v4943 = vadd.f32 %v4713, %v4881
    %v4944 = vadd.f32 %v4714, %v4886
    %v4945 = vadd.f32 %v4715, %v4891
    %v4946 = vadd.f32 %v4716, %v4896
    %v4947 = vadd.f32 %v4717, %v4901
    %v4948 = vadd.f32 %v4718, %v4906
    %v4949 = vadd.f32 %v4719, %v4911
    %v4950 = vadd.f32 %v4720, %v4916
    %v4951 = vadd.f32 %v4721, %v4921
    %v4952 = vadd.f32 %v4722, %v4926
    %v4953 = vadd.f32 %v4723, %v4931
    %v4954 = vadd.f32 %v4724, %v4936
    %v4955 = vld [vmem:[%s4494 + $0x2] sm:$0xff]
    %v4956 = vld [vmem:[%s4494 + $0x12] sm:$0xff]
    %v4957 = vld [vmem:[%s4494 + $0x22] sm:$0xff]
    %v4958 = vld [vmem:[%s4494 + $0x32] sm:$0xff]
    %v4959 = vld [vmem:[%s4494 + $0x42] sm:$0xff]
    %v4960 = vld [vmem:[%s4494 + $0x52] sm:$0xff]
    %v4961 = vld [vmem:[%s4494 + $0x62] sm:$0xff]
    %v4962 = vld [vmem:[%s4494 + $0x72] sm:$0xff]
    %v4963 = vld [vmem:[%s4494 + $0xa2] sm:$0xff]
    %v4964 = vld [vmem:[%s4494 + $0xb2] sm:$0xff]
    %v4965 = vld [vmem:[%s4494 + $0xc2] sm:$0xff]
    %v4966 = vld [vmem:[%s4494 + $0xd2] sm:$0xff]
    %v4967 = vld [vmem:[%s4494 + $0xe2] sm:$0xff]
    %v4968 = vld [vmem:[%s4494 + $0xf2] sm:$0xff]
    %v4969 = vld [vmem:[%s4494 + $0x102] sm:$0xff]
    %v4970 = vld [vmem:[%s4494 + $0x112] sm:$0xff]
    %s4971 = scalar_lea.vmem %s7, 256
    %v4972 = vld [vmem:[%s4971] sm:$0xff]
    %v4973 = vld [vmem:[%s4971 + $0x8] sm:$0xff]
    %v4974 = vld [vmem:[%s4971 + $0x10] sm:$0xff]
    %v4975 = vld [vmem:[%s4971 + $0x18] sm:$0xff]
    %v4977 = vsel %vm49, %v4955, 0
    %v4980 = vsel %vm49, %v4956, 0
    %v4983 = vsel %vm49, %v4957, 0
    %v4986 = vsel %vm49, %v4958, 0
    %v4989 = vsel %vm49, %v4959, 0
    %v4992 = vsel %vm49, %v4960, 0
    %v4995 = vsel %vm49, %v4961, 0
    %v4998 = vsel %vm49, %v4962, 0
    %v5001 = vsel %vm49, %v4963, 0
    %v5004 = vsel %vm49, %v4964, 0
    %v5007 = vsel %vm49, %v4965, 0
    %v5010 = vsel %vm49, %v4966, 0
    %v5013 = vsel %vm49, %v4967, 0
    %v5016 = vsel %vm49, %v4968, 0
    %v5019 = vsel %vm49, %v4969, 0
    %v5022 = vsel %vm49, %v4970, 0
    %5024 = vmatprep.subr.mxu0 0.0
    %5025 = vmatpush1.msra.mxu0 0.0
    %5026 = vmatprep.subr.mxu0 0.0
    %5027 = vmatpush1.msra.mxu0 0.0
    %5028 = vmatprep.subr.mxu0 0.0
    %5029 = vmatpush1.msra.mxu0 0.0
    %5030 = vmatprep.subr.mxu0 0.0
    %5031 = vmatpush1.msra.mxu0 0.0
    %5032 = vmatprep.subr.mxu0 0.0
    %5033 = vmatpush1.msra.mxu0 0.0
    %5034 = vmatprep.subr.mxu0 0.0
    %5035 = vmatpush1.msra.mxu0 0.0
    %5036 = vmatprep.subr.mxu0 0.0
    %5037 = vmatpush1.msra.mxu0 0.0
    %5038 = vmatprep.subr.mxu0 0.0
    %5039 = vmatpush1.msra.mxu0 0.0
    %5040 = vmatprep.subr.mxu0 0.0
    %5041 = vmatpush1.msra.mxu0 0.0
    %5042 = vmatprep.subr.mxu0 0.0
    %5043 = vmatpush1.msra.mxu0 0.0
    %5044 = vmatprep.subr.mxu0 0.0
    %5045 = vmatpush1.msra.mxu0 0.0
    %5046 = vmatprep.subr.mxu0 0.0
    %5047 = vmatpush1.msra.mxu0 0.0
    %5048 = vmatprep.subr.mxu0 0.0
    %5049 = vmatpush1.msra.mxu0 %v4975
    %5050 = vmatprep.subr.mxu0 0.0
    %5051 = vmatpush1.msra.mxu0 %v4974
    %5052 = vmatprep.subr.mxu0 0.0
    %5053 = vmatpush1.msra.mxu0 %v4973
    %5054 = vmatprep.subr.mxu0 0.0
    %5055 = vmatpush1.msra.mxu0 %v4972
    %5056 = vmatprep.subr.mxu0 0.0
    %5057 = vmatpush2.msra.mxu0 0.0
    %5058 = vmatprep.subr.mxu0 0.0
    %5059 = vmatpush2.msra.mxu0 0.0
    %5060 = vmatprep.subr.mxu0 0.0
    %5061 = vmatpush2.msra.mxu0 0.0
    %5062 = vmatprep.subr.mxu0 0.0
    %5063 = vmatpush2.msra.mxu0 0.0
    %5064 = vmatprep.subr.mxu0 0.0
    %5065 = vmatpush2.msra.mxu0 0.0
    %5066 = vmatprep.subr.mxu0 0.0
    %5067 = vmatpush2.msra.mxu0 0.0
    %5068 = vmatprep.subr.mxu0 0.0
    %5069 = vmatpush2.msra.mxu0 0.0
    %5070 = vmatprep.subr.mxu0 0.0
    %5071 = vmatpush2.msra.mxu0 0.0
    %5072 = vmatprep.subr.mxu0 0.0
    %5073 = vmatpush2.msra.mxu0 0.0
    %5074 = vmatprep.subr.mxu0 0.0
    %5075 = vmatpush2.msra.mxu0 0.0
    %5076 = vmatprep.subr.mxu0 0.0
    %5077 = vmatpush2.msra.mxu0 0.0
    %5078 = vmatprep.subr.mxu0 0.0
    %5079 = vmatpush2.msra.mxu0 0.0
    %5080 = vmatprep.subr.mxu0 0.0
    %5081 = vmatpush2.msra.mxu0 0.0
    %5082 = vmatprep.subr.mxu0 0.0
    %5083 = vmatpush2.msra.mxu0 0.0
    %5084 = vmatprep.subr.mxu0 0.0
    %5085 = vmatpush2.msra.mxu0 0.0
    %5086 = vmatprep.subr.mxu0 0.0
    %5087 = vmatpush2.msra.mxu0 0.0
    %5088 = vmatprep.mubr.f32.mxu0 0.0
    %5089 = vmatmul.mubr.f32.gmra.mxu0 %v4977
    %v5090 = vpop.f32.mrf.mxu0
    %v5091 = vadd.f32 0.0, %v5090
    %v5092 = vpop.f32.mrf.mxu0
    %5093 = vmatprep.mubr.f32.mxu0 0.0
    %5094 = vmatmul.mubr.f32.gmra.mxu0 %v4980
    %v5095 = vpop.f32.mrf.mxu0
    %v5096 = vadd.f32 0.0, %v5095
    %v5097 = vpop.f32.mrf.mxu0
    %5098 = vmatprep.mubr.f32.mxu0 0.0
    %5099 = vmatmul.mubr.f32.gmra.mxu0 %v4983
    %v5100 = vpop.f32.mrf.mxu0
    %v5101 = vadd.f32 0.0, %v5100
    %v5102 = vpop.f32.mrf.mxu0
    %5103 = vmatprep.mubr.f32.mxu0 0.0
    %5104 = vmatmul.mubr.f32.gmra.mxu0 %v4986
    %v5105 = vpop.f32.mrf.mxu0
    %v5106 = vadd.f32 0.0, %v5105
    %v5107 = vpop.f32.mrf.mxu0
    %5108 = vmatprep.mubr.f32.mxu0 0.0
    %5109 = vmatmul.mubr.f32.gmra.mxu0 %v4989
    %v5110 = vpop.f32.mrf.mxu0
    %v5111 = vadd.f32 0.0, %v5110
    %v5112 = vpop.f32.mrf.mxu0
    %5113 = vmatprep.mubr.f32.mxu0 0.0
    %5114 = vmatmul.mubr.f32.gmra.mxu0 %v4992
    %v5115 = vpop.f32.mrf.mxu0
    %v5116 = vadd.f32 0.0, %v5115
    %v5117 = vpop.f32.mrf.mxu0
    %5118 = vmatprep.mubr.f32.mxu0 0.0
    %5119 = vmatmul.mubr.f32.gmra.mxu0 %v4995
    %v5120 = vpop.f32.mrf.mxu0
    %v5121 = vadd.f32 0.0, %v5120
    %v5122 = vpop.f32.mrf.mxu0
    %5123 = vmatprep.mubr.f32.mxu0 0.0
    %5124 = vmatmul.mubr.f32.gmra.mxu0 %v4998
    %v5125 = vpop.f32.mrf.mxu0
    %v5126 = vadd.f32 0.0, %v5125
    %v5127 = vpop.f32.mrf.mxu0
    %5128 = vmatprep.mubr.f32.mxu0 0.0
    %5129 = vmatmul.mubr.f32.gmra.mxu0 %v5001
    %v5130 = vpop.f32.mrf.mxu0
    %v5131 = vadd.f32 0.0, %v5130
    %v5132 = vpop.f32.mrf.mxu0
    %5133 = vmatprep.mubr.f32.mxu0 0.0
    %5134 = vmatmul.mubr.f32.gmra.mxu0 %v5004
    %v5135 = vpop.f32.mrf.mxu0
    %v5136 = vadd.f32 0.0, %v5135
    %v5137 = vpop.f32.mrf.mxu0
    %5138 = vmatprep.mubr.f32.mxu0 0.0
    %5139 = vmatmul.mubr.f32.gmra.mxu0 %v5007
    %v5140 = vpop.f32.mrf.mxu0
    %v5141 = vadd.f32 0.0, %v5140
    %v5142 = vpop.f32.mrf.mxu0
    %5143 = vmatprep.mubr.f32.mxu0 0.0
    %5144 = vmatmul.mubr.f32.gmra.mxu0 %v5010
    %v5145 = vpop.f32.mrf.mxu0
    %v5146 = vadd.f32 0.0, %v5145
    %v5147 = vpop.f32.mrf.mxu0
    %5148 = vmatprep.mubr.f32.mxu0 0.0
    %5149 = vmatmul.mubr.f32.gmra.mxu0 %v5013
    %v5150 = vpop.f32.mrf.mxu0
    %v5151 = vadd.f32 0.0, %v5150
    %v5152 = vpop.f32.mrf.mxu0
    %5153 = vmatprep.mubr.f32.mxu0 0.0
    %5154 = vmatmul.mubr.f32.gmra.mxu0 %v5016
    %v5155 = vpop.f32.mrf.mxu0
    %v5156 = vadd.f32 0.0, %v5155
    %v5157 = vpop.f32.mrf.mxu0
    %5158 = vmatprep.mubr.f32.mxu0 0.0
    %5159 = vmatmul.mubr.f32.gmra.mxu0 %v5019
    %v5160 = vpop.f32.mrf.mxu0
    %v5161 = vadd.f32 0.0, %v5160
    %v5162 = vpop.f32.mrf.mxu0
    %5163 = vmatprep.mubr.f32.mxu0 0.0
    %5164 = vmatmul.mubr.f32.gmra.mxu0 %v5022
    %v5165 = vpop.f32.mrf.mxu0
    %v5166 = vadd.f32 0.0, %v5165
    %v5167 = vpop.f32.mrf.mxu0
    %5168 = vdwg.mxu0
    %v5169 = vadd.f32 %v4939, %v5091
    %v5170 = vadd.f32 %v4940, %v5096
    %v5171 = vadd.f32 %v4941, %v5101
    %v5172 = vadd.f32 %v4942, %v5106
    %v5173 = vadd.f32 %v4943, %v5111
    %v5174 = vadd.f32 %v4944, %v5116
    %v5175 = vadd.f32 %v4945, %v5121
    %v5176 = vadd.f32 %v4946, %v5126
    %v5177 = vadd.f32 %v4947, %v5131
    %v5178 = vadd.f32 %v4948, %v5136
    %v5179 = vadd.f32 %v4949, %v5141
    %v5180 = vadd.f32 %v4950, %v5146
    %v5181 = vadd.f32 %v4951, %v5151
    %v5182 = vadd.f32 %v4952, %v5156
    %v5183 = vadd.f32 %v4953, %v5161
    %v5184 = vadd.f32 %v4954, %v5166
    %vm5185 = vcmask 523264
    %v5186 = vsel %vm5185, %v5169, 0.0
    %v5187 = vsel %vm5185, %v5170, 0.0
    %v5188 = vadd.f32 %v5186, %v5187
    %v5189 = vsel %vm5185, %v5171, 0.0
    %v5190 = vadd.f32 %v5188, %v5189
    %v5191 = vsel %vm5185, %v5172, 0.0
    %v5192 = vadd.f32 %v5190, %v5191
    %v5193 = vsel %vm5185, %v5173, 0.0
    %v5194 = vadd.f32 %v5192, %v5193
    %v5195 = vsel %vm5185, %v5174, 0.0
    %v5196 = vadd.f32 %v5194, %v5195
    %v5197 = vsel %vm5185, %v5175, 0.0
    %v5198 = vadd.f32 %v5196, %v5197
    %v5199 = vsel %vm5185, %v5176, 0.0
    %v5200 = vadd.f32 %v5198, %v5199
    %v5201 = vsel %vm5185, %v5177, 0.0
    %v5202 = vadd.f32 %v5200, %v5201
    %v5203 = vsel %vm5185, %v5178, 0.0
    %v5204 = vadd.f32 %v5202, %v5203
    %v5205 = vsel %vm5185, %v5179, 0.0
    %v5206 = vadd.f32 %v5204, %v5205
    %v5207 = vsel %vm5185, %v5180, 0.0
    %v5208 = vadd.f32 %v5206, %v5207
    %v5209 = vsel %vm5185, %v5181, 0.0
    %v5210 = vadd.f32 %v5208, %v5209
    %v5211 = vsel %vm5185, %v5182, 0.0
    %v5212 = vadd.f32 %v5210, %v5211
    %v5213 = vsel %vm5185, %v5183, 0.0
    %v5214 = vadd.f32 %v5212, %v5213
    %v5215 = vsel %vm5185, %v5184, 0.0
    %v5216 = vadd.f32 %v5214, %v5215
    %v5217 = vrot.slane %v5216, 4
    %v5218 = vadd.f32 %v5216, %v5217
    %v5219 = vrot.slane %v5218, 2
    %v5220 = vadd.f32 %v5218, %v5219
    %v5221 = vrot.slane %v5220, 1
    %v5222 = vadd.f32 %v5220, %v5221
    %v5223 = vmul.f32 %v5169, %v5169
    %v5224 = vmul.f32 %v5170, %v5170
    %v5225 = vmul.f32 %v5171, %v5171
    %v5226 = vmul.f32 %v5172, %v5172
    %v5227 = vmul.f32 %v5173, %v5173
    %v5228 = vmul.f32 %v5174, %v5174
    %v5229 = vmul.f32 %v5175, %v5175
    %v5230 = vmul.f32 %v5176, %v5176
    %v5231 = vmul.f32 %v5177, %v5177
    %v5232 = vmul.f32 %v5178, %v5178
    %v5233 = vmul.f32 %v5179, %v5179
    %v5234 = vmul.f32 %v5180, %v5180
    %v5235 = vmul.f32 %v5181, %v5181
    %v5236 = vmul.f32 %v5182, %v5182
    %v5237 = vmul.f32 %v5183, %v5183
    %v5238 = vmul.f32 %v5184, %v5184
    %v5239 = vsel %vm5185, %v5223, 0.0
    %v5240 = vsel %vm5185, %v5224, 0.0
    %v5241 = vadd.f32 %v5239, %v5240
    %v5242 = vsel %vm5185, %v5225, 0.0
    %v5243 = vadd.f32 %v5241, %v5242
    %v5244 = vsel %vm5185, %v5226, 0.0
    %v5245 = vadd.f32 %v5243, %v5244
    %v5246 = vsel %vm5185, %v5227, 0.0
    %v5247 = vadd.f32 %v5245, %v5246
    %v5248 = vsel %vm5185, %v5228, 0.0
    %v5249 = vadd.f32 %v5247, %v5248
    %v5250 = vsel %vm5185, %v5229, 0.0
    %v5251 = vadd.f32 %v5249, %v5250
    %v5252 = vsel %vm5185, %v5230, 0.0
    %v5253 = vadd.f32 %v5251, %v5252
    %v5254 = vsel %vm5185, %v5231, 0.0
    %v5255 = vadd.f32 %v5253, %v5254
    %v5256 = vsel %vm5185, %v5232, 0.0
    %v5257 = vadd.f32 %v5255, %v5256
    %v5258 = vsel %vm5185, %v5233, 0.0
    %v5259 = vadd.f32 %v5257, %v5258
    %v5260 = vsel %vm5185, %v5234, 0.0
    %v5261 = vadd.f32 %v5259, %v5260
    %v5262 = vsel %vm5185, %v5235, 0.0
    %v5263 = vadd.f32 %v5261, %v5262
    %v5264 = vsel %vm5185, %v5236, 0.0
    %v5265 = vadd.f32 %v5263, %v5264
    %v5266 = vsel %vm5185, %v5237, 0.0
    %v5267 = vadd.f32 %v5265, %v5266
    %v5268 = vsel %vm5185, %v5238, 0.0
    %v5269 = vadd.f32 %v5267, %v5268
    %v5270 = vrot.slane %v5269, 4
    %v5271 = vadd.f32 %v5269, %v5270
    %v5272 = vrot.slane %v5271, 2
    %v5273 = vadd.f32 %v5271, %v5272
    %v5274 = vrot.slane %v5273, 1
    %v5275 = vadd.f32 %v5273, %v5274
    %5277 = vrot.lane.b32.xlu0 %v5222, 112
    %v5278 = vpop.permute.xlu0 %5277
    %v5280 = vadd.f32 %v5222, %v5278
    %5281 = vrot.lane.b32.xlu0 %v5222, 96
    %v5282 = vpop.permute.xlu0 %5281
    %v5284 = vadd.f32 %v5280, %v5282
    %5285 = vrot.lane.b32.xlu0 %v5222, 80
    %v5286 = vpop.permute.xlu0 %5285
    %v5288 = vadd.f32 %v5284, %v5286
    %5290 = vrot.lane.b32.xlu0 %v5275, 112
    %v5291 = vpop.permute.xlu0 %5290
    %v5293 = vadd.f32 %v5275, %v5291
    %5294 = vrot.lane.b32.xlu0 %v5275, 96
    %v5295 = vpop.permute.xlu0 %5294
    %v5297 = vadd.f32 %v5293, %v5295
    %5298 = vrot.lane.b32.xlu0 %v5275, 80
    %v5299 = vpop.permute.xlu0 %5298
    %v5301 = vadd.f32 %v5297, %v5299
    %v5302 = vmul.f32 %v5288, %v2986
    %v5303 = vmul.f32 %v5301, %v2986
    %v5304 = vmul.f32 %v5302, %v5302
    %v5305 = vsub.f32 %v5303, %v5304
    %v5306 = vmax.f32 %v5305, 0.0
    %v5307 = vld [vmem:[%s8] sm:$0x1]
    %v5308 = vadd.f32 %v5306, 1e-05
    %v5309 = vrsqrt.pop %v5308
    %v5310 = vmul.f32 %v5307, %v5309
    %v5311 = vld [vmem:[%s9] sm:$0x1]
    %v5312 = vmul.f32 %v5302, %v5310
    %v5313 = vsub.f32 %v5311, %v5312
    %v5315 = vlaneseq
    %v5316 = vshrl.u32 %v5315, 7
    %v5317 = vsub.s32 0, %v5316
    %v5318 = vrot.slane %v5310, %v5317
    %5319 = vrot.lane.b32.xlu0 %v5318, 16
    %v5320 = vpop.permute.xlu0 %5319
    %5322 = vrot.lane.b32.xlu0 %v5318, 32
    %v5323 = vpop.permute.xlu0 %5322
    %5325 = vrot.lane.b32.xlu0 %v5318, 48
    %v5326 = vpop.permute.xlu0 %5325
    %v5328 = vsel %vm2639, %v5310, %v5320
    %v5329 = vsel %vm49, %v5328, %v5323
    %vm5330 = vcmask 392192
    %v5331 = vsel %vm5330, %v5329, %v5326
    %v5333 = vlaneseq
    %v5334 = vshrl.u32 %v5333, 7
    %v5335 = vsub.s32 0, %v5334
    %v5336 = vrot.slane %v5313, %v5335
    %5337 = vrot.lane.b32.xlu0 %v5336, 16
    %v5338 = vpop.permute.xlu0 %5337
    %5340 = vrot.lane.b32.xlu0 %v5336, 32
    %v5341 = vpop.permute.xlu0 %5340
    %5343 = vrot.lane.b32.xlu0 %v5336, 48
    %v5344 = vpop.permute.xlu0 %5343
    %v5346 = vsel %vm2639, %v5313, %v5338
    %v5347 = vsel %vm49, %v5346, %v5341
    %v5348 = vsel %vm5330, %v5347, %v5344
    %v5349 = vlaneseq
    %v5350 = vshrl.u32 %v5349, 7
    %v5351 = vsub.s32 0, %v5350
    %v5352 = vrot.slane %v5331, %v5351
    %v5353 = vmul.f32 %v5169, %v5352
    %v5354 = vmul.f32 %v5170, %v5352
    %v5355 = vmul.f32 %v5171, %v5352
    %v5356 = vmul.f32 %v5172, %v5352
    %v5357 = vmul.f32 %v5173, %v5352
    %v5358 = vmul.f32 %v5174, %v5352
    %v5359 = vmul.f32 %v5175, %v5352
    %v5360 = vmul.f32 %v5176, %v5352
    %v5361 = vmul.f32 %v5177, %v5352
    %v5362 = vmul.f32 %v5178, %v5352
    %v5363 = vmul.f32 %v5179, %v5352
    %v5364 = vmul.f32 %v5180, %v5352
    %v5365 = vmul.f32 %v5181, %v5352
    %v5366 = vmul.f32 %v5182, %v5352
    %v5367 = vmul.f32 %v5183, %v5352
    %v5368 = vmul.f32 %v5184, %v5352
    %v5369 = vlaneseq
    %v5370 = vshrl.u32 %v5369, 7
    %v5371 = vsub.s32 0, %v5370
    %v5372 = vrot.slane %v5348, %v5371
    %v5373 = vadd.f32 %v5353, %v5372
    %v5374 = vadd.f32 %v5354, %v5372
    %v5375 = vadd.f32 %v5355, %v5372
    %v5376 = vadd.f32 %v5356, %v5372
    %v5377 = vadd.f32 %v5357, %v5372
    %v5378 = vadd.f32 %v5358, %v5372
    %v5379 = vadd.f32 %v5359, %v5372
    %v5380 = vadd.f32 %v5360, %v5372
    %v5381 = vadd.f32 %v5361, %v5372
    %v5382 = vadd.f32 %v5362, %v5372
    %v5383 = vadd.f32 %v5363, %v5372
    %v5384 = vadd.f32 %v5364, %v5372
    %v5385 = vadd.f32 %v5365, %v5372
    %v5386 = vadd.f32 %v5366, %v5372
    %v5387 = vadd.f32 %v5367, %v5372
    %v5388 = vadd.f32 %v5368, %v5372
    %v5389 = vmax.f32 %v5373, 0.0
    %v5390 = vmax.f32 %v5374, 0.0
    %v5391 = vmax.f32 %v5375, 0.0
    %v5392 = vmax.f32 %v5376, 0.0
    %v5393 = vmax.f32 %v5377, 0.0
    %v5394 = vmax.f32 %v5378, 0.0
    %v5395 = vmax.f32 %v5379, 0.0
    %v5396 = vmax.f32 %v5380, 0.0
    %v5397 = vmax.f32 %v5381, 0.0
    %v5398 = vmax.f32 %v5382, 0.0
    %v5399 = vmax.f32 %v5383, 0.0
    %v5400 = vmax.f32 %v5384, 0.0
    %v5401 = vmax.f32 %v5385, 0.0
    %v5402 = vmax.f32 %v5386, 0.0
    %v5403 = vmax.f32 %v5387, 0.0
    %v5404 = vmax.f32 %v5388, 0.0
    %5405 = vxpose.xlu0.b32.start [1/16] %v5389, 128
    %5406 = vxpose.xlu0.b32.cont [2/16] %v5390, 128
    %5407 = vxpose.xlu0.b32.cont [3/16] %v5391, 128
    %5408 = vxpose.xlu0.b32.cont [4/16] %v5392, 128
    %5409 = vxpose.xlu0.b32.cont [5/16] %v5393, 128
    %5410 = vxpose.xlu0.b32.cont [6/16] %v5394, 128
    %5411 = vxpose.xlu0.b32.cont [7/16] %v5395, 128
    %5412 = vxpose.xlu0.b32.cont [8/16] %v5396, 128
    %5413 = vxpose.xlu0.b32.cont [9/16] %v5397, 128
    %5414 = vxpose.xlu0.b32.cont [10/16] %v5398, 128
    %5415 = vxpose.xlu0.b32.cont [11/16] %v5399, 128
    %5416 = vxpose.xlu0.b32.cont [12/16] %v5400, 128
    %5417 = vxpose.xlu0.b32.cont [13/16] %v5401, 128
    %5418 = vxpose.xlu0.b32.cont [14/16] %v5402, 128
    %5419 = vxpose.xlu0.b32.cont [15/16] %v5403, 128
    %5420 = vxpose.xlu0.b32.end [16/16] %v5404, 128
    %v5421 = vpop.trf.xlu0
    %v5422 = vpop.trf.xlu0
    %v5423 = vpop.trf.xlu0
    %v5424 = vpop.trf.xlu0
    %v5425 = vpop.trf.xlu0
    %v5426 = vpop.trf.xlu0
    %v5427 = vpop.trf.xlu0
    %v5428 = vpop.trf.xlu0
    %v5429 = vpop.trf.xlu0
    %v5430 = vpop.trf.xlu0
    %v5431 = vpop.trf.xlu0
    %v5432 = vpop.trf.xlu0
    %v5433 = vpop.trf.xlu0
    %v5434 = vpop.trf.xlu0
    %v5435 = vpop.trf.xlu0
    %v5436 = vpop.trf.xlu0
    %5437 = vst [vmem:[%s10] sm:$0xff] %v5421
    %5438 = vst [vmem:[%s10 + $0x8] sm:$0xff] %v5422
    %5439 = vst [vmem:[%s10 + $0x10] sm:$0xff] %v5423
    %5440 = vst [vmem:[%s10 + $0x18] sm:$0xff] %v5424
    %5441 = vst [vmem:[%s10 + $0x20] sm:$0xff] %v5425
    %5442 = vst [vmem:[%s10 + $0x28] sm:$0xff] %v5426
    %5443 = vst [vmem:[%s10 + $0x30] sm:$0xff] %v5427
    %5444 = vst [vmem:[%s10 + $0x38] sm:$0xff] %v5428
    // Predicated region
    $region46: #{decoder_block_forward.1} parent=1 // pred_check
      _
    $region47: #{decoder_block_forward.1} parent=1 // pred_check_branch
      %5446 = sbr.rel (0) target = $region49
    $region48: #{decoder_block_forward.1} parent=1 // pred_region
      _
    $region49: #{decoder_block_forward.1} parent=1 // pred_fallthru
      _
    // Predicated region
    $region50: #{decoder_block_forward.1} parent=1 // pred_check
      _
    $region51: #{decoder_block_forward.1} parent=1 // pred_check_branch
      %5448 = sbr.rel (0) target = $region53
    $region52: #{decoder_block_forward.1} parent=1 // pred_region
      _
    $region53: #{decoder_block_forward.1} parent=1 // pred_fallthru
      _
    %5449 = vsyncpa [#allocation6], 1

</llo_original>
